<compile_context>
chip_gen: v7x
topology: tpu7x:2x2x1
jax: 0.10.0
libtpu: 0.0.40
codegen_flags: <defaults>
</compile_context>

<pallas_src>
import jax
import jax.numpy as jnp
import numpy as np
from jax.experimental import pallas as pl
from jax.experimental.pallas import tpu as pltpu

PATCH = 4
EMBED = 256
VMEM_LIMIT_BYTES = 48 * 1024 * 1024  # explicit scoped-VMEM budget (safe on v5e/v6e/v7x)


def _pick_tile(n, candidates):
    """Largest candidate that evenly divides n, else n itself."""
    for c in candidates:
        if c <= n and n % c == 0:
            return c
    return n


# --------------------------------------------------------------------------
# Kernel 1 (fused): patch projections -> split -> gated fusion -> decoder head
#   y      = patches @ [enc_w | lten_w] + [enc_b | lten_b]        (one MXU pass)
#   img    = y[:, :D]                 (SAM image-encoder stand-in features)
#   lten   = relu(y[:, D:])           (LTEN stand-in features)
#   g      = sigmoid([img | lten] @ [Wa; Wb] + b)                 (one MXU pass)
#   fused  = lten + g*(img - lten)
#   logits = sum(fused * dec_w, axis=-1)        (VPU reduction, no N=1 matmul)
# The per-batch prompt contribution ((no_mask + text_token)·dec_w + dec_b) is a
# scalar and is added outside (tiny XLA op), which keeps this kernel simple.
# --------------------------------------------------------------------------
def _fused_encode_decode_kernel(patch_ref, wcat_ref, bcat_ref, wab_ref,
                                gfb_ref, decw_ref, o_ref):
    D = decw_ref.shape[1]
    x = patch_ref[0]                                                   # (tj, pdim) bf16
    y = jnp.dot(x, wcat_ref[...], preferred_element_type=jnp.float32)  # f32 accumulate
    y = y + bcat_ref[...]                                              # (tj, 2D)

    # z = [img | relu(lten)] built without concat: keep-mask 1 on first D lanes.
    col = jax.lax.broadcasted_iota(jnp.int32, y.shape, 1)
    keep = (col < D).astype(y.dtype)
    z = jnp.maximum(y, y * keep)                                       # (tj, 2D) f32

    img = y[:, :D]                        # TODO(synk): ImageEncoderViT stand-in
    lten = z[:, D:]                       # TODO(synk): LTEN stand-in (= relu(y[:, D:]))

    # GatedFusion(input_dim=256): g = sigmoid(img@Wa + lten@Wb + b); gated sum.
    g = jnp.dot(z.astype(jnp.bfloat16), wab_ref[...],
                preferred_element_type=jnp.float32) + gfb_ref[...]
    g = jax.nn.sigmoid(g)                                              # f32 EUP
    fused = lten + g * (img - lten)                                    # f32 VPU

    # TODO(synk): MaskDecoder/TwoWayTransformer stand-in = per-pixel linear head.
    logits = jnp.sum(fused * decw_ref[...], axis=-1, keepdims=True)    # (tj, 1)
    o_ref[0] = logits


def fused_encode_decode(patches_bf16, w_cat, b_cat, gf_wab, gf_b, dec_w_row):
    B, HW, PDIM = patches_bf16.shape
    D = dec_w_row.shape[1]
    tj = _pick_tile(HW, (2048, 1024, 512, 256, 128))
    nj = HW // tj
    out = pl.pallas_call(
        _fused_encode_decode_kernel,
        out_shape=jax.ShapeDtypeStruct((B, HW, 1), jnp.float32),
        grid=(B, nj),
        in_specs=[
            pl.BlockSpec((1, tj, PDIM), lambda b, j: (b, j, 0)),
            pl.BlockSpec((PDIM, 2 * D), lambda b, j: (0, 0)),
            pl.BlockSpec((1, 2 * D), lambda b, j: (0, 0)),
            pl.BlockSpec((2 * D, D), lambda b, j: (0, 0)),
            pl.BlockSpec((1, D), lambda b, j: (0, 0)),
            pl.BlockSpec((1, D), lambda b, j: (0, 0)),
        ],
        out_specs=pl.BlockSpec((1, tj, 1), lambda b, j: (b, j, 0)),
        compiler_params=pltpu.CompilerParams(
            dimension_semantics=("parallel", "parallel"),
            vmem_limit_bytes=VMEM_LIMIT_BYTES),
    )(patches_bf16, w_cat, b_cat, gf_wab, gf_b, dec_w_row)
    return out[..., 0]                                                 # (B, HW)


# --------------------------------------------------------------------------
# Kernel 2: postprocess_masks = bilinear upsample (separable matmuls) + sigmoid
# Output rows are tiled (grid=(B, nh)) so large out_sizes stay pipelined and
# both v7x TensorCores get work even at small B.
# --------------------------------------------------------------------------
def _upsample_sigmoid_kernel(m_ref, wh_ref, wwt_ref, o_ref):
    m = m_ref[0]                                                       # (h, w) f32
    t = jnp.dot(wh_ref[...], m, preferred_element_type=jnp.float32)    # (th, w)
    y = jnp.dot(t, wwt_ref[...], preferred_element_type=jnp.float32)   # (th, W)
    o_ref[0] = jax.nn.sigmoid(y)


def _bilinear_matrix(out_size, in_size):
    # PyTorch F.interpolate(mode='bilinear', align_corners=False) weights.
    scale = in_size / out_size
    i = np.arange(out_size)
    src = np.clip((i + 0.5) * scale - 0.5, 0.0, in_size - 1)
    lo = np.floor(src).astype(np.int64)
    hi = np.minimum(lo + 1, in_size - 1)
    frac = src - lo
    W = np.zeros((out_size, in_size), np.float32)
    W[np.arange(out_size), lo] += 1.0 - frac
    W[np.arange(out_size), hi] += frac
    return jnp.asarray(W)


def upsample_sigmoid(masks, out_size):
    B, h, w = masks.shape
    Wh = _bilinear_matrix(out_size, h)            # (out, h)
    WwT = _bilinear_matrix(out_size, w).T         # (w, out), pre-transposed (no in-kernel XLU transpose)
    th = _pick_tile(out_size, (512, 256, 128, 64, 32, 16, 8))
    nh = out_size // th
    return pl.pallas_call(
        _upsample_sigmoid_kernel,
        out_shape=jax.ShapeDtypeStruct((B, out_size, out_size), jnp.float32),
        grid=(B, nh),
        in_specs=[
            pl.BlockSpec((1, h, w), lambda b, r: (b, 0, 0)),
            pl.BlockSpec((th, h), lambda b, r: (r, 0)),
            pl.BlockSpec((w, out_size), lambda b, r: (0, 0)),
        ],
        out_specs=pl.BlockSpec((1, th, out_size), lambda b, r: (b, r, 0)),
        compiler_params=pltpu.CompilerParams(
            dimension_semantics=("parallel", "parallel"),
            vmem_limit_bytes=VMEM_LIMIT_BYTES),
    )(masks.astype(jnp.float32), Wh, WwT)


# --------------------------------------------------------------------------
# Parameter init (deterministic, synthetic) and wrapper forward
# --------------------------------------------------------------------------
def init_params(key):
    ks = jax.random.split(key, 8)
    s = 0.02
    D = EMBED
    pdim = 3 * PATCH * PATCH
    return dict(
        enc_w=jax.random.normal(ks[0], (pdim, D), jnp.float32) * s,
        enc_b=jnp.zeros((D,), jnp.float32),
        lten_w=jax.random.normal(ks[1], (pdim, D), jnp.float32) * s,
        lten_b=jnp.zeros((D,), jnp.float32),
        gf_wa=jax.random.normal(ks[2], (D, D), jnp.float32) * s,
        gf_wb=jax.random.normal(ks[3], (D, D), jnp.float32) * s,
        gf_b=jnp.zeros((D,), jnp.float32),
        ta_w=jax.random.normal(ks[4], (512, D), jnp.float32) * s,
        ta_b=jnp.zeros((D,), jnp.float32),
        bn_gamma=jnp.ones((D,), jnp.float32),
        bn_beta=jnp.zeros((D,), jnp.float32),
        bn_mean=jnp.zeros((D,), jnp.float32),
        bn_var=jnp.ones((D,), jnp.float32),
        no_mask_embed=jax.random.normal(ks[5], (D,), jnp.float32) * s,
        dec_w=jax.random.normal(ks[6], (D, 1), jnp.float32) * s,
        dec_b=jnp.zeros((1,), jnp.float32),
    )


def mtsnet_forward(params, x_img, text_features):
    """x_img: (B, 3, H, W) NCHW.  text_features: (B, 512) (CLIP stand-in)."""
    B, C, H, W = x_img.shape
    assert H % PATCH == 0 and W % PATCH == 0
    h, w = H // PATCH, W // PATCH
    D = EMBED

    # NCHW -> (B, h*w, C*P*P) patches; bf16 MXU operands (f32 accumulation in-kernel).
    patches = x_img.reshape(B, C, h, PATCH, w, PATCH)
    patches = patches.transpose(0, 2, 4, 1, 3, 5).reshape(B, h * w, C * PATCH * PATCH)
    patches = patches.astype(jnp.bfloat16)

    # Concatenate the two projection weights -> single matmul, patches read once.
    w_cat = jnp.concatenate([params["enc_w"], params["lten_w"]], axis=1).astype(jnp.bfloat16)
    b_cat = jnp.concatenate([params["enc_b"], params["lten_b"]])[None, :].astype(jnp.float32)
    # Concatenate the two gating weights -> single (2D, D) gate matmul in-kernel.
    gf_wab = jnp.concatenate([params["gf_wa"], params["gf_wb"]], axis=0).astype(jnp.bfloat16)

    low_res_flat = fused_encode_decode(
        patches, w_cat, b_cat, gf_wab,
        params["gf_b"][None, :].astype(jnp.float32),
        params["dec_w"].reshape(1, D).astype(jnp.float32),
    )                                                                  # (B, h*w)

    # Text_Embedding_Affine: Linear(512,256) + ReLU + BatchNorm1d(256) (eval stats).
    # TODO(synk): CLIP text encoder unavailable; text_features is a synthetic stand-in.
    # Tiny (2x512x256) -> plain XLA; folded into a per-batch decoder bias scalar
    # (the decoder head is linear, so this is mathematically identical to adding
    # the prompt token per-pixel before the head).
    t = jnp.maximum(text_features.astype(jnp.float32) @ params["ta_w"] + params["ta_b"], 0.0)
    t = ((t - params["bn_mean"]) * jax.lax.rsqrt(params["bn_var"] + 1e-5)
         * params["bn_gamma"] + params["bn_beta"])                     # (B, 256)
    prompt = t + params["no_mask_embed"][None, :]                      # (B, 256)
    dec_bias = prompt @ params["dec_w"].reshape(D) + params["dec_b"][0]  # (B,)

    low_res_masks = (low_res_flat + dec_bias[:, None]).reshape(B, h, w)

    # postprocess_masks: bilinear upsample to (img_size, img_size) + sigmoid.
    # (The second F.interpolate to original_size==img_size is the identity here.)
    high_res_masks = upsample_sigmoid(low_res_masks, H)                # (B, H, W)
    return high_res_masks


if __name__ == "__main__":
    key = jax.random.PRNGKey(0)
    k_img, k_txt, k_par = jax.random.split(key, 3)

    B, C, H, W = 2, 3, 64, 64
    x_img = jax.random.normal(k_img, (B, C, H, W), jnp.float32)
    # TODO(synk): CLIP tokenizer/text-encoder unavailable; synthetic text features.
    text_features = jax.random.normal(k_txt, (B, 512), jnp.float32)

    params = init_params(k_par)
    fwd = jax.jit(mtsnet_forward)
    out = jax.block_until_ready(fwd(params, x_img, text_features))

    assert out.shape == (B, H, W), out.shape
    assert bool(jnp.all(jnp.isfinite(out)))
    assert bool(jnp.all((out >= 0.0) & (out <= 1.0)))  # sigmoid output
    print("KERNEL_OK")
</pallas_src>

<mosaic_0001>
module attributes {stable_mosaic.version = 11 : i64} {
  func.func @_fused_encode_decode_kernel(%arg0: i32, %arg1: i32, %arg2: memref<1x256x48xbf16, #tpu.memory_space<vmem>>, %arg3: memref<48x512xbf16, #tpu.memory_space<vmem>>, %arg4: memref<1x512xf32, #tpu.memory_space<vmem>>, %arg5: memref<512x256xbf16, #tpu.memory_space<vmem>>, %arg6: memref<1x256xf32, #tpu.memory_space<vmem>>, %arg7: memref<1x256xf32, #tpu.memory_space<vmem>>, %arg8: memref<1x256x1xf32, #tpu.memory_space<vmem>>) attributes {dimension_semantics = [#tpu.dimension_semantics<parallel>, #tpu.dimension_semantics<parallel>], iteration_bounds = array<i64: 2, 1>, scalar_prefetch = 0 : i64, scratch_operands = 0 : i64, tpu.core_type = #tpu.core_type<tc>, window_params = [{transform_indices = @transform_0, window_bounds = array<i64: 1, 256, 48>}, {pipeline_mode = #tpu.pipeline_mode<synchronous>, transform_indices = @transform_1, window_bounds = array<i64: 48, 512>}, {pipeline_mode = #tpu.pipeline_mode<synchronous>, transform_indices = @transform_2, window_bounds = array<i64: 1, 512>}, {pipeline_mode = #tpu.pipeline_mode<synchronous>, transform_indices = @transform_3, window_bounds = array<i64: 512, 256>}, {pipeline_mode = #tpu.pipeline_mode<synchronous>, transform_indices = @transform_4, window_bounds = array<i64: 1, 256>}, {pipeline_mode = #tpu.pipeline_mode<synchronous>, transform_indices = @transform_5, window_bounds = array<i64: 1, 256>}, {transform_indices = @transform_6, window_bounds = array<i64: 1, 256, 1>}]} {
    %c0 = arith.constant 0 : index
    %c0_0 = arith.constant 0 : index
    %c0_1 = arith.constant 0 : index
    %0 = vector.load %arg2[%c0, %c0_0, %c0_1] : memref<1x256x48xbf16, #tpu.memory_space<vmem>>, vector<1x256x48xbf16>
    %1 = vector.shape_cast %0 : vector<1x256x48xbf16> to vector<256x48xbf16>
    %c0_2 = arith.constant 0 : index
    %c0_3 = arith.constant 0 : index
    %2 = vector.load %arg3[%c0_2, %c0_3] : memref<48x512xbf16, #tpu.memory_space<vmem>>, vector<48x512xbf16>
    %cst = arith.constant dense<0.000000e+00> : vector<256x512xf32>
    %3 = tpu.matmul %1, %2, %cst {dimension_numbers = #tpu.dot_dimension_numbers<[1], [0], [0], [1], [0, 0, 1, 1], [], []>} : vector<256x48xbf16>, vector<48x512xbf16>, vector<256x512xf32> -> vector<256x512xf32>
    %c0_4 = arith.constant 0 : index
    %c0_5 = arith.constant 0 : index
    %4 = vector.load %arg4[%c0_4, %c0_5] : memref<1x512xf32, #tpu.memory_space<vmem>>, vector<1x512xf32>
    %5 = vector.broadcast %4 : vector<1x512xf32> to vector<256x512xf32>
    %6 = arith.addf %3, %5 : vector<256x512xf32>
    %7 = tpu.iota {dimensions = array<i32: 1>} : vector<256x512xi32>
    %c256_i32 = arith.constant 256 : i32
    %8 = vector.broadcast %c256_i32 : i32 to vector<256x512xi32>
    %9 = arith.cmpi slt, %7, %8 : vector<256x512xi32>
    %10 = arith.extui %9 : vector<256x512xi1> to vector<256x512xi32>
    %11 = arith.sitofp %10 : vector<256x512xi32> to vector<256x512xf32>
    %12 = arith.mulf %6, %11 : vector<256x512xf32>
    %13 = arith.maximumf %6, %12 : vector<256x512xf32>
    %14 = vector.extract_strided_slice %6 {offsets = [0, 0], sizes = [256, 256], strides = [1, 1]} : vector<256x512xf32> to vector<256x256xf32>
    %15 = vector.extract_strided_slice %13 {offsets = [0, 256], sizes = [256, 256], strides = [1, 1]} : vector<256x512xf32> to vector<256x256xf32>
    %16 = arith.truncf %13 : vector<256x512xf32> to vector<256x512xbf16>
    %c0_6 = arith.constant 0 : index
    %c0_7 = arith.constant 0 : index
    %17 = vector.load %arg5[%c0_6, %c0_7] : memref<512x256xbf16, #tpu.memory_space<vmem>>, vector<512x256xbf16>
    %cst_8 = arith.constant dense<0.000000e+00> : vector<256x256xf32>
    %18 = tpu.matmul %16, %17, %cst_8 {dimension_numbers = #tpu.dot_dimension_numbers<[1], [0], [0], [1], [0, 0, 1, 1], [], []>} : vector<256x512xbf16>, vector<512x256xbf16>, vector<256x256xf32> -> vector<256x256xf32>
    %c0_9 = arith.constant 0 : index
    %c0_10 = arith.constant 0 : index
    %19 = vector.load %arg6[%c0_9, %c0_10] : memref<1x256xf32, #tpu.memory_space<vmem>>, vector<1x256xf32>
    %20 = vector.broadcast %19 : vector<1x256xf32> to vector<256x256xf32>
    %21 = arith.addf %18, %20 : vector<256x256xf32>
    %22 = arith.negf %21 : vector<256x256xf32>
    %23 = math.exp %22 : vector<256x256xf32>
    %cst_11 = arith.constant 1.000000e+00 : f32
    %24 = vector.broadcast %cst_11 : f32 to vector<256x256xf32>
    %25 = arith.addf %24, %23 : vector<256x256xf32>
    %26 = arith.divf %24, %25 : vector<256x256xf32>
    %27 = arith.subf %14, %15 : vector<256x256xf32>
    %28 = arith.mulf %26, %27 : vector<256x256xf32>
    %29 = arith.addf %15, %28 : vector<256x256xf32>
    %c0_12 = arith.constant 0 : index
    %c0_13 = arith.constant 0 : index
    %30 = vector.load %arg7[%c0_12, %c0_13] : memref<1x256xf32, #tpu.memory_space<vmem>>, vector<1x256xf32>
    %31 = vector.broadcast %30 : vector<1x256xf32> to vector<256x256xf32>
    %32 = arith.mulf %29, %31 : vector<256x256xf32>
    %cst_14 = arith.constant dense<0.000000e+00> : vector<256xf32>
    %33 = vector.multi_reduction <add>, %32, %cst_14 [1] : vector<256x256xf32> to vector<256xf32>
    %34 = vector.shape_cast %33 : vector<256xf32> to vector<256x1xf32>
    %c0_15 = arith.constant 0 : index
    %c0_16 = arith.constant 0 : index
    %c0_17 = arith.constant 0 : index
    %35 = vector.load %arg8[%c0_15, %c0_16, %c0_17] : memref<1x256x1xf32, #tpu.memory_space<vmem>>, vector<1x256x1xf32>
    %36 = vector.shape_cast %35 : vector<1x256x1xf32> to vector<256x1xf32>
    %37 = vector.shape_cast %34 : vector<256x1xf32> to vector<1x256x1xf32>
    tpu.vector_store %arg8[%c0_15, %c0_16, %c0_17], %37 {strides = array<i32>} : memref<1x256x1xf32, #tpu.memory_space<vmem>>, vector<1x256x1xf32>,
    return
  }
  func.func @transform_0(%arg0: i32, %arg1: i32) -> (i32, i32, i32) {
    %c0_i32 = arith.constant 0 : i32
    %c0_i32_0 = arith.constant 0 : i32
    return %arg0, %arg1, %c0_i32 : i32, i32, i32
  }
  func.func @transform_1(%arg0: i32, %arg1: i32) -> (i32, i32) {
    %c0_i32 = arith.constant 0 : i32
    %c0_i32_0 = arith.constant 0 : i32
    %c0_i32_1 = arith.constant 0 : i32
    return %c0_i32, %c0_i32_0 : i32, i32
  }
  func.func @transform_2(%arg0: i32, %arg1: i32) -> (i32, i32) {
    %c0_i32 = arith.constant 0 : i32
    %c0_i32_0 = arith.constant 0 : i32
    %c0_i32_1 = arith.constant 0 : i32
    return %c0_i32, %c0_i32_0 : i32, i32
  }
  func.func @transform_3(%arg0: i32, %arg1: i32) -> (i32, i32) {
    %c0_i32 = arith.constant 0 : i32
    %c0_i32_0 = arith.constant 0 : i32
    %c0_i32_1 = arith.constant 0 : i32
    return %c0_i32, %c0_i32_0 : i32, i32
  }
  func.func @transform_4(%arg0: i32, %arg1: i32) -> (i32, i32) {
    %c0_i32 = arith.constant 0 : i32
    %c0_i32_0 = arith.constant 0 : i32
    %c0_i32_1 = arith.constant 0 : i32
    return %c0_i32, %c0_i32_0 : i32, i32
  }
  func.func @transform_5(%arg0: i32, %arg1: i32) -> (i32, i32) {
    %c0_i32 = arith.constant 0 : i32
    %c0_i32_0 = arith.constant 0 : i32
    %c0_i32_1 = arith.constant 0 : i32
    return %c0_i32, %c0_i32_0 : i32, i32
  }
  func.func @transform_6(%arg0: i32, %arg1: i32) -> (i32, i32, i32) {
    %c0_i32 = arith.constant 0 : i32
    %c0_i32_0 = arith.constant 0 : i32
    return %arg0, %arg1, %c0_i32 : i32, i32, i32
  }
}

module attributes {stable_mosaic.version = 11 : i64} {
  func.func @_upsample_sigmoid_kernel(%arg0: i32, %arg1: i32, %arg2: memref<1x16x16xf32, #tpu.memory_space<vmem>>, %arg3: memref<64x16xf32, #tpu.memory_space<vmem>>, %arg4: memref<16x64xf32, #tpu.memory_space<vmem>>, %arg5: memref<1x64x64xf32, #tpu.memory_space<vmem>>) attributes {dimension_semantics = [#tpu.dimension_semantics<parallel>, #tpu.dimension_semantics<parallel>], iteration_bounds = array<i64: 2, 1>, scalar_prefetch = 0 : i64, scratch_operands = 0 : i64, tpu.core_type = #tpu.core_type<tc>, window_params = [{transform_indices = @transform_0, window_bounds = array<i64: 1, 16, 16>}, {transform_indices = @transform_1, window_bounds = array<i64: 64, 16>}, {pipeline_mode = #tpu.pipeline_mode<synchronous>, transform_indices = @transform_2, window_bounds = array<i64: 16, 64>}, {transform_indices = @transform_3, window_bounds = array<i64: 1, 64, 64>}]} {
    %c0 = arith.constant 0 : index
    %c0_0 = arith.constant 0 : index
    %c0_1 = arith.constant 0 : index
    %0 = vector.load %arg2[%c0, %c0_0, %c0_1] : memref<1x16x16xf32, #tpu.memory_space<vmem>>, vector<1x16x16xf32>
    %1 = vector.shape_cast %0 : vector<1x16x16xf32> to vector<16x16xf32>
    %c0_2 = arith.constant 0 : index
    %c0_3 = arith.constant 0 : index
    %2 = vector.load %arg3[%c0_2, %c0_3] : memref<64x16xf32, #tpu.memory_space<vmem>>, vector<64x16xf32>
    %cst = arith.constant dense<0.000000e+00> : vector<64x16xf32>
    %3 = tpu.matmul %2, %1, %cst {dimension_numbers = #tpu.dot_dimension_numbers<[1], [0], [0], [1], [0, 0, 1, 1], [], []>} : vector<64x16xf32>, vector<16x16xf32>, vector<64x16xf32> -> vector<64x16xf32>
    %c0_4 = arith.constant 0 : index
    %c0_5 = arith.constant 0 : index
    %4 = vector.load %arg4[%c0_4, %c0_5] : memref<16x64xf32, #tpu.memory_space<vmem>>, vector<16x64xf32>
    %cst_6 = arith.constant dense<0.000000e+00> : vector<64x64xf32>
    %5 = tpu.matmul %3, %4, %cst_6 {dimension_numbers = #tpu.dot_dimension_numbers<[1], [0], [0], [1], [0, 0, 1, 1], [], []>} : vector<64x16xf32>, vector<16x64xf32>, vector<64x64xf32> -> vector<64x64xf32>
    %6 = arith.negf %5 : vector<64x64xf32>
    %7 = math.exp %6 : vector<64x64xf32>
    %cst_7 = arith.constant 1.000000e+00 : f32
    %8 = vector.broadcast %cst_7 : f32 to vector<64x64xf32>
    %9 = arith.addf %8, %7 : vector<64x64xf32>
    %10 = arith.divf %8, %9 : vector<64x64xf32>
    %c0_8 = arith.constant 0 : index
    %c0_9 = arith.constant 0 : index
    %c0_10 = arith.constant 0 : index
    %11 = vector.load %arg5[%c0_8, %c0_9, %c0_10] : memref<1x64x64xf32, #tpu.memory_space<vmem>>, vector<1x64x64xf32>
    %12 = vector.shape_cast %11 : vector<1x64x64xf32> to vector<64x64xf32>
    %13 = vector.shape_cast %10 : vector<64x64xf32> to vector<1x64x64xf32>
    tpu.vector_store %arg5[%c0_8, %c0_9, %c0_10], %13 {strides = array<i32>} : memref<1x64x64xf32, #tpu.memory_space<vmem>>, vector<1x64x64xf32>,
    return
  }
  func.func @transform_0(%arg0: i32, %arg1: i32) -> (i32, i32, i32) {
    %c0_i32 = arith.constant 0 : i32
    %c0_i32_0 = arith.constant 0 : i32
    %c0_i32_1 = arith.constant 0 : i32
    return %arg0, %c0_i32, %c0_i32_0 : i32, i32, i32
  }
  func.func @transform_1(%arg0: i32, %arg1: i32) -> (i32, i32) {
    %c0_i32 = arith.constant 0 : i32
    %c0_i32_0 = arith.constant 0 : i32
    return %arg1, %c0_i32 : i32, i32
  }
  func.func @transform_2(%arg0: i32, %arg1: i32) -> (i32, i32) {
    %c0_i32 = arith.constant 0 : i32
    %c0_i32_0 = arith.constant 0 : i32
    %c0_i32_1 = arith.constant 0 : i32
    return %c0_i32, %c0_i32_0 : i32, i32
  }
  func.func @transform_3(%arg0: i32, %arg1: i32) -> (i32, i32, i32) {
    %c0_i32 = arith.constant 0 : i32
    %c0_i32_0 = arith.constant 0 : i32
    return %arg0, %arg1, %c0_i32 : i32, i32, i32
  }
}

</mosaic_0001>

<llo_original>
// kernel: mtsnet_forward.3
$region0: #{mtsnet_forward.3}
  #allocation0 [shape = 'u32[]', space=smem, size = 0x4, offset = 0x4, fixed_abs, tag = 'smem constant byte address 0x4 - core index']
  #allocation1 [shape = 'u32[144,128]{1,0:T(1,128)}', space=vmem, size = 0x12000, scoped, tag = 'internal scratch']
  %s0 = inlined_call_operand.vmem [shape: f32[2,16,16], index: 0, kind: input, shape index: {}]
  %s1 = inlined_call_operand.vmem [shape: f32[64,16], index: 1, kind: input, shape index: {}]
  %s2 = inlined_call_operand.vmem [shape: f32[16,64], index: 2, kind: input, shape index: {}]
  %s3 = inlined_call_operand.hbm [shape: f32[2,64,64], index: 3, kind: output, shape index: {}]
  %s4 = sld [smem:[#allocation0]]
  $region45: #{mtsnet_forward.3} parent=0
    _
  %s6 = ssub.s32 1, %s4
  %s7 = scalar_select 0, %s6, %s4
  $region1: #{mtsnet_forward.3} parent=0
    #allocation2 [shape = 'u8[65536]{0}', space=vmem, size = 0x10000, scoped, tag = 'output window, operand 0']
    #allocation3 [shape = 's32[2]{0}', space=sflag, size = 0x8, scoped, tag = 'scoped memory for mtsnet_forward.3']
    %8 = vsyncpa [#allocation3], 0
    %s9 = scalar_lea.sflag [#allocation3], 1
    %10 = vsyncpa %s9, 0
    loop: start=0, step=1, limit=4
    $region2: #{mtsnet_forward.3} parent=1 // loop_pre_header
      _
    $region3: #{mtsnet_forward.3} parent=1 // loop_header
      %s12 = sphi 0, %s16
      %p13 = scmp.ge.s32.totalorder %s12, 4
      %s19 = sphi 0, %s31
      %s20 = sphi 0, %s27
      %s21 = sphi 0, %s19
      %s22 = sphi 0, %s20
      %s23 = sphi 0, %s21
      %s24 = sphi 0, %s22
      %s34 = sphi 0, %s36
      %s37 = sphi 0, %s34
      %s38 = sphi 0, %s37
      %s54 = sphi 0, %s38
      %s60 = sphi 0, %s62
      %s63 = sphi 0, %s60
      %s64 = sphi 0, %s63
      %s80 = sphi 0, %s64
      %s84 = sphi 0, %s84
      %s86 = sphi 0, %s84
      %s87 = sphi 0, %s86
      %s101 = sphi 0, %s87
      %s109 = sphi 0, %s111
      %s112 = sphi 0, %s109
      %s113 = sphi 0, %s112
      %s129 = sphi 0, %s113
    $region4: #{mtsnet_forward.3} parent=1 // loop_header_branch
      %15 = sbr.rel (%p13) target = $region8
    $region5: #{mtsnet_forward.3} parent=1 // loop_body
      %s17 = ssub.s32 %s12, 1
      %s18 = ssub.s32 %s12, 2
      %s25 = sadd.s32 1, %s20
      %p26 = scmp.ge.s32.totalorder %s25, 1
      %s27 = scalar_select %p26, 0, %s25
      %s28 = sadd.s32 1, %s19
      %s29 = scalar_select %p26, %s28, %s19
      %p30 = scmp.ge.s32.totalorder %s29, 2
      %s31 = scalar_select %p30, 0, %s29
      %s32 = ssub.s32 %s19, %s31
      %p33 = scmp.eq.s32.totalorder %s32, 0
      %s35 = sadd.s32 %s34, 1
      %s36 = scalar_select %p33, %s34, %s35
      %p39 = pneg %p33
      %p40 = scmp.eq.s32.totalorder %s12, 1
      %p41 = por %p39, %p40
      %p42 = scmp.ne.s32.totalorder %s34, %s37
      %p43 = scmp.eq.s32.totalorder %s12, 0
      %p44 = por %p42, %p43
      %p45 = scmp.ne.s32.totalorder %s34, %s37
      %p46 = scmp.eq.s32.totalorder %s17, 1
      %p47 = por %p45, %p46
      %p48 = scmp.ne.s32.totalorder %s37, %s38
      %p49 = scmp.eq.s32.totalorder %s17, 0
      %p50 = por %p48, %p49
      %p51 = scmp.ne.s32.totalorder %s37, %s38
      %p52 = scmp.eq.s32.totalorder %s18, 1
      %p53 = por %p51, %p52
      %p55 = scmp.ne.s32.totalorder %s38, %s54
      %p56 = scmp.eq.s32.totalorder %s18, 0
      %p57 = por %p55, %p56
      %s58 = ssub.s32 %s20, %s27
      %p59 = scmp.eq.s32.totalorder %s58, 0
      %s61 = sadd.s32 %s60, 1
      %s62 = scalar_select %p59, %s60, %s61
      %p65 = pneg %p59
      %p66 = scmp.eq.s32.totalorder %s12, 1
      %p67 = por %p65, %p66
      %p68 = scmp.ne.s32.totalorder %s60, %s63
      %p69 = scmp.eq.s32.totalorder %s12, 0
      %p70 = por %p68, %p69
      %p71 = scmp.ne.s32.totalorder %s60, %s63
      %p72 = scmp.eq.s32.totalorder %s17, 1
      %p73 = por %p71, %p72
      %p74 = scmp.ne.s32.totalorder %s63, %s64
      %p75 = scmp.eq.s32.totalorder %s17, 0
      %p76 = por %p74, %p75
      %p77 = scmp.ne.s32.totalorder %s63, %s64
      %p78 = scmp.eq.s32.totalorder %s18, 1
      %p79 = por %p77, %p78
      %p81 = scmp.ne.s32.totalorder %s64, %s80
      %p82 = scmp.eq.s32.totalorder %s18, 0
      %p83 = por %p81, %p82
      %s85 = sadd.s32 %s84, 1
      %p88 = scmp.eq.s32.totalorder %s12, 1
      %p89 = scmp.ne.s32.totalorder %s84, %s86
      %p90 = scmp.eq.s32.totalorder %s12, 0
      %p91 = por %p89, %p90
      %p92 = scmp.ne.s32.totalorder %s84, %s86
      %p93 = scmp.eq.s32.totalorder %s17, 1
      %p94 = por %p92, %p93
      %p95 = scmp.ne.s32.totalorder %s86, %s87
      %p96 = scmp.eq.s32.totalorder %s17, 0
      %p97 = por %p95, %p96
      %p98 = scmp.ne.s32.totalorder %s86, %s87
      %p99 = scmp.eq.s32.totalorder %s18, 1
      %p100 = por %p98, %p99
      %p102 = scmp.ne.s32.totalorder %s87, %s101
      %p103 = scmp.eq.s32.totalorder %s18, 0
      %p104 = por %p102, %p103
      %s105 = ssub.s32 %s19, %s31
      %s106 = ssub.s32 %s20, %s27
      %s107 = sor.u32 %s105, %s106
      %p108 = scmp.eq.s32.totalorder %s107, 0
      %s110 = sadd.s32 %s109, 1
      %s111 = scalar_select %p108, %s109, %s110
      %p114 = pneg %p108
      %p115 = scmp.eq.s32.totalorder %s12, 1
      %p116 = por %p114, %p115
      %p117 = scmp.ne.s32.totalorder %s109, %s112
      %p118 = scmp.eq.s32.totalorder %s12, 0
      %p119 = por %p117, %p118
      %p120 = scmp.ne.s32.totalorder %s109, %s112
      %p121 = scmp.eq.s32.totalorder %s17, 1
      %p122 = por %p120, %p121
      %p123 = scmp.ne.s32.totalorder %s112, %s113
      %p124 = scmp.eq.s32.totalorder %s17, 0
      %p125 = por %p123, %p124
      %p126 = scmp.ne.s32.totalorder %s112, %s113
      %p127 = scmp.eq.s32.totalorder %s18, 1
      %p128 = por %p126, %p127
      %p130 = scmp.ne.s32.totalorder %s113, %s129
      %p131 = scmp.eq.s32.totalorder %s18, 0
      %p132 = por %p130, %p131
      %p133 = scmp.le.s32.totalorder 1, %s12
      %p134 = scmp.lt.s32.totalorder %s12, 3
      %p135 = pnand %p133, %p134
      %p136 = pneg %p135
      // Predicated region
      $region9: #{mtsnet_forward.3} parent=5 // pred_check
        _
      $region10: #{mtsnet_forward.3} parent=5 // pred_check_branch
        %138 = sbr.rel (%p135) target = $region12
      $region11: #{mtsnet_forward.3} parent=5 // pred_region
        %s139 = ssub.s32 %s12, 1
        // Predicated region
        $region13: #{mtsnet_forward.3} parent=11 // pred_check
          %p140 = pneg %p76
        $region14: #{mtsnet_forward.3} parent=11 // pred_check_branch
          %142 = sbr.rel (%p140) target = $region16
        $region15: #{mtsnet_forward.3} parent=11 // pred_region
          %s143 = smul.u32 8, %s22
          %p144 = scmp.lt.s32.totalorder %s143, 7
          %s145 = scalar_select %p144, %s143, 7
          %s146 = smul.addr %s145, 8
          %s147 = scalar_lea.vmem %s1, %s146
          %s148 = smul.u32 8, %s22
        $region16: #{mtsnet_forward.3} parent=11 // pred_fallthru
          _
        // Predicated region
        $region17: #{mtsnet_forward.3} parent=11 // pred_check
          %p149 = pneg %p97
        $region18: #{mtsnet_forward.3} parent=11 // pred_check_branch
          %151 = sbr.rel (%p149) target = $region20
        $region19: #{mtsnet_forward.3} parent=11 // pred_region
          _
        $region20: #{mtsnet_forward.3} parent=11 // pred_fallthru
          _
      $region12: #{mtsnet_forward.3} parent=5 // pred_fallthru
        _
      %p152 = scmp.lt.s32.totalorder %s12, 2
      // Predicated region
      $region21: #{mtsnet_forward.3} parent=5 // pred_check
        %p153 = pneg %p152
      $region22: #{mtsnet_forward.3} parent=5 // pred_check_branch
        %155 = sbr.rel (%p153) target = $region24
      $region23: #{mtsnet_forward.3} parent=5 // pred_region
        // Predicated region
        $region25: #{mtsnet_forward.3} parent=23 // pred_check
          %p156 = pneg %p44
        $region26: #{mtsnet_forward.3} parent=23 // pred_check_branch
          %158 = sbr.rel (%p156) target = $region28
        $region27: #{mtsnet_forward.3} parent=23 // pred_region
          %p159 = scmp.lt.s32.totalorder %s19, 1
          %s160 = scalar_select %p159, %s19, 1
          %s161 = smul.addr %s160, 2
          %s162 = smul.addr %s161, 8
          %s163 = scalar_lea.vmem %s0, %s162
        $region28: #{mtsnet_forward.3} parent=23 // pred_fallthru
          _
      $region24: #{mtsnet_forward.3} parent=5 // pred_fallthru
        _
      %p164 = scmp.le.s32.totalorder 1, %s12
      %p165 = scmp.lt.s32.totalorder %s12, 3
      %p166 = pnand %p164, %p165
      %p167 = pneg %p166
      // Predicated region
      $region29: #{mtsnet_forward.3} parent=5 // pred_check
        _
      $region30: #{mtsnet_forward.3} parent=5 // pred_check_branch
        %169 = sbr.rel (%p166) target = $region32
      $region31: #{mtsnet_forward.3} parent=5 // pred_region
        %s170 = ssub.s32 %s12, 1
        %p171 = scmp.lt.s32.totalorder %s21, 1
        %s172 = scalar_select %p171, %s21, 1
        %s173 = smul.addr %s172, 2
        %s174 = smul.addr %s173, 8
        %s175 = scalar_lea.vmem %s0, %s174
        %p176 = pneg %p50
        %p177 = pneg %p47
        %s178 = smul.u32 8, %s22
        %p179 = scmp.lt.s32.totalorder %s178, 7
        %s180 = scalar_select %p179, %s178, 7
        %s181 = smul.addr %s180, 8
        %s182 = scalar_lea.vmem %s1, %s181
        %p183 = pneg %p76
        %p184 = pneg %p73
        %p185 = pneg %p97
        %p186 = pneg %p94
        %p187 = pneg %p125
        %p188 = pneg %p122
        %s189 = sand.u32 %s112, 1
        %s190 = scalar_lea.sflag [#allocation3], %s189
        %s191 = sand.u32 %s112, 1
        %s192 = smul.addr %s191, 64
        %s193 = scalar_lea.vmem [#allocation2], %s192
        %p194 = scmp.lt.s32.totalorder %s21, 1
        %s195 = scalar_select %p194, %s21, 1
        %s196 = smul.addr %s195, 2
        %s197 = smul.addr %s196, 8
        %s198 = scalar_lea.vmem %s0, %s197
        %s199 = smul.u32 8, %s22
        %p200 = scmp.lt.s32.totalorder %s199, 7
        %s201 = scalar_select %p200, %s199, 7
        %s202 = smul.addr %s201, 8
        %s203 = scalar_lea.vmem %s1, %s202
        %s204 = smul.u32 8, %s22
        %s205 = smul.u32 8, %s22
        %v206 = vld [vmem:[%s198] sm:$0xff]
        %v207 = vld [vmem:[%s198 + $0x8] sm:$0xff]
        %v208 = vld [vmem:[%s203] sm:$0xff]
        %v209 = vld [vmem:[%s203 + $0x8] sm:$0xff]
        %v210 = vld [vmem:[%s203 + $0x10] sm:$0xff]
        %v211 = vld [vmem:[%s203 + $0x18] sm:$0xff]
        %v212 = vld [vmem:[%s203 + $0x20] sm:$0xff]
        %v213 = vld [vmem:[%s203 + $0x28] sm:$0xff]
        %v214 = vld [vmem:[%s203 + $0x30] sm:$0xff]
        %v215 = vld [vmem:[%s203 + $0x38] sm:$0xff]
        %vm216 = vcmask 130048
        %v218 = vsel %vm216, %v208, 0
        %v221 = vsel %vm216, %v209, 0
        %v224 = vsel %vm216, %v210, 0
        %v227 = vsel %vm216, %v211, 0
        %v230 = vsel %vm216, %v212, 0
        %v233 = vsel %vm216, %v213, 0
        %v236 = vsel %vm216, %v214, 0
        %v239 = vsel %vm216, %v215, 0
        %241 = vmatprep.subr.mxu0 0.0
        %242 = vmatpush1.msra.mxu0 %v206
        %243 = vmatprep.subr.mxu0 0.0
        %244 = vmatpush1.msra.mxu0 %v207
        %245 = vmatprep.subr.mxu0 0.0
        %246 = vmatpush1.msra.mxu0 0.0
        %247 = vmatprep.subr.mxu0 0.0
        %248 = vmatpush1.msra.mxu0 0.0
        %249 = vmatprep.subr.mxu0 0.0
        %250 = vmatpush1.msra.mxu0 0.0
        %251 = vmatprep.subr.mxu0 0.0
        %252 = vmatpush1.msra.mxu0 0.0
        %253 = vmatprep.subr.mxu0 0.0
        %254 = vmatpush1.msra.mxu0 0.0
        %255 = vmatprep.subr.mxu0 0.0
        %256 = vmatpush1.msra.mxu0 0.0
        %257 = vmatprep.subr.mxu0 0.0
        %258 = vmatpush1.msra.mxu0 0.0
        %259 = vmatprep.subr.mxu0 0.0
        %260 = vmatpush1.msra.mxu0 0.0
        %261 = vmatprep.subr.mxu0 0.0
        %262 = vmatpush1.msra.mxu0 0.0
        %263 = vmatprep.subr.mxu0 0.0
        %264 = vmatpush1.msra.mxu0 0.0
        %265 = vmatprep.subr.mxu0 0.0
        %266 = vmatpush1.msra.mxu0 0.0
        %267 = vmatprep.subr.mxu0 0.0
        %268 = vmatpush1.msra.mxu0 0.0
        %269 = vmatprep.subr.mxu0 0.0
        %270 = vmatpush1.msra.mxu0 0.0
        %271 = vmatprep.subr.mxu0 0.0
        %272 = vmatpush1.msra.mxu0 0.0
        %273 = vmatprep.subr.mxu0 0.0
        %274 = vmatpush1.msra.mxu0 0.0
        %275 = vmatprep.subr.mxu0 0.0
        %276 = vmatpush1.msra.mxu0 0.0
        %277 = vmatprep.subr.mxu0 0.0
        %278 = vmatpush1.msra.mxu0 0.0
        %279 = vmatprep.subr.mxu0 0.0
        %280 = vmatpush1.msra.mxu0 0.0
        %281 = vmatprep.subr.mxu0 0.0
        %282 = vmatpush1.msra.mxu0 0.0
        %283 = vmatprep.subr.mxu0 0.0
        %284 = vmatpush1.msra.mxu0 0.0
        %285 = vmatprep.subr.mxu0 0.0
        %286 = vmatpush1.msra.mxu0 0.0
        %287 = vmatprep.subr.mxu0 0.0
        %288 = vmatpush1.msra.mxu0 0.0
        %289 = vmatprep.subr.mxu0 0.0
        %290 = vmatpush1.msra.mxu0 0.0
        %291 = vmatprep.subr.mxu0 0.0
        %292 = vmatpush1.msra.mxu0 0.0
        %293 = vmatprep.subr.mxu0 0.0
        %294 = vmatpush1.msra.mxu0 0.0
        %295 = vmatprep.subr.mxu0 0.0
        %296 = vmatpush1.msra.mxu0 0.0
        %297 = vmatprep.subr.mxu0 0.0
        %298 = vmatpush1.msra.mxu0 0.0
        %299 = vmatprep.subr.mxu0 0.0
        %300 = vmatpush1.msra.mxu0 0.0
        %301 = vmatprep.subr.mxu0 0.0
        %302 = vmatpush1.msra.mxu0 0.0
        %303 = vmatprep.subr.mxu0 0.0
        %304 = vmatpush1.msra.mxu0 0.0
        %305 = vmatprep.mubr.f32.mxu0 0.0
        %306 = vmatmul.mubr.f32.gmra.mrb[0].mxu0 %v218
        %v307 = vpop.f32.mrb[0].mxu0
        %v308 = vadd.f32 0.0, %v307
        %v309 = vpop.f32.mrb[0].mxu0
        %310 = vmatprep.mubr.f32.mxu0 0.0
        %311 = vmatmul.mubr.f32.gmra.mrb[0].mxu0 %v221
        %v312 = vpop.f32.mrb[0].mxu0
        %v313 = vadd.f32 0.0, %v312
        %v314 = vpop.f32.mrb[0].mxu0
        %315 = vmatprep.mubr.f32.mxu0 0.0
        %316 = vmatmul.mubr.f32.gmra.mrb[0].mxu0 %v224
        %v317 = vpop.f32.mrb[0].mxu0
        %v318 = vadd.f32 0.0, %v317
        %v319 = vpop.f32.mrb[0].mxu0
        %320 = vmatprep.mubr.f32.mxu0 0.0
        %321 = vmatmul.mubr.f32.gmra.mrb[0].mxu0 %v227
        %v322 = vpop.f32.mrb[0].mxu0
        %v323 = vadd.f32 0.0, %v322
        %v324 = vpop.f32.mrb[0].mxu0
        %325 = vmatprep.mubr.f32.mxu0 0.0
        %326 = vmatmul.mubr.f32.gmra.mrb[0].mxu0 %v230
        %v327 = vpop.f32.mrb[0].mxu0
        %v328 = vadd.f32 0.0, %v327
        %v329 = vpop.f32.mrb[0].mxu0
        %330 = vmatprep.mubr.f32.mxu0 0.0
        %331 = vmatmul.mubr.f32.gmra.mrb[0].mxu0 %v233
        %v332 = vpop.f32.mrb[0].mxu0
        %v333 = vadd.f32 0.0, %v332
        %v334 = vpop.f32.mrb[0].mxu0
        %335 = vmatprep.mubr.f32.mxu0 0.0
        %336 = vmatmul.mubr.f32.gmra.mrb[0].mxu0 %v236
        %v337 = vpop.f32.mrb[0].mxu0
        %v338 = vadd.f32 0.0, %v337
        %v339 = vpop.f32.mrb[0].mxu0
        %340 = vmatprep.mubr.f32.mxu0 0.0
        %341 = vmatmul.mubr.f32.gmra.mrb[0].mxu0 %v239
        %v342 = vpop.f32.mrb[0].mxu0
        %v343 = vadd.f32 0.0, %v342
        %v344 = vpop.f32.mrb[0].mxu0
        %345 = vdwg.mxu0
        %v346 = vld [vmem:[%s2] sm:$0xff]
        %v347 = vld [vmem:[%s2 + $0x8] sm:$0xff]
        %v349 = vsel %vm216, %v308, 0
        %v352 = vsel %vm216, %v313, 0
        %v355 = vsel %vm216, %v318, 0
        %v358 = vsel %vm216, %v323, 0
        %v361 = vsel %vm216, %v328, 0
        %v364 = vsel %vm216, %v333, 0
        %v367 = vsel %vm216, %v338, 0
        %v370 = vsel %vm216, %v343, 0
        %372 = vmatprep.subr.mxu0 0.0
        %373 = vmatpush1.msra.mxu0 %v346
        %374 = vmatprep.subr.mxu0 0.0
        %375 = vmatpush1.msra.mxu0 %v347
        %376 = vmatprep.subr.mxu0 0.0
        %377 = vmatpush1.msra.mxu0 0.0
        %378 = vmatprep.subr.mxu0 0.0
        %379 = vmatpush1.msra.mxu0 0.0
        %380 = vmatprep.subr.mxu0 0.0
        %381 = vmatpush1.msra.mxu0 0.0
        %382 = vmatprep.subr.mxu0 0.0
        %383 = vmatpush1.msra.mxu0 0.0
        %384 = vmatprep.subr.mxu0 0.0
        %385 = vmatpush1.msra.mxu0 0.0
        %386 = vmatprep.subr.mxu0 0.0
        %387 = vmatpush1.msra.mxu0 0.0
        %388 = vmatprep.subr.mxu0 0.0
        %389 = vmatpush1.msra.mxu0 0.0
        %390 = vmatprep.subr.mxu0 0.0
        %391 = vmatpush1.msra.mxu0 0.0
        %392 = vmatprep.subr.mxu0 0.0
        %393 = vmatpush1.msra.mxu0 0.0
        %394 = vmatprep.subr.mxu0 0.0
        %395 = vmatpush1.msra.mxu0 0.0
        %396 = vmatprep.subr.mxu0 0.0
        %397 = vmatpush1.msra.mxu0 0.0
        %398 = vmatprep.subr.mxu0 0.0
        %399 = vmatpush1.msra.mxu0 0.0
        %400 = vmatprep.subr.mxu0 0.0
        %401 = vmatpush1.msra.mxu0 0.0
        %402 = vmatprep.subr.mxu0 0.0
        %403 = vmatpush1.msra.mxu0 0.0
        %404 = vmatprep.subr.mxu0 0.0
        %405 = vmatpush1.msra.mxu0 0.0
        %406 = vmatprep.subr.mxu0 0.0
        %407 = vmatpush1.msra.mxu0 0.0
        %408 = vmatprep.subr.mxu0 0.0
        %409 = vmatpush1.msra.mxu0 0.0
        %410 = vmatprep.subr.mxu0 0.0
        %411 = vmatpush1.msra.mxu0 0.0
        %412 = vmatprep.subr.mxu0 0.0
        %413 = vmatpush1.msra.mxu0 0.0
        %414 = vmatprep.subr.mxu0 0.0
        %415 = vmatpush1.msra.mxu0 0.0
        %416 = vmatprep.subr.mxu0 0.0
        %417 = vmatpush1.msra.mxu0 0.0
        %418 = vmatprep.subr.mxu0 0.0
        %419 = vmatpush1.msra.mxu0 0.0
        %420 = vmatprep.subr.mxu0 0.0
        %421 = vmatpush1.msra.mxu0 0.0
        %422 = vmatprep.subr.mxu0 0.0
        %423 = vmatpush1.msra.mxu0 0.0
        %424 = vmatprep.subr.mxu0 0.0
        %425 = vmatpush1.msra.mxu0 0.0
        %426 = vmatprep.subr.mxu0 0.0
        %427 = vmatpush1.msra.mxu0 0.0
        %428 = vmatprep.subr.mxu0 0.0
        %429 = vmatpush1.msra.mxu0 0.0
        %430 = vmatprep.subr.mxu0 0.0
        %431 = vmatpush1.msra.mxu0 0.0
        %432 = vmatprep.subr.mxu0 0.0
        %433 = vmatpush1.msra.mxu0 0.0
        %434 = vmatprep.subr.mxu0 0.0
        %435 = vmatpush1.msra.mxu0 0.0
        %436 = vmatprep.mubr.f32.mxu0 0.0
        %437 = vmatmul.mubr.f32.gmra.mrb[0].mxu0 %v349
        %v438 = vpop.f32.mrb[0].mxu0
        %v439 = vadd.f32 0.0, %v438
        %v440 = vpop.f32.mrb[0].mxu0
        %441 = vmatprep.mubr.f32.mxu0 0.0
        %442 = vmatmul.mubr.f32.gmra.mrb[0].mxu0 %v352
        %v443 = vpop.f32.mrb[0].mxu0
        %v444 = vadd.f32 0.0, %v443
        %v445 = vpop.f32.mrb[0].mxu0
        %446 = vmatprep.mubr.f32.mxu0 0.0
        %447 = vmatmul.mubr.f32.gmra.mrb[0].mxu0 %v355
        %v448 = vpop.f32.mrb[0].mxu0
        %v449 = vadd.f32 0.0, %v448
        %v450 = vpop.f32.mrb[0].mxu0
        %451 = vmatprep.mubr.f32.mxu0 0.0
        %452 = vmatmul.mubr.f32.gmra.mrb[0].mxu0 %v358
        %v453 = vpop.f32.mrb[0].mxu0
        %v454 = vadd.f32 0.0, %v453
        %v455 = vpop.f32.mrb[0].mxu0
        %456 = vmatprep.mubr.f32.mxu0 0.0
        %457 = vmatmul.mubr.f32.gmra.mrb[0].mxu0 %v361
        %v458 = vpop.f32.mrb[0].mxu0
        %v459 = vadd.f32 0.0, %v458
        %v460 = vpop.f32.mrb[0].mxu0
        %461 = vmatprep.mubr.f32.mxu0 0.0
        %462 = vmatmul.mubr.f32.gmra.mrb[0].mxu0 %v364
        %v463 = vpop.f32.mrb[0].mxu0
        %v464 = vadd.f32 0.0, %v463
        %v465 = vpop.f32.mrb[0].mxu0
        %466 = vmatprep.mubr.f32.mxu0 0.0
        %467 = vmatmul.mubr.f32.gmra.mrb[0].mxu0 %v367
        %v468 = vpop.f32.mrb[0].mxu0
        %v469 = vadd.f32 0.0, %v468
        %v470 = vpop.f32.mrb[0].mxu0
        %471 = vmatprep.mubr.f32.mxu0 0.0
        %472 = vmatmul.mubr.f32.gmra.mrb[0].mxu0 %v370
        %v473 = vpop.f32.mrb[0].mxu0
        %v474 = vadd.f32 0.0, %v473
        %v475 = vpop.f32.mrb[0].mxu0
        %476 = vdwg.mxu0
        %v477 = vxor.u32 %v439, 2147483648
        %v478 = vxor.u32 %v444, 2147483648
        %v479 = vxor.u32 %v449, 2147483648
        %v480 = vxor.u32 %v454, 2147483648
        %v481 = vxor.u32 %v459, 2147483648
        %v482 = vxor.u32 %v464, 2147483648
        %v483 = vxor.u32 %v469, 2147483648
        %v484 = vxor.u32 %v474, 2147483648
        %v485 = vmul.f32 %v477, 1.442695
        %v486 = vpow.pop %v485
        %v487 = vmul.f32 %v478, 1.442695
        %v488 = vpow.pop %v487
        %v489 = vmul.f32 %v479, 1.442695
        %v490 = vpow.pop %v489
        %v491 = vmul.f32 %v480, 1.442695
        %v492 = vpow.pop %v491
        %v493 = vmul.f32 %v481, 1.442695
        %v494 = vpow.pop %v493
        %v495 = vmul.f32 %v482, 1.442695
        %v496 = vpow.pop %v495
        %v497 = vmul.f32 %v483, 1.442695
        %v498 = vpow.pop %v497
        %v499 = vmul.f32 %v484, 1.442695
        %v500 = vpow.pop %v499
        %v501 = vadd.f32 %v486, 1.0
        %v502 = vadd.f32 %v488, 1.0
        %v503 = vadd.f32 %v490, 1.0
        %v504 = vadd.f32 %v492, 1.0
        %v505 = vadd.f32 %v494, 1.0
        %v506 = vadd.f32 %v496, 1.0
        %v507 = vadd.f32 %v498, 1.0
        %v508 = vadd.f32 %v500, 1.0
        %v509 = vrcp.pop %v501
        %v510 = vmul.f32 1.0, %v509
        %v511 = vrcp.pop %v502
        %v512 = vmul.f32 1.0, %v511
        %v513 = vrcp.pop %v503
        %v514 = vmul.f32 1.0, %v513
        %v515 = vrcp.pop %v504
        %v516 = vmul.f32 1.0, %v515
        %v517 = vrcp.pop %v505
        %v518 = vmul.f32 1.0, %v517
        %v519 = vrcp.pop %v506
        %v520 = vmul.f32 1.0, %v519
        %v521 = vrcp.pop %v507
        %v522 = vmul.f32 1.0, %v521
        %v523 = vrcp.pop %v508
        %v524 = vmul.f32 1.0, %v523
        %vm525 = vcmask 523264
        %526 = vst.msk [vmem:[%s193] sm:$0xff] %vm525, %v510
        %527 = vst.msk [vmem:[%s193 + $0x8] sm:$0xff] %vm525, %v512
        %528 = vst.msk [vmem:[%s193 + $0x10] sm:$0xff] %vm525, %v514
        %529 = vst.msk [vmem:[%s193 + $0x18] sm:$0xff] %vm525, %v516
        %530 = vst.msk [vmem:[%s193 + $0x20] sm:$0xff] %vm525, %v518
        %531 = vst.msk [vmem:[%s193 + $0x28] sm:$0xff] %vm525, %v520
        %532 = vst.msk [vmem:[%s193 + $0x30] sm:$0xff] %vm525, %v522
        %533 = vst.msk [vmem:[%s193 + $0x38] sm:$0xff] %vm525, %v524
        %s534 = sand.u32 %s112, 1
        %s535 = scalar_lea.sflag [#allocation3], %s534
        %s536 = sand.u32 %s112, 1
        %s537 = smul.addr %s536, 64
        %s538 = scalar_lea.vmem [#allocation2], %s537
        // Predicated region
        $region33: #{mtsnet_forward.3} parent=31 // pred_check
          %p539 = pneg %p122
        $region34: #{mtsnet_forward.3} parent=31 // pred_check_branch
          %541 = sbr.rel (%p539) target = $region36
        $region35: #{mtsnet_forward.3} parent=31 // pred_region
          %s542 = smul.u32 8, %s22
          %s544 = ssub.s32 1024, 1024
          %545 = vsyncadd %s535, %s544
          %s546 = smul.addr %s21, 8
          %s547 = sadd.s32 %s542, %s546
          %s548 = smul.addr %s547, 128
          %s549 = scalar_lea.hbm %s3, %s548
          %s550 = sshll.u32 %s538, 4
          %s551 = int_to_ptr.vmem [resolvable:$true] %s550
          %556 = dma.vmem_to_hbm [thread:$0]  %s551, 1024, %s549, %s535, 128, 128, 8
        $region36: #{mtsnet_forward.3} parent=31 // pred_fallthru
          _
      $region32: #{mtsnet_forward.3} parent=5 // pred_fallthru
        _
      %p557 = scmp.le.s32.totalorder 2, %s12
      // Predicated region
      $region37: #{mtsnet_forward.3} parent=5 // pred_check
        %p558 = pneg %p557
      $region38: #{mtsnet_forward.3} parent=5 // pred_check_branch
        %560 = sbr.rel (%p558) target = $region40
      $region39: #{mtsnet_forward.3} parent=5 // pred_region
        %s561 = ssub.s32 %s12, 2
        // Predicated region
        $region41: #{mtsnet_forward.3} parent=39 // pred_check
          %p562 = pneg %p128
        $region42: #{mtsnet_forward.3} parent=39 // pred_check_branch
          %564 = sbr.rel (%p562) target = $region44
        $region43: #{mtsnet_forward.3} parent=39 // pred_region
          %s565 = sand.u32 %s113, 1
          %s566 = scalar_lea.sflag [#allocation3], %s565
          %s567 = sand.u32 %s113, 1
          %s568 = smul.addr %s567, 64
          %s569 = scalar_lea.vmem [#allocation2], %s568
          %570 = dma.done %s566, 1024
        $region44: #{mtsnet_forward.3} parent=39 // pred_fallthru
          _
      $region40: #{mtsnet_forward.3} parent=5 // pred_fallthru
        _
    $region6: #{mtsnet_forward.3} parent=1 // loop_footer
      %s16 = sadd.s32 1, %s12
    $region7: #{mtsnet_forward.3} parent=1 // loop_footer_branch
      %11 = sbr.rel target = $region3
    $region8: #{mtsnet_forward.3} parent=1 // loop_exit
      _
    %571 = vsyncpa [#allocation3], 1
    %s572 = scalar_lea.sflag [#allocation3], 1
    %573 = vsyncpa %s572, 1

// kernel: mtsnet_forward.2
$region0: #{mtsnet_forward.2}
  #allocation0 [shape = 'u32[]', space=smem, size = 0x4, offset = 0x4, fixed_abs, tag = 'smem constant byte address 0x4 - core index']
  #allocation1 [shape = 'u32[144,128]{1,0:T(1,128)}', space=vmem, size = 0x12000, scoped, tag = 'internal scratch']
  %s0 = inlined_call_operand.vmem [shape: bf16[2,256,48], index: 0, kind: input, shape index: {}]
  %s1 = inlined_call_operand.vmem [shape: bf16[48,512], index: 1, kind: input, shape index: {}]
  %s2 = inlined_call_operand.vmem [shape: f32[1,512], index: 2, kind: input, shape index: {}]
  %s3 = inlined_call_operand.vmem [shape: bf16[512,256], index: 3, kind: input, shape index: {}]
  %s4 = inlined_call_operand.vmem [shape: f32[1,256], index: 4, kind: input, shape index: {}]
  %s5 = inlined_call_operand.vmem [shape: f32[1,256], index: 5, kind: input, shape index: {}]
  %s6 = inlined_call_operand.vmem [shape: f32[2,256,1], index: 6, kind: output, shape index: {}]
  %s7 = sld [smem:[#allocation0]]
  $region57: #{mtsnet_forward.2} parent=0
    _
  %s9 = ssub.s32 1, %s7
  %s10 = scalar_select 0, %s9, %s7
  loop: start=0, step=1, limit=4
  $region2: #{mtsnet_forward.2} parent=0 // loop_pre_header
    _
  $region3: #{mtsnet_forward.2} parent=0 // loop_header
    %s12 = sphi 0, %s16
    %p13 = scmp.ge.s32.totalorder %s12, 4
    %s19 = sphi 0, %s31
    %s20 = sphi 0, %s27
    %s21 = sphi 0, %s19
    %s22 = sphi 0, %s20
    %s23 = sphi 0, %s21
    %s24 = sphi 0, %s22
    %s36 = sphi 0, %s38
    %s39 = sphi 0, %s36
    %s40 = sphi 0, %s39
    %s56 = sphi 0, %s40
    %s60 = sphi 0, %s60
    %s62 = sphi 0, %s60
    %s63 = sphi 0, %s62
    %s77 = sphi 0, %s63
    %s81 = sphi 0, %s81
    %s83 = sphi 0, %s81
    %s84 = sphi 0, %s83
    %s98 = sphi 0, %s84
    %s102 = sphi 0, %s102
    %s104 = sphi 0, %s102
    %s105 = sphi 0, %s104
    %s119 = sphi 0, %s105
    %s123 = sphi 0, %s123
    %s125 = sphi 0, %s123
    %s126 = sphi 0, %s125
    %s140 = sphi 0, %s126
    %s144 = sphi 0, %s144
    %s146 = sphi 0, %s144
    %s147 = sphi 0, %s146
    %s161 = sphi 0, %s147
    %s169 = sphi 0, %s171
    %s172 = sphi 0, %s169
    %s173 = sphi 0, %s172
    %s189 = sphi 0, %s173
  $region4: #{mtsnet_forward.2} parent=0 // loop_header_branch
    %15 = sbr.rel (%p13) target = $region8
  $region5: #{mtsnet_forward.2} parent=0 // loop_body
    %s17 = ssub.s32 %s12, 1
    %s18 = ssub.s32 %s12, 2
    %s25 = sadd.s32 1, %s20
    %p26 = scmp.ge.s32.totalorder %s25, 1
    %s27 = scalar_select %p26, 0, %s25
    %s28 = sadd.s32 1, %s19
    %s29 = scalar_select %p26, %s28, %s19
    %p30 = scmp.ge.s32.totalorder %s29, 2
    %s31 = scalar_select %p30, 0, %s29
    %s32 = ssub.s32 %s19, %s31
    %s33 = ssub.s32 %s20, %s27
    %s34 = sor.u32 %s32, %s33
    %p35 = scmp.eq.s32.totalorder %s34, 0
    %s37 = sadd.s32 %s36, 1
    %s38 = scalar_select %p35, %s36, %s37
    %p41 = pneg %p35
    %p42 = scmp.eq.s32.totalorder %s12, 1
    %p43 = por %p41, %p42
    %p44 = scmp.ne.s32.totalorder %s36, %s39
    %p45 = scmp.eq.s32.totalorder %s12, 0
    %p46 = por %p44, %p45
    %p47 = scmp.ne.s32.totalorder %s36, %s39
    %p48 = scmp.eq.s32.totalorder %s17, 1
    %p49 = por %p47, %p48
    %p50 = scmp.ne.s32.totalorder %s39, %s40
    %p51 = scmp.eq.s32.totalorder %s17, 0
    %p52 = por %p50, %p51
    %p53 = scmp.ne.s32.totalorder %s39, %s40
    %p54 = scmp.eq.s32.totalorder %s18, 1
    %p55 = por %p53, %p54
    %p57 = scmp.ne.s32.totalorder %s40, %s56
    %p58 = scmp.eq.s32.totalorder %s18, 0
    %p59 = por %p57, %p58
    %s61 = sadd.s32 %s60, 1
    %p64 = scmp.eq.s32.totalorder %s12, 1
    %p65 = scmp.ne.s32.totalorder %s60, %s62
    %p66 = scmp.eq.s32.totalorder %s12, 0
    %p67 = por %p65, %p66
    %p68 = scmp.ne.s32.totalorder %s60, %s62
    %p69 = scmp.eq.s32.totalorder %s17, 1
    %p70 = por %p68, %p69
    %p71 = scmp.ne.s32.totalorder %s62, %s63
    %p72 = scmp.eq.s32.totalorder %s17, 0
    %p73 = por %p71, %p72
    %p74 = scmp.ne.s32.totalorder %s62, %s63
    %p75 = scmp.eq.s32.totalorder %s18, 1
    %p76 = por %p74, %p75
    %p78 = scmp.ne.s32.totalorder %s63, %s77
    %p79 = scmp.eq.s32.totalorder %s18, 0
    %p80 = por %p78, %p79
    %s82 = sadd.s32 %s81, 1
    %p85 = scmp.eq.s32.totalorder %s12, 1
    %p86 = scmp.ne.s32.totalorder %s81, %s83
    %p87 = scmp.eq.s32.totalorder %s12, 0
    %p88 = por %p86, %p87
    %p89 = scmp.ne.s32.totalorder %s81, %s83
    %p90 = scmp.eq.s32.totalorder %s17, 1
    %p91 = por %p89, %p90
    %p92 = scmp.ne.s32.totalorder %s83, %s84
    %p93 = scmp.eq.s32.totalorder %s17, 0
    %p94 = por %p92, %p93
    %p95 = scmp.ne.s32.totalorder %s83, %s84
    %p96 = scmp.eq.s32.totalorder %s18, 1
    %p97 = por %p95, %p96
    %p99 = scmp.ne.s32.totalorder %s84, %s98
    %p100 = scmp.eq.s32.totalorder %s18, 0
    %p101 = por %p99, %p100
    %s103 = sadd.s32 %s102, 1
    %p106 = scmp.eq.s32.totalorder %s12, 1
    %p107 = scmp.ne.s32.totalorder %s102, %s104
    %p108 = scmp.eq.s32.totalorder %s12, 0
    %p109 = por %p107, %p108
    %p110 = scmp.ne.s32.totalorder %s102, %s104
    %p111 = scmp.eq.s32.totalorder %s17, 1
    %p112 = por %p110, %p111
    %p113 = scmp.ne.s32.totalorder %s104, %s105
    %p114 = scmp.eq.s32.totalorder %s17, 0
    %p115 = por %p113, %p114
    %p116 = scmp.ne.s32.totalorder %s104, %s105
    %p117 = scmp.eq.s32.totalorder %s18, 1
    %p118 = por %p116, %p117
    %p120 = scmp.ne.s32.totalorder %s105, %s119
    %p121 = scmp.eq.s32.totalorder %s18, 0
    %p122 = por %p120, %p121
    %s124 = sadd.s32 %s123, 1
    %p127 = scmp.eq.s32.totalorder %s12, 1
    %p128 = scmp.ne.s32.totalorder %s123, %s125
    %p129 = scmp.eq.s32.totalorder %s12, 0
    %p130 = por %p128, %p129
    %p131 = scmp.ne.s32.totalorder %s123, %s125
    %p132 = scmp.eq.s32.totalorder %s17, 1
    %p133 = por %p131, %p132
    %p134 = scmp.ne.s32.totalorder %s125, %s126
    %p135 = scmp.eq.s32.totalorder %s17, 0
    %p136 = por %p134, %p135
    %p137 = scmp.ne.s32.totalorder %s125, %s126
    %p138 = scmp.eq.s32.totalorder %s18, 1
    %p139 = por %p137, %p138
    %p141 = scmp.ne.s32.totalorder %s126, %s140
    %p142 = scmp.eq.s32.totalorder %s18, 0
    %p143 = por %p141, %p142
    %s145 = sadd.s32 %s144, 1
    %p148 = scmp.eq.s32.totalorder %s12, 1
    %p149 = scmp.ne.s32.totalorder %s144, %s146
    %p150 = scmp.eq.s32.totalorder %s12, 0
    %p151 = por %p149, %p150
    %p152 = scmp.ne.s32.totalorder %s144, %s146
    %p153 = scmp.eq.s32.totalorder %s17, 1
    %p154 = por %p152, %p153
    %p155 = scmp.ne.s32.totalorder %s146, %s147
    %p156 = scmp.eq.s32.totalorder %s17, 0
    %p157 = por %p155, %p156
    %p158 = scmp.ne.s32.totalorder %s146, %s147
    %p159 = scmp.eq.s32.totalorder %s18, 1
    %p160 = por %p158, %p159
    %p162 = scmp.ne.s32.totalorder %s147, %s161
    %p163 = scmp.eq.s32.totalorder %s18, 0
    %p164 = por %p162, %p163
    %s165 = ssub.s32 %s19, %s31
    %s166 = ssub.s32 %s20, %s27
    %s167 = sor.u32 %s165, %s166
    %p168 = scmp.eq.s32.totalorder %s167, 0
    %s170 = sadd.s32 %s169, 1
    %s171 = scalar_select %p168, %s169, %s170
    %p174 = pneg %p168
    %p175 = scmp.eq.s32.totalorder %s12, 1
    %p176 = por %p174, %p175
    %p177 = scmp.ne.s32.totalorder %s169, %s172
    %p178 = scmp.eq.s32.totalorder %s12, 0
    %p179 = por %p177, %p178
    %p180 = scmp.ne.s32.totalorder %s169, %s172
    %p181 = scmp.eq.s32.totalorder %s17, 1
    %p182 = por %p180, %p181
    %p183 = scmp.ne.s32.totalorder %s172, %s173
    %p184 = scmp.eq.s32.totalorder %s17, 0
    %p185 = por %p183, %p184
    %p186 = scmp.ne.s32.totalorder %s172, %s173
    %p187 = scmp.eq.s32.totalorder %s18, 1
    %p188 = por %p186, %p187
    %p190 = scmp.ne.s32.totalorder %s173, %s189
    %p191 = scmp.eq.s32.totalorder %s18, 0
    %p192 = por %p190, %p191
    %p193 = scmp.le.s32.totalorder 1, %s12
    %p194 = scmp.lt.s32.totalorder %s12, 3
    %p195 = pnand %p193, %p194
    %p196 = pneg %p195
    // Predicated region
    $region9: #{mtsnet_forward.2} parent=5 // pred_check
      _
    $region10: #{mtsnet_forward.2} parent=5 // pred_check_branch
      %198 = sbr.rel (%p195) target = $region12
    $region11: #{mtsnet_forward.2} parent=5 // pred_region
      %s199 = ssub.s32 %s12, 1
      // Predicated region
      $region13: #{mtsnet_forward.2} parent=11 // pred_check
        %p200 = pneg %p73
      $region14: #{mtsnet_forward.2} parent=11 // pred_check_branch
        %202 = sbr.rel (%p200) target = $region16
      $region15: #{mtsnet_forward.2} parent=11 // pred_region
        _
      $region16: #{mtsnet_forward.2} parent=11 // pred_fallthru
        _
      // Predicated region
      $region17: #{mtsnet_forward.2} parent=11 // pred_check
        %p203 = pneg %p94
      $region18: #{mtsnet_forward.2} parent=11 // pred_check_branch
        %205 = sbr.rel (%p203) target = $region20
      $region19: #{mtsnet_forward.2} parent=11 // pred_region
        _
      $region20: #{mtsnet_forward.2} parent=11 // pred_fallthru
        _
      // Predicated region
      $region21: #{mtsnet_forward.2} parent=11 // pred_check
        %p206 = pneg %p115
      $region22: #{mtsnet_forward.2} parent=11 // pred_check_branch
        %208 = sbr.rel (%p206) target = $region24
      $region23: #{mtsnet_forward.2} parent=11 // pred_region
        _
      $region24: #{mtsnet_forward.2} parent=11 // pred_fallthru
        _
      // Predicated region
      $region25: #{mtsnet_forward.2} parent=11 // pred_check
        %p209 = pneg %p136
      $region26: #{mtsnet_forward.2} parent=11 // pred_check_branch
        %211 = sbr.rel (%p209) target = $region28
      $region27: #{mtsnet_forward.2} parent=11 // pred_region
        _
      $region28: #{mtsnet_forward.2} parent=11 // pred_fallthru
        _
      // Predicated region
      $region29: #{mtsnet_forward.2} parent=11 // pred_check
        %p212 = pneg %p157
      $region30: #{mtsnet_forward.2} parent=11 // pred_check_branch
        %214 = sbr.rel (%p212) target = $region32
      $region31: #{mtsnet_forward.2} parent=11 // pred_region
        _
      $region32: #{mtsnet_forward.2} parent=11 // pred_fallthru
        _
    $region12: #{mtsnet_forward.2} parent=5 // pred_fallthru
      _
    %p215 = scmp.lt.s32.totalorder %s12, 2
    // Predicated region
    $region33: #{mtsnet_forward.2} parent=5 // pred_check
      %p216 = pneg %p215
    $region34: #{mtsnet_forward.2} parent=5 // pred_check_branch
      %218 = sbr.rel (%p216) target = $region36
    $region35: #{mtsnet_forward.2} parent=5 // pred_region
      // Predicated region
      $region37: #{mtsnet_forward.2} parent=35 // pred_check
        %p219 = pneg %p46
      $region38: #{mtsnet_forward.2} parent=35 // pred_check_branch
        %221 = sbr.rel (%p219) target = $region40
      $region39: #{mtsnet_forward.2} parent=35 // pred_region
        %s222 = smul.u32 32, %s20
        %p223 = scmp.lt.s32.totalorder %s19, 1
        %s224 = scalar_select %p223, %s19, 1
        %p225 = scmp.lt.s32.totalorder %s222, 31
        %s226 = scalar_select %p225, %s222, 31
        %s227 = smul.addr %s224, 32
        %s228 = sadd.s32 %s226, %s227
        %s229 = smul.addr %s228, 4
        %s230 = scalar_lea.vmem %s0, %s229
        %s231 = smul.u32 32, %s20
      $region40: #{mtsnet_forward.2} parent=35 // pred_fallthru
        _
    $region36: #{mtsnet_forward.2} parent=5 // pred_fallthru
      _
    %p232 = scmp.le.s32.totalorder 1, %s12
    %p233 = scmp.lt.s32.totalorder %s12, 3
    %p234 = pnand %p232, %p233
    %p235 = pneg %p234
    // Predicated region
    $region41: #{mtsnet_forward.2} parent=5 // pred_check
      _
    $region42: #{mtsnet_forward.2} parent=5 // pred_check_branch
      %237 = sbr.rel (%p234) target = $region44
    $region43: #{mtsnet_forward.2} parent=5 // pred_region
      %s238 = ssub.s32 %s12, 1
      %s239 = smul.u32 32, %s22
      %p240 = scmp.lt.s32.totalorder %s21, 1
      %s241 = scalar_select %p240, %s21, 1
      %p242 = scmp.lt.s32.totalorder %s239, 31
      %s243 = scalar_select %p242, %s239, 31
      %s244 = smul.addr %s241, 32
      %s245 = sadd.s32 %s243, %s244
      %s246 = smul.addr %s245, 4
      %s247 = scalar_lea.vmem %s0, %s246
      %p248 = pneg %p52
      %p249 = pneg %p49
      %p250 = pneg %p73
      %p251 = pneg %p70
      %p252 = pneg %p94
      %p253 = pneg %p91
      %p254 = pneg %p115
      %p255 = pneg %p112
      %p256 = pneg %p136
      %p257 = pneg %p133
      %p258 = pneg %p157
      %p259 = pneg %p154
      %p260 = pneg %p185
      %p261 = pneg %p182
      %s262 = smul.u32 32, %s22
      %p263 = scmp.lt.s32.totalorder %s21, 1
      %s264 = scalar_select %p263, %s21, 1
      %p265 = scmp.lt.s32.totalorder %s262, 31
      %s266 = scalar_select %p265, %s262, 31
      %s267 = smul.addr %s264, 32
      %s268 = sadd.s32 %s266, %s267
      %s269 = smul.addr %s268, 8
      %s270 = scalar_lea.vmem %s6, %s269
      %s271 = smul.u32 32, %s22
      %p272 = scmp.lt.s32.totalorder %s21, 1
      %s273 = scalar_select %p272, %s21, 1
      %p274 = scmp.lt.s32.totalorder %s271, 31
      %s275 = scalar_select %p274, %s271, 31
      %s276 = smul.addr %s273, 32
      %s277 = sadd.s32 %s275, %s276
      %s278 = smul.addr %s277, 4
      %s279 = scalar_lea.vmem %s0, %s278
      %s280 = smul.u32 32, %s22
      %s281 = smul.u32 32, %s22
      %p282 = scmp.lt.s32.totalorder %s21, 1
      %s283 = scalar_select %p282, %s21, 1
      %p284 = scmp.lt.s32.totalorder %s281, 31
      %s285 = scalar_select %p284, %s281, 31
      %s286 = smul.addr %s283, 32
      %s287 = sadd.s32 %s285, %s286
      %s288 = smul.addr %s287, 8
      %s289 = scalar_lea.vmem %s6, %s288
      %s290 = smul.u32 32, %s22
      %v292 = vld [vmem:[%s279] sm:$0xf]
      %v293 = vld [vmem:[%s279 + $0x4] sm:$0xf]
      %v294 = vld [vmem:[%s279 + $0x8] sm:$0xf]
      %v295 = vld [vmem:[%s279 + $0xc] sm:$0xf]
      %v296 = vld [vmem:[%s279 + $0x10] sm:$0xf]
      %v297 = vld [vmem:[%s279 + $0x14] sm:$0xf]
      %v298 = vld [vmem:[%s279 + $0x18] sm:$0xf]
      %v299 = vld [vmem:[%s279 + $0x1c] sm:$0xf]
      %v300 = vld [vmem:[%s279 + $0x20] sm:$0xf]
      %v301 = vld [vmem:[%s279 + $0x24] sm:$0xf]
      %v302 = vld [vmem:[%s279 + $0x28] sm:$0xf]
      %v303 = vld [vmem:[%s279 + $0x2c] sm:$0xf]
      %v304 = vld [vmem:[%s279 + $0x30] sm:$0xf]
      %v305 = vld [vmem:[%s279 + $0x34] sm:$0xf]
      %v306 = vld [vmem:[%s279 + $0x38] sm:$0xf]
      %v307 = vld [vmem:[%s279 + $0x3c] sm:$0xf]
      %v308 = vld [vmem:[%s279 + $0x40] sm:$0xf]
      %v309 = vld [vmem:[%s279 + $0x44] sm:$0xf]
      %v310 = vld [vmem:[%s279 + $0x48] sm:$0xf]
      %v311 = vld [vmem:[%s279 + $0x4c] sm:$0xf]
      %v312 = vld [vmem:[%s279 + $0x50] sm:$0xf]
      %v313 = vld [vmem:[%s279 + $0x54] sm:$0xf]
      %v314 = vld [vmem:[%s279 + $0x58] sm:$0xf]
      %v315 = vld [vmem:[%s279 + $0x5c] sm:$0xf]
      %v316 = vld [vmem:[%s279 + $0x60] sm:$0xf]
      %v317 = vld [vmem:[%s279 + $0x64] sm:$0xf]
      %v318 = vld [vmem:[%s279 + $0x68] sm:$0xf]
      %v319 = vld [vmem:[%s279 + $0x6c] sm:$0xf]
      %v320 = vld [vmem:[%s279 + $0x70] sm:$0xf]
      %v321 = vld [vmem:[%s279 + $0x74] sm:$0xf]
      %v322 = vld [vmem:[%s279 + $0x78] sm:$0xf]
      %v323 = vld [vmem:[%s279 + $0x7c] sm:$0xf]
      %v324 = vld [vmem:[%s1] sm:$0xff]
      %v325 = vld [vmem:[%s1 + $0x8] sm:$0xff]
      %v326 = vld [vmem:[%s1 + $0x10] sm:$0xff]
      %v327 = vld [vmem:[%s1 + $0x18] sm:$0xff]
      %v328 = vld [vmem:[%s1 + $0x20] sm:$0xff]
      %v329 = vld [vmem:[%s1 + $0x28] sm:$0xff]
      %v330 = vld [vmem:[%s1 + $0x30] sm:$0xff]
      %v331 = vld [vmem:[%s1 + $0x38] sm:$0xff]
      %v332 = vld [vmem:[%s1 + $0x40] sm:$0xff]
      %v333 = vld [vmem:[%s1 + $0x48] sm:$0xff]
      %v334 = vld [vmem:[%s1 + $0x50] sm:$0xff]
      %v335 = vld [vmem:[%s1 + $0x58] sm:$0xff]
      %v336 = vld [vmem:[%s2] sm:$0xf]
      %v338 = vlaneseq
      %v339 = vshrl.u32 %v338, 7
      %v340 = vsub.s32 0, %v339
      %v341 = vrot.slane %v336, %v340
      %v342 = vlaneseq
      %v343 = vshrl.u32 %v342, 7
      %v344 = vsub.s32 1, %v343
      %v345 = vrot.slane %v336, %v344
      %v346 = vlaneseq
      %v347 = vshrl.u32 %v346, 7
      %v348 = vsub.s32 2, %v347
      %v349 = vrot.slane %v336, %v348
      %v350 = vlaneseq
      %v351 = vshrl.u32 %v350, 7
      %v352 = vsub.s32 3, %v351
      %v353 = vrot.slane %v336, %v352
      %v390 = vunpack.c.l.b16 %v292
      %v391 = vunpack.c.l.b16 %v293
      %v392 = vunpack.c.l.b16 %v294
      %v393 = vunpack.c.l.b16 %v295
      %v394 = vunpack.c.l.b16 %v296
      %v395 = vunpack.c.l.b16 %v297
      %v396 = vunpack.c.l.b16 %v298
      %v397 = vunpack.c.l.b16 %v299
      %v398 = vunpack.c.l.b16 %v300
      %v399 = vunpack.c.l.b16 %v301
      %v400 = vunpack.c.l.b16 %v302
      %v401 = vunpack.c.l.b16 %v303
      %v402 = vunpack.c.l.b16 %v304
      %v403 = vunpack.c.l.b16 %v305
      %v404 = vunpack.c.l.b16 %v306
      %v405 = vunpack.c.l.b16 %v307
      %v406 = vunpack.c.l.b16 %v308
      %v407 = vunpack.c.l.b16 %v309
      %v408 = vunpack.c.l.b16 %v310
      %v409 = vunpack.c.l.b16 %v311
      %v410 = vunpack.c.l.b16 %v312
      %v411 = vunpack.c.l.b16 %v313
      %v412 = vunpack.c.l.b16 %v314
      %v413 = vunpack.c.l.b16 %v315
      %v414 = vunpack.c.l.b16 %v316
      %v415 = vunpack.c.l.b16 %v317
      %v416 = vunpack.c.l.b16 %v318
      %v417 = vunpack.c.l.b16 %v319
      %v418 = vunpack.c.l.b16 %v320
      %v419 = vunpack.c.l.b16 %v321
      %v420 = vunpack.c.l.b16 %v322
      %v421 = vunpack.c.l.b16 %v323
      %v422 = vpack.c.b16 %v391, %v390
      %v423 = vpack.c.b16 %v393, %v392
      %v424 = vpack.c.b16 %v395, %v394
      %v425 = vpack.c.b16 %v397, %v396
      %v426 = vpack.c.b16 %v399, %v398
      %v427 = vpack.c.b16 %v401, %v400
      %v428 = vpack.c.b16 %v403, %v402
      %v429 = vpack.c.b16 %v405, %v404
      %v430 = vpack.c.b16 %v407, %v406
      %v431 = vpack.c.b16 %v409, %v408
      %v432 = vpack.c.b16 %v411, %v410
      %v433 = vpack.c.b16 %v413, %v412
      %v434 = vpack.c.b16 %v415, %v414
      %v435 = vpack.c.b16 %v417, %v416
      %v436 = vpack.c.b16 %v419, %v418
      %v437 = vpack.c.b16 %v421, %v420
      %v450 = vunpack.c.l.b16 %v324
      %v451 = vunpack.c.h.b16 %v324
      %v452 = vunpack.c.l.b16 %v325
      %v453 = vunpack.c.h.b16 %v325
      %v454 = vunpack.c.l.b16 %v326
      %v455 = vunpack.c.h.b16 %v326
      %v456 = vunpack.c.l.b16 %v327
      %v457 = vunpack.c.h.b16 %v327
      %v458 = vunpack.c.l.b16 %v328
      %v459 = vunpack.c.h.b16 %v328
      %v460 = vunpack.c.l.b16 %v329
      %v461 = vunpack.c.h.b16 %v329
      %v462 = vunpack.c.l.b16 %v330
      %v463 = vunpack.c.h.b16 %v330
      %v464 = vunpack.c.l.b16 %v331
      %v465 = vunpack.c.h.b16 %v331
      %v466 = vunpack.c.l.b16 %v332
      %v467 = vunpack.c.h.b16 %v332
      %v468 = vunpack.c.l.b16 %v333
      %v469 = vunpack.c.h.b16 %v333
      %v470 = vunpack.c.l.b16 %v334
      %v471 = vunpack.c.h.b16 %v334
      %v472 = vunpack.c.l.b16 %v335
      %v473 = vunpack.c.h.b16 %v335
      %v474 = vpack.c.b16 %v454, %v450
      %v475 = vpack.c.b16 %v455, %v451
      %v476 = vpack.c.b16 %v456, %v452
      %v477 = vpack.c.b16 %v457, %v453
      %v478 = vpack.c.b16 %v462, %v458
      %v479 = vpack.c.b16 %v463, %v459
      %v480 = vpack.c.b16 %v464, %v460
      %v481 = vpack.c.b16 %v465, %v461
      %v482 = vpack.c.b16 %v470, %v466
      %v483 = vpack.c.b16 %v471, %v467
      %v484 = vpack.c.b16 %v472, %v468
      %v485 = vpack.c.b16 %v473, %v469
      %vm498 = vcmask 392192
      %v500 = vsel %vm498, %v422, 0
      %v503 = vsel %vm498, %v423, 0
      %v506 = vsel %vm498, %v424, 0
      %v509 = vsel %vm498, %v425, 0
      %v512 = vsel %vm498, %v426, 0
      %v515 = vsel %vm498, %v427, 0
      %v518 = vsel %vm498, %v428, 0
      %v521 = vsel %vm498, %v429, 0
      %v524 = vsel %vm498, %v430, 0
      %v527 = vsel %vm498, %v431, 0
      %v530 = vsel %vm498, %v432, 0
      %v533 = vsel %vm498, %v433, 0
      %v536 = vsel %vm498, %v434, 0
      %v539 = vsel %vm498, %v435, 0
      %v542 = vsel %vm498, %v436, 0
      %v545 = vsel %vm498, %v437, 0
      %547 = vmatprep.subr.bf16.mxu0 %v475
      %548 = vmatpush1.bf16.msra.mxu0 %v474
      %549 = vmatprep.subr.bf16.mxu0 %v479
      %550 = vmatpush1.bf16.msra.mxu0 %v478
      %551 = vmatprep.subr.bf16.mxu0 %v483
      %552 = vmatpush1.bf16.msra.mxu0 %v482
      %553 = vmatprep.subr.bf16.mxu0 0
      %554 = vmatpush1.bf16.msra.mxu0 0
      %555 = vmatprep.subr.bf16.mxu0 0
      %556 = vmatpush1.bf16.msra.mxu0 0
      %557 = vmatprep.subr.bf16.mxu0 0
      %558 = vmatpush1.bf16.msra.mxu0 0
      %559 = vmatprep.subr.bf16.mxu0 0
      %560 = vmatpush1.bf16.msra.mxu0 0
      %561 = vmatprep.subr.bf16.mxu0 0
      %562 = vmatpush1.bf16.msra.mxu0 0
      %563 = vmatprep.subr.bf16.mxu0 0
      %564 = vmatpush1.bf16.msra.mxu0 0
      %565 = vmatprep.subr.bf16.mxu0 0
      %566 = vmatpush1.bf16.msra.mxu0 0
      %567 = vmatprep.subr.bf16.mxu0 0
      %568 = vmatpush1.bf16.msra.mxu0 0
      %569 = vmatprep.subr.bf16.mxu0 0
      %570 = vmatpush1.bf16.msra.mxu0 0
      %571 = vmatprep.subr.bf16.mxu0 0
      %572 = vmatpush1.bf16.msra.mxu0 0
      %573 = vmatprep.subr.bf16.mxu0 0
      %574 = vmatpush1.bf16.msra.mxu0 0
      %575 = vmatprep.subr.bf16.mxu0 0
      %576 = vmatpush1.bf16.msra.mxu0 0
      %577 = vmatprep.subr.bf16.mxu0 0
      %578 = vmatpush1.bf16.msra.mxu0 0
      %579 = vmatprep.mubr.bf16.mxu0 0
      %580 = vmatmul.mubr.bf16.gmra.mrb[0].mxu0 %v500
      %v581 = vpop.f32.mrb[0].mxu0
      %v582 = vadd.f32 %v341, %v581
      %v583 = vpop.f32.mrb[0].mxu0
      %v584 = vadd.f32 %v345, %v583
      %v585 = vpop.f32.mrb[0].mxu0
      %v586 = vadd.f32 %v341, %v585
      %v587 = vpop.f32.mrb[0].mxu0
      %v588 = vadd.f32 %v345, %v587
      %589 = vmatprep.mubr.bf16.mxu0 0
      %590 = vmatmul.mubr.bf16.gmra.mrb[0].mxu0 %v503
      %v591 = vpop.f32.mrb[0].mxu0
      %v592 = vadd.f32 %v341, %v591
      %v593 = vpop.f32.mrb[0].mxu0
      %v594 = vadd.f32 %v345, %v593
      %v595 = vpop.f32.mrb[0].mxu0
      %v596 = vadd.f32 %v341, %v595
      %v597 = vpop.f32.mrb[0].mxu0
      %v598 = vadd.f32 %v345, %v597
      %599 = vmatprep.mubr.bf16.mxu0 0
      %600 = vmatmul.mubr.bf16.gmra.mrb[0].mxu0 %v506
      %v601 = vpop.f32.mrb[0].mxu0
      %v602 = vadd.f32 %v341, %v601
      %v603 = vpop.f32.mrb[0].mxu0
      %v604 = vadd.f32 %v345, %v603
      %v605 = vpop.f32.mrb[0].mxu0
      %v606 = vadd.f32 %v341, %v605
      %v607 = vpop.f32.mrb[0].mxu0
      %v608 = vadd.f32 %v345, %v607
      %609 = vmatprep.mubr.bf16.mxu0 0
      %610 = vmatmul.mubr.bf16.gmra.mrb[0].mxu0 %v509
      %v611 = vpop.f32.mrb[0].mxu0
      %v612 = vadd.f32 %v341, %v611
      %v613 = vpop.f32.mrb[0].mxu0
      %v614 = vadd.f32 %v345, %v613
      %v615 = vpop.f32.mrb[0].mxu0
      %v616 = vadd.f32 %v341, %v615
      %v617 = vpop.f32.mrb[0].mxu0
      %v618 = vadd.f32 %v345, %v617
      %619 = vmatprep.mubr.bf16.mxu0 0
      %620 = vmatmul.mubr.bf16.gmra.mrb[0].mxu0 %v512
      %v621 = vpop.f32.mrb[0].mxu0
      %v622 = vadd.f32 %v341, %v621
      %v623 = vpop.f32.mrb[0].mxu0
      %v624 = vadd.f32 %v345, %v623
      %v625 = vpop.f32.mrb[0].mxu0
      %v626 = vadd.f32 %v341, %v625
      %v627 = vpop.f32.mrb[0].mxu0
      %v628 = vadd.f32 %v345, %v627
      %629 = vmatprep.mubr.bf16.mxu0 0
      %630 = vmatmul.mubr.bf16.gmra.mrb[0].mxu0 %v515
      %v631 = vpop.f32.mrb[0].mxu0
      %v632 = vadd.f32 %v341, %v631
      %v633 = vpop.f32.mrb[0].mxu0
      %v634 = vadd.f32 %v345, %v633
      %v635 = vpop.f32.mrb[0].mxu0
      %v636 = vadd.f32 %v341, %v635
      %v637 = vpop.f32.mrb[0].mxu0
      %v638 = vadd.f32 %v345, %v637
      %639 = vmatprep.mubr.bf16.mxu0 0
      %640 = vmatmul.mubr.bf16.gmra.mrb[0].mxu0 %v518
      %v641 = vpop.f32.mrb[0].mxu0
      %v642 = vadd.f32 %v341, %v641
      %v643 = vpop.f32.mrb[0].mxu0
      %v644 = vadd.f32 %v345, %v643
      %v645 = vpop.f32.mrb[0].mxu0
      %v646 = vadd.f32 %v341, %v645
      %v647 = vpop.f32.mrb[0].mxu0
      %v648 = vadd.f32 %v345, %v647
      %649 = vmatprep.mubr.bf16.mxu0 0
      %650 = vmatmul.mubr.bf16.gmra.mrb[0].mxu0 %v521
      %v651 = vpop.f32.mrb[0].mxu0
      %v652 = vadd.f32 %v341, %v651
      %v653 = vpop.f32.mrb[0].mxu0
      %v654 = vadd.f32 %v345, %v653
      %v655 = vpop.f32.mrb[0].mxu0
      %v656 = vadd.f32 %v341, %v655
      %v657 = vpop.f32.mrb[0].mxu0
      %v658 = vadd.f32 %v345, %v657
      %659 = vmatprep.mubr.bf16.mxu0 0
      %660 = vmatmul.mubr.bf16.gmra.mrb[0].mxu0 %v524
      %v661 = vpop.f32.mrb[0].mxu0
      %v662 = vadd.f32 %v341, %v661
      %v663 = vpop.f32.mrb[0].mxu0
      %v664 = vadd.f32 %v345, %v663
      %v665 = vpop.f32.mrb[0].mxu0
      %v666 = vadd.f32 %v341, %v665
      %v667 = vpop.f32.mrb[0].mxu0
      %v668 = vadd.f32 %v345, %v667
      %669 = vmatprep.mubr.bf16.mxu0 0
      %670 = vmatmul.mubr.bf16.gmra.mrb[0].mxu0 %v527
      %v671 = vpop.f32.mrb[0].mxu0
      %v672 = vadd.f32 %v341, %v671
      %v673 = vpop.f32.mrb[0].mxu0
      %v674 = vadd.f32 %v345, %v673
      %v675 = vpop.f32.mrb[0].mxu0
      %v676 = vadd.f32 %v341, %v675
      %v677 = vpop.f32.mrb[0].mxu0
      %v678 = vadd.f32 %v345, %v677
      %679 = vmatprep.mubr.bf16.mxu0 0
      %680 = vmatmul.mubr.bf16.gmra.mrb[0].mxu0 %v530
      %v681 = vpop.f32.mrb[0].mxu0
      %v682 = vadd.f32 %v341, %v681
      %v683 = vpop.f32.mrb[0].mxu0
      %v684 = vadd.f32 %v345, %v683
      %v685 = vpop.f32.mrb[0].mxu0
      %v686 = vadd.f32 %v341, %v685
      %v687 = vpop.f32.mrb[0].mxu0
      %v688 = vadd.f32 %v345, %v687
      %689 = vmatprep.mubr.bf16.mxu0 0
      %690 = vmatmul.mubr.bf16.gmra.mrb[0].mxu0 %v533
      %v691 = vpop.f32.mrb[0].mxu0
      %v692 = vadd.f32 %v341, %v691
      %v693 = vpop.f32.mrb[0].mxu0
      %v694 = vadd.f32 %v345, %v693
      %v695 = vpop.f32.mrb[0].mxu0
      %v696 = vadd.f32 %v341, %v695
      %v697 = vpop.f32.mrb[0].mxu0
      %v698 = vadd.f32 %v345, %v697
      %699 = vmatprep.mubr.bf16.mxu0 0
      %700 = vmatmul.mubr.bf16.gmra.mrb[0].mxu0 %v536
      %v701 = vpop.f32.mrb[0].mxu0
      %v702 = vadd.f32 %v341, %v701
      %v703 = vpop.f32.mrb[0].mxu0
      %v704 = vadd.f32 %v345, %v703
      %v705 = vpop.f32.mrb[0].mxu0
      %v706 = vadd.f32 %v341, %v705
      %v707 = vpop.f32.mrb[0].mxu0
      %v708 = vadd.f32 %v345, %v707
      %709 = vmatprep.mubr.bf16.mxu0 0
      %710 = vmatmul.mubr.bf16.gmra.mrb[0].mxu0 %v539
      %v711 = vpop.f32.mrb[0].mxu0
      %v712 = vadd.f32 %v341, %v711
      %v713 = vpop.f32.mrb[0].mxu0
      %v714 = vadd.f32 %v345, %v713
      %v715 = vpop.f32.mrb[0].mxu0
      %v716 = vadd.f32 %v341, %v715
      %v717 = vpop.f32.mrb[0].mxu0
      %v718 = vadd.f32 %v345, %v717
      %719 = vmatprep.mubr.bf16.mxu0 0
      %720 = vmatmul.mubr.bf16.gmra.mrb[0].mxu0 %v542
      %v721 = vpop.f32.mrb[0].mxu0
      %v722 = vadd.f32 %v341, %v721
      %v723 = vpop.f32.mrb[0].mxu0
      %v724 = vadd.f32 %v345, %v723
      %v725 = vpop.f32.mrb[0].mxu0
      %v726 = vadd.f32 %v341, %v725
      %v727 = vpop.f32.mrb[0].mxu0
      %v728 = vadd.f32 %v345, %v727
      %729 = vmatprep.mubr.bf16.mxu0 0
      %730 = vmatmul.mubr.bf16.gmra.mrb[0].mxu0 %v545
      %v731 = vpop.f32.mrb[0].mxu0
      %v732 = vadd.f32 %v341, %v731
      %v733 = vpop.f32.mrb[0].mxu0
      %v734 = vadd.f32 %v345, %v733
      %v735 = vpop.f32.mrb[0].mxu0
      %v736 = vadd.f32 %v341, %v735
      %v737 = vpop.f32.mrb[0].mxu0
      %v738 = vadd.f32 %v345, %v737
      %739 = vdwg.mxu0
      %740 = vmatprep.subr.bf16.mxu0 %v477
      %741 = vmatpush1.bf16.msra.mxu0 %v476
      %742 = vmatprep.subr.bf16.mxu0 %v481
      %743 = vmatpush1.bf16.msra.mxu0 %v480
      %744 = vmatprep.subr.bf16.mxu0 %v485
      %745 = vmatpush1.bf16.msra.mxu0 %v484
      %746 = vmatprep.subr.bf16.mxu0 0
      %747 = vmatpush1.bf16.msra.mxu0 0
      %748 = vmatprep.subr.bf16.mxu0 0
      %749 = vmatpush1.bf16.msra.mxu0 0
      %750 = vmatprep.subr.bf16.mxu0 0
      %751 = vmatpush1.bf16.msra.mxu0 0
      %752 = vmatprep.subr.bf16.mxu0 0
      %753 = vmatpush1.bf16.msra.mxu0 0
      %754 = vmatprep.subr.bf16.mxu0 0
      %755 = vmatpush1.bf16.msra.mxu0 0
      %756 = vmatprep.subr.bf16.mxu0 0
      %757 = vmatpush1.bf16.msra.mxu0 0
      %758 = vmatprep.subr.bf16.mxu0 0
      %759 = vmatpush1.bf16.msra.mxu0 0
      %760 = vmatprep.subr.bf16.mxu0 0
      %761 = vmatpush1.bf16.msra.mxu0 0
      %762 = vmatprep.subr.bf16.mxu0 0
      %763 = vmatpush1.bf16.msra.mxu0 0
      %764 = vmatprep.subr.bf16.mxu0 0
      %765 = vmatpush1.bf16.msra.mxu0 0
      %766 = vmatprep.subr.bf16.mxu0 0
      %767 = vmatpush1.bf16.msra.mxu0 0
      %768 = vmatprep.subr.bf16.mxu0 0
      %769 = vmatpush1.bf16.msra.mxu0 0
      %770 = vmatprep.subr.bf16.mxu0 0
      %771 = vmatpush1.bf16.msra.mxu0 0
      %772 = vmatprep.mubr.bf16.mxu0 0
      %773 = vmatmul.mubr.bf16.gmra.mrb[0].mxu0 %v500
      %v774 = vpop.f32.mrb[0].mxu0
      %v775 = vadd.f32 %v349, %v774
      %v776 = vpop.f32.mrb[0].mxu0
      %v777 = vadd.f32 %v353, %v776
      %v778 = vpop.f32.mrb[0].mxu0
      %v779 = vadd.f32 %v349, %v778
      %v780 = vpop.f32.mrb[0].mxu0
      %v781 = vadd.f32 %v353, %v780
      %782 = vmatprep.mubr.bf16.mxu0 0
      %783 = vmatmul.mubr.bf16.gmra.mrb[0].mxu0 %v503
      %v784 = vpop.f32.mrb[0].mxu0
      %v785 = vadd.f32 %v349, %v784
      %v786 = vpop.f32.mrb[0].mxu0
      %v787 = vadd.f32 %v353, %v786
      %v788 = vpop.f32.mrb[0].mxu0
      %v789 = vadd.f32 %v349, %v788
      %v790 = vpop.f32.mrb[0].mxu0
      %v791 = vadd.f32 %v353, %v790
      %792 = vmatprep.mubr.bf16.mxu0 0
      %793 = vmatmul.mubr.bf16.gmra.mrb[0].mxu0 %v506
      %v794 = vpop.f32.mrb[0].mxu0
      %v795 = vadd.f32 %v349, %v794
      %v796 = vpop.f32.mrb[0].mxu0
      %v797 = vadd.f32 %v353, %v796
      %v798 = vpop.f32.mrb[0].mxu0
      %v799 = vadd.f32 %v349, %v798
      %v800 = vpop.f32.mrb[0].mxu0
      %v801 = vadd.f32 %v353, %v800
      %802 = vmatprep.mubr.bf16.mxu0 0
      %803 = vmatmul.mubr.bf16.gmra.mrb[0].mxu0 %v509
      %v804 = vpop.f32.mrb[0].mxu0
      %v805 = vadd.f32 %v349, %v804
      %v806 = vpop.f32.mrb[0].mxu0
      %v807 = vadd.f32 %v353, %v806
      %v808 = vpop.f32.mrb[0].mxu0
      %v809 = vadd.f32 %v349, %v808
      %v810 = vpop.f32.mrb[0].mxu0
      %v811 = vadd.f32 %v353, %v810
      %812 = vmatprep.mubr.bf16.mxu0 0
      %813 = vmatmul.mubr.bf16.gmra.mrb[0].mxu0 %v512
      %v814 = vpop.f32.mrb[0].mxu0
      %v815 = vadd.f32 %v349, %v814
      %v816 = vpop.f32.mrb[0].mxu0
      %v817 = vadd.f32 %v353, %v816
      %v818 = vpop.f32.mrb[0].mxu0
      %v819 = vadd.f32 %v349, %v818
      %v820 = vpop.f32.mrb[0].mxu0
      %v821 = vadd.f32 %v353, %v820
      %822 = vmatprep.mubr.bf16.mxu0 0
      %823 = vmatmul.mubr.bf16.gmra.mrb[0].mxu0 %v515
      %v824 = vpop.f32.mrb[0].mxu0
      %v825 = vadd.f32 %v349, %v824
      %v826 = vpop.f32.mrb[0].mxu0
      %v827 = vadd.f32 %v353, %v826
      %v828 = vpop.f32.mrb[0].mxu0
      %v829 = vadd.f32 %v349, %v828
      %v830 = vpop.f32.mrb[0].mxu0
      %v831 = vadd.f32 %v353, %v830
      %832 = vmatprep.mubr.bf16.mxu0 0
      %833 = vmatmul.mubr.bf16.gmra.mrb[0].mxu0 %v518
      %v834 = vpop.f32.mrb[0].mxu0
      %v835 = vadd.f32 %v349, %v834
      %v836 = vpop.f32.mrb[0].mxu0
      %v837 = vadd.f32 %v353, %v836
      %v838 = vpop.f32.mrb[0].mxu0
      %v839 = vadd.f32 %v349, %v838
      %v840 = vpop.f32.mrb[0].mxu0
      %v841 = vadd.f32 %v353, %v840
      %842 = vmatprep.mubr.bf16.mxu0 0
      %843 = vmatmul.mubr.bf16.gmra.mrb[0].mxu0 %v521
      %v844 = vpop.f32.mrb[0].mxu0
      %v845 = vadd.f32 %v349, %v844
      %v846 = vpop.f32.mrb[0].mxu0
      %v847 = vadd.f32 %v353, %v846
      %v848 = vpop.f32.mrb[0].mxu0
      %v849 = vadd.f32 %v349, %v848
      %v850 = vpop.f32.mrb[0].mxu0
      %v851 = vadd.f32 %v353, %v850
      %852 = vmatprep.mubr.bf16.mxu0 0
      %853 = vmatmul.mubr.bf16.gmra.mrb[0].mxu0 %v524
      %v854 = vpop.f32.mrb[0].mxu0
      %v855 = vadd.f32 %v349, %v854
      %v856 = vpop.f32.mrb[0].mxu0
      %v857 = vadd.f32 %v353, %v856
      %v858 = vpop.f32.mrb[0].mxu0
      %v859 = vadd.f32 %v349, %v858
      %v860 = vpop.f32.mrb[0].mxu0
      %v861 = vadd.f32 %v353, %v860
      %862 = vmatprep.mubr.bf16.mxu0 0
      %863 = vmatmul.mubr.bf16.gmra.mrb[0].mxu0 %v527
      %v864 = vpop.f32.mrb[0].mxu0
      %v865 = vadd.f32 %v349, %v864
      %v866 = vpop.f32.mrb[0].mxu0
      %v867 = vadd.f32 %v353, %v866
      %v868 = vpop.f32.mrb[0].mxu0
      %v869 = vadd.f32 %v349, %v868
      %v870 = vpop.f32.mrb[0].mxu0
      %v871 = vadd.f32 %v353, %v870
      %872 = vmatprep.mubr.bf16.mxu0 0
      %873 = vmatmul.mubr.bf16.gmra.mrb[0].mxu0 %v530
      %v874 = vpop.f32.mrb[0].mxu0
      %v875 = vadd.f32 %v349, %v874
      %v876 = vpop.f32.mrb[0].mxu0
      %v877 = vadd.f32 %v353, %v876
      %v878 = vpop.f32.mrb[0].mxu0
      %v879 = vadd.f32 %v349, %v878
      %v880 = vpop.f32.mrb[0].mxu0
      %v881 = vadd.f32 %v353, %v880
      %882 = vmatprep.mubr.bf16.mxu0 0
      %883 = vmatmul.mubr.bf16.gmra.mrb[0].mxu0 %v533
      %v884 = vpop.f32.mrb[0].mxu0
      %v885 = vadd.f32 %v349, %v884
      %v886 = vpop.f32.mrb[0].mxu0
      %v887 = vadd.f32 %v353, %v886
      %v888 = vpop.f32.mrb[0].mxu0
      %v889 = vadd.f32 %v349, %v888
      %v890 = vpop.f32.mrb[0].mxu0
      %v891 = vadd.f32 %v353, %v890
      %892 = vmatprep.mubr.bf16.mxu0 0
      %893 = vmatmul.mubr.bf16.gmra.mrb[0].mxu0 %v536
      %v894 = vpop.f32.mrb[0].mxu0
      %v895 = vadd.f32 %v349, %v894
      %v896 = vpop.f32.mrb[0].mxu0
      %v897 = vadd.f32 %v353, %v896
      %v898 = vpop.f32.mrb[0].mxu0
      %v899 = vadd.f32 %v349, %v898
      %v900 = vpop.f32.mrb[0].mxu0
      %v901 = vadd.f32 %v353, %v900
      %902 = vmatprep.mubr.bf16.mxu0 0
      %903 = vmatmul.mubr.bf16.gmra.mrb[0].mxu0 %v539
      %v904 = vpop.f32.mrb[0].mxu0
      %v905 = vadd.f32 %v349, %v904
      %v906 = vpop.f32.mrb[0].mxu0
      %v907 = vadd.f32 %v353, %v906
      %v908 = vpop.f32.mrb[0].mxu0
      %v909 = vadd.f32 %v349, %v908
      %v910 = vpop.f32.mrb[0].mxu0
      %v911 = vadd.f32 %v353, %v910
      %912 = vmatprep.mubr.bf16.mxu0 0
      %913 = vmatmul.mubr.bf16.gmra.mrb[0].mxu0 %v542
      %v914 = vpop.f32.mrb[0].mxu0
      %v915 = vadd.f32 %v349, %v914
      %v916 = vpop.f32.mrb[0].mxu0
      %v917 = vadd.f32 %v353, %v916
      %v918 = vpop.f32.mrb[0].mxu0
      %v919 = vadd.f32 %v349, %v918
      %v920 = vpop.f32.mrb[0].mxu0
      %v921 = vadd.f32 %v353, %v920
      %922 = vmatprep.mubr.bf16.mxu0 0
      %923 = vmatmul.mubr.bf16.gmra.mrb[0].mxu0 %v545
      %v924 = vpop.f32.mrb[0].mxu0
      %v925 = vadd.f32 %v349, %v924
      %v926 = vpop.f32.mrb[0].mxu0
      %v927 = vadd.f32 %v353, %v926
      %v928 = vpop.f32.mrb[0].mxu0
      %v929 = vadd.f32 %v349, %v928
      %v930 = vpop.f32.mrb[0].mxu0
      %v931 = vadd.f32 %v353, %v930
      %932 = vdwg.mxu0
      %v933 = vlaneseq
      %v934 = vand.u32 %v933, 127
      %v935 = vadd.s32 %v934, 128
      %v936 = vadd.s32 %v934, 256
      %v937 = vadd.s32 %v934, 384
      %vm938 = vcmp.lt.s32.totalorder %v934, 256
      %vm939 = vcmp.lt.s32.totalorder %v935, 256
      %vm940 = vcmp.lt.s32.totalorder %v936, 256
      %vm941 = vcmp.lt.s32.totalorder %v937, 256
      %v942 = vsel %vm938, 1, 0
      %v943 = vsel %vm939, 1, 0
      %v944 = vsel %vm940, 1, 0
      %v945 = vsel %vm941, 1, 0
      %v946 = vcvt.s32.f32 %v942
      %v947 = vcvt.s32.f32 %v943
      %v948 = vcvt.s32.f32 %v944
      %v949 = vcvt.s32.f32 %v945
      %v950 = vmul.f32 %v582, %v946
      %v951 = vmul.f32 %v584, %v947
      %v952 = vmul.f32 %v775, %v948
      %v953 = vmul.f32 %v777, %v949
      %v954 = vmul.f32 %v586, %v946
      %v955 = vmul.f32 %v588, %v947
      %v956 = vmul.f32 %v779, %v948
      %v957 = vmul.f32 %v781, %v949
      %v958 = vmul.f32 %v592, %v946
      %v959 = vmul.f32 %v594, %v947
      %v960 = vmul.f32 %v785, %v948
      %v961 = vmul.f32 %v787, %v949
      %v962 = vmul.f32 %v596, %v946
      %v963 = vmul.f32 %v598, %v947
      %v964 = vmul.f32 %v789, %v948
      %v965 = vmul.f32 %v791, %v949
      %v966 = vmul.f32 %v602, %v946
      %v967 = vmul.f32 %v604, %v947
      %v968 = vmul.f32 %v795, %v948
      %v969 = vmul.f32 %v797, %v949
      %v970 = vmul.f32 %v606, %v946
      %v971 = vmul.f32 %v608, %v947
      %v972 = vmul.f32 %v799, %v948
      %v973 = vmul.f32 %v801, %v949
      %v974 = vmul.f32 %v612, %v946
      %v975 = vmul.f32 %v614, %v947
      %v976 = vmul.f32 %v805, %v948
      %v977 = vmul.f32 %v807, %v949
      %v978 = vmul.f32 %v616, %v946
      %v979 = vmul.f32 %v618, %v947
      %v980 = vmul.f32 %v809, %v948
      %v981 = vmul.f32 %v811, %v949
      %v982 = vmul.f32 %v622, %v946
      %v983 = vmul.f32 %v624, %v947
      %v984 = vmul.f32 %v815, %v948
      %v985 = vmul.f32 %v817, %v949
      %v986 = vmul.f32 %v626, %v946
      %v987 = vmul.f32 %v628, %v947
      %v988 = vmul.f32 %v819, %v948
      %v989 = vmul.f32 %v821, %v949
      %v990 = vmul.f32 %v632, %v946
      %v991 = vmul.f32 %v634, %v947
      %v992 = vmul.f32 %v825, %v948
      %v993 = vmul.f32 %v827, %v949
      %v994 = vmul.f32 %v636, %v946
      %v995 = vmul.f32 %v638, %v947
      %v996 = vmul.f32 %v829, %v948
      %v997 = vmul.f32 %v831, %v949
      %v998 = vmul.f32 %v642, %v946
      %v999 = vmul.f32 %v644, %v947
      %v1000 = vmul.f32 %v835, %v948
      %v1001 = vmul.f32 %v837, %v949
      %v1002 = vmul.f32 %v646, %v946
      %v1003 = vmul.f32 %v648, %v947
      %v1004 = vmul.f32 %v839, %v948
      %v1005 = vmul.f32 %v841, %v949
      %v1006 = vmul.f32 %v652, %v946
      %v1007 = vmul.f32 %v654, %v947
      %v1008 = vmul.f32 %v845, %v948
      %v1009 = vmul.f32 %v847, %v949
      %v1010 = vmul.f32 %v656, %v946
      %v1011 = vmul.f32 %v658, %v947
      %v1012 = vmul.f32 %v849, %v948
      %v1013 = vmul.f32 %v851, %v949
      %v1014 = vmul.f32 %v662, %v946
      %v1015 = vmul.f32 %v664, %v947
      %v1016 = vmul.f32 %v855, %v948
      %v1017 = vmul.f32 %v857, %v949
      %v1018 = vmul.f32 %v666, %v946
      %v1019 = vmul.f32 %v668, %v947
      %v1020 = vmul.f32 %v859, %v948
      %v1021 = vmul.f32 %v861, %v949
      %v1022 = vmul.f32 %v672, %v946
      %v1023 = vmul.f32 %v674, %v947
      %v1024 = vmul.f32 %v865, %v948
      %v1025 = vmul.f32 %v867, %v949
      %v1026 = vmul.f32 %v676, %v946
      %v1027 = vmul.f32 %v678, %v947
      %v1028 = vmul.f32 %v869, %v948
      %v1029 = vmul.f32 %v871, %v949
      %v1030 = vmul.f32 %v682, %v946
      %v1031 = vmul.f32 %v684, %v947
      %v1032 = vmul.f32 %v875, %v948
      %v1033 = vmul.f32 %v877, %v949
      %v1034 = vmul.f32 %v686, %v946
      %v1035 = vmul.f32 %v688, %v947
      %v1036 = vmul.f32 %v879, %v948
      %v1037 = vmul.f32 %v881, %v949
      %v1038 = vmul.f32 %v692, %v946
      %v1039 = vmul.f32 %v694, %v947
      %v1040 = vmul.f32 %v885, %v948
      %v1041 = vmul.f32 %v887, %v949
      %v1042 = vmul.f32 %v696, %v946
      %v1043 = vmul.f32 %v698, %v947
      %v1044 = vmul.f32 %v889, %v948
      %v1045 = vmul.f32 %v891, %v949
      %v1046 = vmul.f32 %v702, %v946
      %v1047 = vmul.f32 %v704, %v947
      %v1048 = vmul.f32 %v895, %v948
      %v1049 = vmul.f32 %v897, %v949
      %v1050 = vmul.f32 %v706, %v946
      %v1051 = vmul.f32 %v708, %v947
      %v1052 = vmul.f32 %v899, %v948
      %v1053 = vmul.f32 %v901, %v949
      %v1054 = vmul.f32 %v712, %v946
      %v1055 = vmul.f32 %v714, %v947
      %v1056 = vmul.f32 %v905, %v948
      %v1057 = vmul.f32 %v907, %v949
      %v1058 = vmul.f32 %v716, %v946
      %v1059 = vmul.f32 %v718, %v947
      %v1060 = vmul.f32 %v909, %v948
      %v1061 = vmul.f32 %v911, %v949
      %v1062 = vmul.f32 %v722, %v946
      %v1063 = vmul.f32 %v724, %v947
      %v1064 = vmul.f32 %v915, %v948
      %v1065 = vmul.f32 %v917, %v949
      %v1066 = vmul.f32 %v726, %v946
      %v1067 = vmul.f32 %v728, %v947
      %v1068 = vmul.f32 %v919, %v948
      %v1069 = vmul.f32 %v921, %v949
      %v1070 = vmul.f32 %v732, %v946
      %v1071 = vmul.f32 %v734, %v947
      %v1072 = vmul.f32 %v925, %v948
      %v1073 = vmul.f32 %v927, %v949
      %v1074 = vmul.f32 %v736, %v946
      %v1075 = vmul.f32 %v738, %v947
      %v1076 = vmul.f32 %v929, %v948
      %v1077 = vmul.f32 %v931, %v949
      %v1078 = vmax.f32 %v582, %v950
      %v1079 = vmax.f32 %v584, %v951
      %v1080 = vmax.f32 %v775, %v952
      %v1081 = vmax.f32 %v777, %v953
      %v1082 = vmax.f32 %v586, %v954
      %v1083 = vmax.f32 %v588, %v955
      %v1084 = vmax.f32 %v779, %v956
      %v1085 = vmax.f32 %v781, %v957
      %v1086 = vmax.f32 %v592, %v958
      %v1087 = vmax.f32 %v594, %v959
      %v1088 = vmax.f32 %v785, %v960
      %v1089 = vmax.f32 %v787, %v961
      %v1090 = vmax.f32 %v596, %v962
      %v1091 = vmax.f32 %v598, %v963
      %v1092 = vmax.f32 %v789, %v964
      %v1093 = vmax.f32 %v791, %v965
      %v1094 = vmax.f32 %v602, %v966
      %v1095 = vmax.f32 %v604, %v967
      %v1096 = vmax.f32 %v795, %v968
      %v1097 = vmax.f32 %v797, %v969
      %v1098 = vmax.f32 %v606, %v970
      %v1099 = vmax.f32 %v608, %v971
      %v1100 = vmax.f32 %v799, %v972
      %v1101 = vmax.f32 %v801, %v973
      %v1102 = vmax.f32 %v612, %v974
      %v1103 = vmax.f32 %v614, %v975
      %v1104 = vmax.f32 %v805, %v976
      %v1105 = vmax.f32 %v807, %v977
      %v1106 = vmax.f32 %v616, %v978
      %v1107 = vmax.f32 %v618, %v979
      %v1108 = vmax.f32 %v809, %v980
      %v1109 = vmax.f32 %v811, %v981
      %v1110 = vmax.f32 %v622, %v982
      %v1111 = vmax.f32 %v624, %v983
      %v1112 = vmax.f32 %v815, %v984
      %v1113 = vmax.f32 %v817, %v985
      %v1114 = vmax.f32 %v626, %v986
      %v1115 = vmax.f32 %v628, %v987
      %v1116 = vmax.f32 %v819, %v988
      %v1117 = vmax.f32 %v821, %v989
      %v1118 = vmax.f32 %v632, %v990
      %v1119 = vmax.f32 %v634, %v991
      %v1120 = vmax.f32 %v825, %v992
      %v1121 = vmax.f32 %v827, %v993
      %v1122 = vmax.f32 %v636, %v994
      %v1123 = vmax.f32 %v638, %v995
      %v1124 = vmax.f32 %v829, %v996
      %v1125 = vmax.f32 %v831, %v997
      %v1126 = vmax.f32 %v642, %v998
      %v1127 = vmax.f32 %v644, %v999
      %v1128 = vmax.f32 %v835, %v1000
      %v1129 = vmax.f32 %v837, %v1001
      %v1130 = vmax.f32 %v646, %v1002
      %v1131 = vmax.f32 %v648, %v1003
      %v1132 = vmax.f32 %v839, %v1004
      %v1133 = vmax.f32 %v841, %v1005
      %v1134 = vmax.f32 %v652, %v1006
      %v1135 = vmax.f32 %v654, %v1007
      %v1136 = vmax.f32 %v845, %v1008
      %v1137 = vmax.f32 %v847, %v1009
      %v1138 = vmax.f32 %v656, %v1010
      %v1139 = vmax.f32 %v658, %v1011
      %v1140 = vmax.f32 %v849, %v1012
      %v1141 = vmax.f32 %v851, %v1013
      %v1142 = vmax.f32 %v662, %v1014
      %v1143 = vmax.f32 %v664, %v1015
      %v1144 = vmax.f32 %v855, %v1016
      %v1145 = vmax.f32 %v857, %v1017
      %v1146 = vmax.f32 %v666, %v1018
      %v1147 = vmax.f32 %v668, %v1019
      %v1148 = vmax.f32 %v859, %v1020
      %v1149 = vmax.f32 %v861, %v1021
      %v1150 = vmax.f32 %v672, %v1022
      %v1151 = vmax.f32 %v674, %v1023
      %v1152 = vmax.f32 %v865, %v1024
      %v1153 = vmax.f32 %v867, %v1025
      %v1154 = vmax.f32 %v676, %v1026
      %v1155 = vmax.f32 %v678, %v1027
      %v1156 = vmax.f32 %v869, %v1028
      %v1157 = vmax.f32 %v871, %v1029
      %v1158 = vmax.f32 %v682, %v1030
      %v1159 = vmax.f32 %v684, %v1031
      %v1160 = vmax.f32 %v875, %v1032
      %v1161 = vmax.f32 %v877, %v1033
      %v1162 = vmax.f32 %v686, %v1034
      %v1163 = vmax.f32 %v688, %v1035
      %v1164 = vmax.f32 %v879, %v1036
      %v1165 = vmax.f32 %v881, %v1037
      %v1166 = vmax.f32 %v692, %v1038
      %v1167 = vmax.f32 %v694, %v1039
      %v1168 = vmax.f32 %v885, %v1040
      %v1169 = vmax.f32 %v887, %v1041
      %v1170 = vmax.f32 %v696, %v1042
      %v1171 = vmax.f32 %v698, %v1043
      %v1172 = vmax.f32 %v889, %v1044
      %v1173 = vmax.f32 %v891, %v1045
      %v1174 = vmax.f32 %v702, %v1046
      %v1175 = vmax.f32 %v704, %v1047
      %v1176 = vmax.f32 %v895, %v1048
      %v1177 = vmax.f32 %v897, %v1049
      %v1178 = vmax.f32 %v706, %v1050
      %v1179 = vmax.f32 %v708, %v1051
      %v1180 = vmax.f32 %v899, %v1052
      %v1181 = vmax.f32 %v901, %v1053
      %v1182 = vmax.f32 %v712, %v1054
      %v1183 = vmax.f32 %v714, %v1055
      %v1184 = vmax.f32 %v905, %v1056
      %v1185 = vmax.f32 %v907, %v1057
      %v1186 = vmax.f32 %v716, %v1058
      %v1187 = vmax.f32 %v718, %v1059
      %v1188 = vmax.f32 %v909, %v1060
      %v1189 = vmax.f32 %v911, %v1061
      %v1190 = vmax.f32 %v722, %v1062
      %v1191 = vmax.f32 %v724, %v1063
      %v1192 = vmax.f32 %v915, %v1064
      %v1193 = vmax.f32 %v917, %v1065
      %v1194 = vmax.f32 %v726, %v1066
      %v1195 = vmax.f32 %v728, %v1067
      %v1196 = vmax.f32 %v919, %v1068
      %v1197 = vmax.f32 %v921, %v1069
      %v1198 = vmax.f32 %v732, %v1070
      %v1199 = vmax.f32 %v734, %v1071
      %v1200 = vmax.f32 %v925, %v1072
      %v1201 = vmax.f32 %v927, %v1073
      %v1202 = vmax.f32 %v736, %v1074
      %v1203 = vmax.f32 %v738, %v1075
      %v1204 = vmax.f32 %v929, %v1076
      %v1205 = vmax.f32 %v931, %v1077
      %v1206 = vpack.c.bf16 %v1082, %v1078
      %v1207 = vpack.c.bf16 %v1083, %v1079
      %v1208 = vpack.c.bf16 %v1084, %v1080
      %v1209 = vpack.c.bf16 %v1085, %v1081
      %v1210 = vpack.c.bf16 %v1090, %v1086
      %v1211 = vpack.c.bf16 %v1091, %v1087
      %v1212 = vpack.c.bf16 %v1092, %v1088
      %v1213 = vpack.c.bf16 %v1093, %v1089
      %v1214 = vpack.c.bf16 %v1098, %v1094
      %v1215 = vpack.c.bf16 %v1099, %v1095
      %v1216 = vpack.c.bf16 %v1100, %v1096
      %v1217 = vpack.c.bf16 %v1101, %v1097
      %v1218 = vpack.c.bf16 %v1106, %v1102
      %v1219 = vpack.c.bf16 %v1107, %v1103
      %v1220 = vpack.c.bf16 %v1108, %v1104
      %v1221 = vpack.c.bf16 %v1109, %v1105
      %v1222 = vpack.c.bf16 %v1114, %v1110
      %v1223 = vpack.c.bf16 %v1115, %v1111
      %v1224 = vpack.c.bf16 %v1116, %v1112
      %v1225 = vpack.c.bf16 %v1117, %v1113
      %v1226 = vpack.c.bf16 %v1122, %v1118
      %v1227 = vpack.c.bf16 %v1123, %v1119
      %v1228 = vpack.c.bf16 %v1124, %v1120
      %v1229 = vpack.c.bf16 %v1125, %v1121
      %v1230 = vpack.c.bf16 %v1130, %v1126
      %v1231 = vpack.c.bf16 %v1131, %v1127
      %v1232 = vpack.c.bf16 %v1132, %v1128
      %v1233 = vpack.c.bf16 %v1133, %v1129
      %v1234 = vpack.c.bf16 %v1138, %v1134
      %v1235 = vpack.c.bf16 %v1139, %v1135
      %v1236 = vpack.c.bf16 %v1140, %v1136
      %v1237 = vpack.c.bf16 %v1141, %v1137
      %v1238 = vpack.c.bf16 %v1146, %v1142
      %v1239 = vpack.c.bf16 %v1147, %v1143
      %v1240 = vpack.c.bf16 %v1148, %v1144
      %v1241 = vpack.c.bf16 %v1149, %v1145
      %v1242 = vpack.c.bf16 %v1154, %v1150
      %v1243 = vpack.c.bf16 %v1155, %v1151
      %v1244 = vpack.c.bf16 %v1156, %v1152
      %v1245 = vpack.c.bf16 %v1157, %v1153
      %v1246 = vpack.c.bf16 %v1162, %v1158
      %v1247 = vpack.c.bf16 %v1163, %v1159
      %v1248 = vpack.c.bf16 %v1164, %v1160
      %v1249 = vpack.c.bf16 %v1165, %v1161
      %v1250 = vpack.c.bf16 %v1170, %v1166
      %v1251 = vpack.c.bf16 %v1171, %v1167
      %v1252 = vpack.c.bf16 %v1172, %v1168
      %v1253 = vpack.c.bf16 %v1173, %v1169
      %v1254 = vpack.c.bf16 %v1178, %v1174
      %v1255 = vpack.c.bf16 %v1179, %v1175
      %v1256 = vpack.c.bf16 %v1180, %v1176
      %v1257 = vpack.c.bf16 %v1181, %v1177
      %v1258 = vpack.c.bf16 %v1186, %v1182
      %v1259 = vpack.c.bf16 %v1187, %v1183
      %v1260 = vpack.c.bf16 %v1188, %v1184
      %v1261 = vpack.c.bf16 %v1189, %v1185
      %v1262 = vpack.c.bf16 %v1194, %v1190
      %v1263 = vpack.c.bf16 %v1195, %v1191
      %v1264 = vpack.c.bf16 %v1196, %v1192
      %v1265 = vpack.c.bf16 %v1197, %v1193
      %v1266 = vpack.c.bf16 %v1202, %v1198
      %v1267 = vpack.c.bf16 %v1203, %v1199
      %v1268 = vpack.c.bf16 %v1204, %v1200
      %v1269 = vpack.c.bf16 %v1205, %v1201
      %v1270 = vld [vmem:[%s3] sm:$0xff]
      %v1271 = vld [vmem:[%s3 + $0x8] sm:$0xff]
      %v1272 = vld [vmem:[%s3 + $0x10] sm:$0xff]
      %v1273 = vld [vmem:[%s3 + $0x18] sm:$0xff]
      %v1274 = vld [vmem:[%s3 + $0x20] sm:$0xff]
      %v1275 = vld [vmem:[%s3 + $0x28] sm:$0xff]
      %v1276 = vld [vmem:[%s3 + $0x30] sm:$0xff]
      %v1277 = vld [vmem:[%s3 + $0x38] sm:$0xff]
      %v1278 = vld [vmem:[%s3 + $0x40] sm:$0xff]
      %v1279 = vld [vmem:[%s3 + $0x48] sm:$0xff]
      %v1280 = vld [vmem:[%s3 + $0x50] sm:$0xff]
      %v1281 = vld [vmem:[%s3 + $0x58] sm:$0xff]
      %v1282 = vld [vmem:[%s3 + $0x60] sm:$0xff]
      %v1283 = vld [vmem:[%s3 + $0x68] sm:$0xff]
      %v1284 = vld [vmem:[%s3 + $0x70] sm:$0xff]
      %v1285 = vld [vmem:[%s3 + $0x78] sm:$0xff]
      %v1286 = vld [vmem:[%s3 + $0x80] sm:$0xff]
      %v1287 = vld [vmem:[%s3 + $0x88] sm:$0xff]
      %v1288 = vld [vmem:[%s3 + $0x90] sm:$0xff]
      %v1289 = vld [vmem:[%s3 + $0x98] sm:$0xff]
      %v1290 = vld [vmem:[%s3 + $0xa0] sm:$0xff]
      %v1291 = vld [vmem:[%s3 + $0xa8] sm:$0xff]
      %v1292 = vld [vmem:[%s3 + $0xb0] sm:$0xff]
      %v1293 = vld [vmem:[%s3 + $0xb8] sm:$0xff]
      %v1294 = vld [vmem:[%s3 + $0xc0] sm:$0xff]
      %v1295 = vld [vmem:[%s3 + $0xc8] sm:$0xff]
      %v1296 = vld [vmem:[%s3 + $0xd0] sm:$0xff]
      %v1297 = vld [vmem:[%s3 + $0xd8] sm:$0xff]
      %v1298 = vld [vmem:[%s3 + $0xe0] sm:$0xff]
      %v1299 = vld [vmem:[%s3 + $0xe8] sm:$0xff]
      %v1300 = vld [vmem:[%s3 + $0xf0] sm:$0xff]
      %v1301 = vld [vmem:[%s3 + $0xf8] sm:$0xff]
      %v1302 = vld [vmem:[%s3 + $0x100] sm:$0xff]
      %v1303 = vld [vmem:[%s3 + $0x108] sm:$0xff]
      %v1304 = vld [vmem:[%s3 + $0x110] sm:$0xff]
      %v1305 = vld [vmem:[%s3 + $0x118] sm:$0xff]
      %v1306 = vld [vmem:[%s3 + $0x120] sm:$0xff]
      %v1307 = vld [vmem:[%s3 + $0x128] sm:$0xff]
      %v1308 = vld [vmem:[%s3 + $0x130] sm:$0xff]
      %v1309 = vld [vmem:[%s3 + $0x138] sm:$0xff]
      %v1310 = vld [vmem:[%s3 + $0x140] sm:$0xff]
      %v1311 = vld [vmem:[%s3 + $0x148] sm:$0xff]
      %v1312 = vld [vmem:[%s3 + $0x150] sm:$0xff]
      %v1313 = vld [vmem:[%s3 + $0x158] sm:$0xff]
      %v1314 = vld [vmem:[%s3 + $0x160] sm:$0xff]
      %v1315 = vld [vmem:[%s3 + $0x168] sm:$0xff]
      %v1316 = vld [vmem:[%s3 + $0x170] sm:$0xff]
      %v1317 = vld [vmem:[%s3 + $0x178] sm:$0xff]
      %v1318 = vld [vmem:[%s3 + $0x180] sm:$0xff]
      %v1319 = vld [vmem:[%s3 + $0x188] sm:$0xff]
      %v1320 = vld [vmem:[%s3 + $0x190] sm:$0xff]
      %v1321 = vld [vmem:[%s3 + $0x198] sm:$0xff]
      %v1322 = vld [vmem:[%s3 + $0x1a0] sm:$0xff]
      %v1323 = vld [vmem:[%s3 + $0x1a8] sm:$0xff]
      %v1324 = vld [vmem:[%s3 + $0x1b0] sm:$0xff]
      %v1325 = vld [vmem:[%s3 + $0x1b8] sm:$0xff]
      %v1326 = vld [vmem:[%s3 + $0x1c0] sm:$0xff]
      %v1327 = vld [vmem:[%s3 + $0x1c8] sm:$0xff]
      %v1328 = vld [vmem:[%s3 + $0x1d0] sm:$0xff]
      %v1329 = vld [vmem:[%s3 + $0x1d8] sm:$0xff]
      %v1330 = vld [vmem:[%s3 + $0x1e0] sm:$0xff]
      %v1331 = vld [vmem:[%s3 + $0x1e8] sm:$0xff]
      %v1332 = vld [vmem:[%s3 + $0x1f0] sm:$0xff]
      %v1333 = vld [vmem:[%s3 + $0x1f8] sm:$0xff]
      %v1334 = vld [vmem:[%s4] sm:$0x3]
      %v1336 = vlaneseq
      %v1337 = vshrl.u32 %v1336, 7
      %v1338 = vsub.s32 0, %v1337
      %v1339 = vrot.slane %v1334, %v1338
      %v1340 = vlaneseq
      %v1341 = vshrl.u32 %v1340, 7
      %v1342 = vsub.s32 1, %v1341
      %v1343 = vrot.slane %v1334, %v1342
      %v1410 = vunpack.c.l.b16 %v1270
      %v1411 = vunpack.c.h.b16 %v1270
      %v1412 = vunpack.c.l.b16 %v1271
      %v1413 = vunpack.c.h.b16 %v1271
      %v1414 = vunpack.c.l.b16 %v1272
      %v1415 = vunpack.c.h.b16 %v1272
      %v1416 = vunpack.c.l.b16 %v1273
      %v1417 = vunpack.c.h.b16 %v1273
      %v1418 = vunpack.c.l.b16 %v1274
      %v1419 = vunpack.c.h.b16 %v1274
      %v1420 = vunpack.c.l.b16 %v1275
      %v1421 = vunpack.c.h.b16 %v1275
      %v1422 = vunpack.c.l.b16 %v1276
      %v1423 = vunpack.c.h.b16 %v1276
      %v1424 = vunpack.c.l.b16 %v1277
      %v1425 = vunpack.c.h.b16 %v1277
      %v1426 = vunpack.c.l.b16 %v1278
      %v1427 = vunpack.c.h.b16 %v1278
      %v1428 = vunpack.c.l.b16 %v1279
      %v1429 = vunpack.c.h.b16 %v1279
      %v1430 = vunpack.c.l.b16 %v1280
      %v1431 = vunpack.c.h.b16 %v1280
      %v1432 = vunpack.c.l.b16 %v1281
      %v1433 = vunpack.c.h.b16 %v1281
      %v1434 = vunpack.c.l.b16 %v1282
      %v1435 = vunpack.c.h.b16 %v1282
      %v1436 = vunpack.c.l.b16 %v1283
      %v1437 = vunpack.c.h.b16 %v1283
      %v1438 = vunpack.c.l.b16 %v1284
      %v1439 = vunpack.c.h.b16 %v1284
      %v1440 = vunpack.c.l.b16 %v1285
      %v1441 = vunpack.c.h.b16 %v1285
      %v1442 = vunpack.c.l.b16 %v1286
      %v1443 = vunpack.c.h.b16 %v1286
      %v1444 = vunpack.c.l.b16 %v1287
      %v1445 = vunpack.c.h.b16 %v1287
      %v1446 = vunpack.c.l.b16 %v1288
      %v1447 = vunpack.c.h.b16 %v1288
      %v1448 = vunpack.c.l.b16 %v1289
      %v1449 = vunpack.c.h.b16 %v1289
      %v1450 = vunpack.c.l.b16 %v1290
      %v1451 = vunpack.c.h.b16 %v1290
      %v1452 = vunpack.c.l.b16 %v1291
      %v1453 = vunpack.c.h.b16 %v1291
      %v1454 = vunpack.c.l.b16 %v1292
      %v1455 = vunpack.c.h.b16 %v1292
      %v1456 = vunpack.c.l.b16 %v1293
      %v1457 = vunpack.c.h.b16 %v1293
      %v1458 = vunpack.c.l.b16 %v1294
      %v1459 = vunpack.c.h.b16 %v1294
      %v1460 = vunpack.c.l.b16 %v1295
      %v1461 = vunpack.c.h.b16 %v1295
      %v1462 = vunpack.c.l.b16 %v1296
      %v1463 = vunpack.c.h.b16 %v1296
      %v1464 = vunpack.c.l.b16 %v1297
      %v1465 = vunpack.c.h.b16 %v1297
      %v1466 = vunpack.c.l.b16 %v1298
      %v1467 = vunpack.c.h.b16 %v1298
      %v1468 = vunpack.c.l.b16 %v1299
      %v1469 = vunpack.c.h.b16 %v1299
      %v1470 = vunpack.c.l.b16 %v1300
      %v1471 = vunpack.c.h.b16 %v1300
      %v1472 = vunpack.c.l.b16 %v1301
      %v1473 = vunpack.c.h.b16 %v1301
      %v1474 = vunpack.c.l.b16 %v1302
      %v1475 = vunpack.c.h.b16 %v1302
      %v1476 = vunpack.c.l.b16 %v1303
      %v1477 = vunpack.c.h.b16 %v1303
      %v1478 = vunpack.c.l.b16 %v1304
      %v1479 = vunpack.c.h.b16 %v1304
      %v1480 = vunpack.c.l.b16 %v1305
      %v1481 = vunpack.c.h.b16 %v1305
      %v1482 = vunpack.c.l.b16 %v1306
      %v1483 = vunpack.c.h.b16 %v1306
      %v1484 = vunpack.c.l.b16 %v1307
      %v1485 = vunpack.c.h.b16 %v1307
      %v1486 = vunpack.c.l.b16 %v1308
      %v1487 = vunpack.c.h.b16 %v1308
      %v1488 = vunpack.c.l.b16 %v1309
      %v1489 = vunpack.c.h.b16 %v1309
      %v1490 = vunpack.c.l.b16 %v1310
      %v1491 = vunpack.c.h.b16 %v1310
      %v1492 = vunpack.c.l.b16 %v1311
      %v1493 = vunpack.c.h.b16 %v1311
      %v1494 = vunpack.c.l.b16 %v1312
      %v1495 = vunpack.c.h.b16 %v1312
      %v1496 = vunpack.c.l.b16 %v1313
      %v1497 = vunpack.c.h.b16 %v1313
      %v1498 = vunpack.c.l.b16 %v1314
      %v1499 = vunpack.c.h.b16 %v1314
      %v1500 = vunpack.c.l.b16 %v1315
      %v1501 = vunpack.c.h.b16 %v1315
      %v1502 = vunpack.c.l.b16 %v1316
      %v1503 = vunpack.c.h.b16 %v1316
      %v1504 = vunpack.c.l.b16 %v1317
      %v1505 = vunpack.c.h.b16 %v1317
      %v1506 = vunpack.c.l.b16 %v1318
      %v1507 = vunpack.c.h.b16 %v1318
      %v1508 = vunpack.c.l.b16 %v1319
      %v1509 = vunpack.c.h.b16 %v1319
      %v1510 = vunpack.c.l.b16 %v1320
      %v1511 = vunpack.c.h.b16 %v1320
      %v1512 = vunpack.c.l.b16 %v1321
      %v1513 = vunpack.c.h.b16 %v1321
      %v1514 = vunpack.c.l.b16 %v1322
      %v1515 = vunpack.c.h.b16 %v1322
      %v1516 = vunpack.c.l.b16 %v1323
      %v1517 = vunpack.c.h.b16 %v1323
      %v1518 = vunpack.c.l.b16 %v1324
      %v1519 = vunpack.c.h.b16 %v1324
      %v1520 = vunpack.c.l.b16 %v1325
      %v1521 = vunpack.c.h.b16 %v1325
      %v1522 = vunpack.c.l.b16 %v1326
      %v1523 = vunpack.c.h.b16 %v1326
      %v1524 = vunpack.c.l.b16 %v1327
      %v1525 = vunpack.c.h.b16 %v1327
      %v1526 = vunpack.c.l.b16 %v1328
      %v1527 = vunpack.c.h.b16 %v1328
      %v1528 = vunpack.c.l.b16 %v1329
      %v1529 = vunpack.c.h.b16 %v1329
      %v1530 = vunpack.c.l.b16 %v1330
      %v1531 = vunpack.c.h.b16 %v1330
      %v1532 = vunpack.c.l.b16 %v1331
      %v1533 = vunpack.c.h.b16 %v1331
      %v1534 = vunpack.c.l.b16 %v1332
      %v1535 = vunpack.c.h.b16 %v1332
      %v1536 = vunpack.c.l.b16 %v1333
      %v1537 = vunpack.c.h.b16 %v1333
      %v1538 = vpack.c.b16 %v1412, %v1410
      %v1539 = vpack.c.b16 %v1413, %v1411
      %v1540 = vpack.c.b16 %v1416, %v1414
      %v1541 = vpack.c.b16 %v1417, %v1415
      %v1542 = vpack.c.b16 %v1420, %v1418
      %v1543 = vpack.c.b16 %v1421, %v1419
      %v1544 = vpack.c.b16 %v1424, %v1422
      %v1545 = vpack.c.b16 %v1425, %v1423
      %v1546 = vpack.c.b16 %v1428, %v1426
      %v1547 = vpack.c.b16 %v1429, %v1427
      %v1548 = vpack.c.b16 %v1432, %v1430
      %v1549 = vpack.c.b16 %v1433, %v1431
      %v1550 = vpack.c.b16 %v1436, %v1434
      %v1551 = vpack.c.b16 %v1437, %v1435
      %v1552 = vpack.c.b16 %v1440, %v1438
      %v1553 = vpack.c.b16 %v1441, %v1439
      %v1554 = vpack.c.b16 %v1444, %v1442
      %v1555 = vpack.c.b16 %v1445, %v1443
      %v1556 = vpack.c.b16 %v1448, %v1446
      %v1557 = vpack.c.b16 %v1449, %v1447
      %v1558 = vpack.c.b16 %v1452, %v1450
      %v1559 = vpack.c.b16 %v1453, %v1451
      %v1560 = vpack.c.b16 %v1456, %v1454
      %v1561 = vpack.c.b16 %v1457, %v1455
      %v1562 = vpack.c.b16 %v1460, %v1458
      %v1563 = vpack.c.b16 %v1461, %v1459
      %v1564 = vpack.c.b16 %v1464, %v1462
      %v1565 = vpack.c.b16 %v1465, %v1463
      %v1566 = vpack.c.b16 %v1468, %v1466
      %v1567 = vpack.c.b16 %v1469, %v1467
      %v1568 = vpack.c.b16 %v1472, %v1470
      %v1569 = vpack.c.b16 %v1473, %v1471
      %v1570 = vpack.c.b16 %v1476, %v1474
      %v1571 = vpack.c.b16 %v1477, %v1475
      %v1572 = vpack.c.b16 %v1480, %v1478
      %v1573 = vpack.c.b16 %v1481, %v1479
      %v1574 = vpack.c.b16 %v1484, %v1482
      %v1575 = vpack.c.b16 %v1485, %v1483
      %v1576 = vpack.c.b16 %v1488, %v1486
      %v1577 = vpack.c.b16 %v1489, %v1487
      %v1578 = vpack.c.b16 %v1492, %v1490
      %v1579 = vpack.c.b16 %v1493, %v1491
      %v1580 = vpack.c.b16 %v1496, %v1494
      %v1581 = vpack.c.b16 %v1497, %v1495
      %v1582 = vpack.c.b16 %v1500, %v1498
      %v1583 = vpack.c.b16 %v1501, %v1499
      %v1584 = vpack.c.b16 %v1504, %v1502
      %v1585 = vpack.c.b16 %v1505, %v1503
      %v1586 = vpack.c.b16 %v1508, %v1506
      %v1587 = vpack.c.b16 %v1509, %v1507
      %v1588 = vpack.c.b16 %v1512, %v1510
      %v1589 = vpack.c.b16 %v1513, %v1511
      %v1590 = vpack.c.b16 %v1516, %v1514
      %v1591 = vpack.c.b16 %v1517, %v1515
      %v1592 = vpack.c.b16 %v1520, %v1518
      %v1593 = vpack.c.b16 %v1521, %v1519
      %v1594 = vpack.c.b16 %v1524, %v1522
      %v1595 = vpack.c.b16 %v1525, %v1523
      %v1596 = vpack.c.b16 %v1528, %v1526
      %v1597 = vpack.c.b16 %v1529, %v1527
      %v1598 = vpack.c.b16 %v1532, %v1530
      %v1599 = vpack.c.b16 %v1533, %v1531
      %v1600 = vpack.c.b16 %v1536, %v1534
      %v1601 = vpack.c.b16 %v1537, %v1535
      %1666 = vmatprep.subr.bf16.mxu0 %v1539
      %1667 = vmatpush1.bf16.msra.mxu0 %v1538
      %1668 = vmatprep.subr.bf16.mxu0 %v1541
      %1669 = vmatpush1.bf16.msra.mxu0 %v1540
      %1670 = vmatprep.subr.bf16.mxu0 %v1543
      %1671 = vmatpush1.bf16.msra.mxu0 %v1542
      %1672 = vmatprep.subr.bf16.mxu0 %v1545
      %1673 = vmatpush1.bf16.msra.mxu0 %v1544
      %1674 = vmatprep.subr.bf16.mxu0 %v1547
      %1675 = vmatpush1.bf16.msra.mxu0 %v1546
      %1676 = vmatprep.subr.bf16.mxu0 %v1549
      %1677 = vmatpush1.bf16.msra.mxu0 %v1548
      %1678 = vmatprep.subr.bf16.mxu0 %v1551
      %1679 = vmatpush1.bf16.msra.mxu0 %v1550
      %1680 = vmatprep.subr.bf16.mxu0 %v1553
      %1681 = vmatpush1.bf16.msra.mxu0 %v1552
      %1682 = vmatprep.subr.bf16.mxu0 %v1555
      %1683 = vmatpush1.bf16.msra.mxu0 %v1554
      %1684 = vmatprep.subr.bf16.mxu0 %v1557
      %1685 = vmatpush1.bf16.msra.mxu0 %v1556
      %1686 = vmatprep.subr.bf16.mxu0 %v1559
      %1687 = vmatpush1.bf16.msra.mxu0 %v1558
      %1688 = vmatprep.subr.bf16.mxu0 %v1561
      %1689 = vmatpush1.bf16.msra.mxu0 %v1560
      %1690 = vmatprep.subr.bf16.mxu0 %v1563
      %1691 = vmatpush1.bf16.msra.mxu0 %v1562
      %1692 = vmatprep.subr.bf16.mxu0 %v1565
      %1693 = vmatpush1.bf16.msra.mxu0 %v1564
      %1694 = vmatprep.subr.bf16.mxu0 %v1567
      %1695 = vmatpush1.bf16.msra.mxu0 %v1566
      %1696 = vmatprep.subr.bf16.mxu0 %v1569
      %1697 = vmatpush1.bf16.msra.mxu0 %v1568
      %1698 = vmatprep.mubr.bf16.mxu0 %v1207
      %1699 = vmatmul.mubr.bf16.gmra.mrb[0].mxu0 %v1206
      %v1700 = vpop.f32.mrb[0].mxu0
      %v1701 = vadd.f32 %v1339, %v1700
      %v1702 = vpop.f32.mrb[0].mxu0
      %v1703 = vadd.f32 %v1343, %v1702
      %v1704 = vpop.f32.mrb[0].mxu0
      %v1705 = vadd.f32 %v1339, %v1704
      %v1706 = vpop.f32.mrb[0].mxu0
      %v1707 = vadd.f32 %v1343, %v1706
      %1708 = vmatprep.mubr.bf16.mxu0 %v1211
      %1709 = vmatmul.mubr.bf16.gmra.mrb[0].mxu0 %v1210
      %v1710 = vpop.f32.mrb[0].mxu0
      %v1711 = vadd.f32 %v1339, %v1710
      %v1712 = vpop.f32.mrb[0].mxu0
      %v1713 = vadd.f32 %v1343, %v1712
      %v1714 = vpop.f32.mrb[0].mxu0
      %v1715 = vadd.f32 %v1339, %v1714
      %v1716 = vpop.f32.mrb[0].mxu0
      %v1717 = vadd.f32 %v1343, %v1716
      %1718 = vmatprep.mubr.bf16.mxu0 %v1215
      %1719 = vmatmul.mubr.bf16.gmra.mrb[0].mxu0 %v1214
      %v1720 = vpop.f32.mrb[0].mxu0
      %v1721 = vadd.f32 %v1339, %v1720
      %v1722 = vpop.f32.mrb[0].mxu0
      %v1723 = vadd.f32 %v1343, %v1722
      %v1724 = vpop.f32.mrb[0].mxu0
      %v1725 = vadd.f32 %v1339, %v1724
      %v1726 = vpop.f32.mrb[0].mxu0
      %v1727 = vadd.f32 %v1343, %v1726
      %1728 = vmatprep.mubr.bf16.mxu0 %v1219
      %1729 = vmatmul.mubr.bf16.gmra.mrb[0].mxu0 %v1218
      %v1730 = vpop.f32.mrb[0].mxu0
      %v1731 = vadd.f32 %v1339, %v1730
      %v1732 = vpop.f32.mrb[0].mxu0
      %v1733 = vadd.f32 %v1343, %v1732
      %v1734 = vpop.f32.mrb[0].mxu0
      %v1735 = vadd.f32 %v1339, %v1734
      %v1736 = vpop.f32.mrb[0].mxu0
      %v1737 = vadd.f32 %v1343, %v1736
      %1738 = vmatprep.mubr.bf16.mxu0 %v1223
      %1739 = vmatmul.mubr.bf16.gmra.mrb[0].mxu0 %v1222
      %v1740 = vpop.f32.mrb[0].mxu0
      %v1741 = vadd.f32 %v1339, %v1740
      %v1742 = vpop.f32.mrb[0].mxu0
      %v1743 = vadd.f32 %v1343, %v1742
      %v1744 = vpop.f32.mrb[0].mxu0
      %v1745 = vadd.f32 %v1339, %v1744
      %v1746 = vpop.f32.mrb[0].mxu0
      %v1747 = vadd.f32 %v1343, %v1746
      %1748 = vmatprep.mubr.bf16.mxu0 %v1227
      %1749 = vmatmul.mubr.bf16.gmra.mrb[0].mxu0 %v1226
      %v1750 = vpop.f32.mrb[0].mxu0
      %v1751 = vadd.f32 %v1339, %v1750
      %v1752 = vpop.f32.mrb[0].mxu0
      %v1753 = vadd.f32 %v1343, %v1752
      %v1754 = vpop.f32.mrb[0].mxu0
      %v1755 = vadd.f32 %v1339, %v1754
      %v1756 = vpop.f32.mrb[0].mxu0
      %v1757 = vadd.f32 %v1343, %v1756
      %1758 = vmatprep.mubr.bf16.mxu0 %v1231
      %1759 = vmatmul.mubr.bf16.gmra.mrb[0].mxu0 %v1230
      %v1760 = vpop.f32.mrb[0].mxu0
      %v1761 = vadd.f32 %v1339, %v1760
      %v1762 = vpop.f32.mrb[0].mxu0
      %v1763 = vadd.f32 %v1343, %v1762
      %v1764 = vpop.f32.mrb[0].mxu0
      %v1765 = vadd.f32 %v1339, %v1764
      %v1766 = vpop.f32.mrb[0].mxu0
      %v1767 = vadd.f32 %v1343, %v1766
      %1768 = vmatprep.mubr.bf16.mxu0 %v1235
      %1769 = vmatmul.mubr.bf16.gmra.mrb[0].mxu0 %v1234
      %v1770 = vpop.f32.mrb[0].mxu0
      %v1771 = vadd.f32 %v1339, %v1770
      %v1772 = vpop.f32.mrb[0].mxu0
      %v1773 = vadd.f32 %v1343, %v1772
      %v1774 = vpop.f32.mrb[0].mxu0
      %v1775 = vadd.f32 %v1339, %v1774
      %v1776 = vpop.f32.mrb[0].mxu0
      %v1777 = vadd.f32 %v1343, %v1776
      %1778 = vmatprep.mubr.bf16.mxu0 %v1239
      %1779 = vmatmul.mubr.bf16.gmra.mrb[0].mxu0 %v1238
      %v1780 = vpop.f32.mrb[0].mxu0
      %v1781 = vadd.f32 %v1339, %v1780
      %v1782 = vpop.f32.mrb[0].mxu0
      %v1783 = vadd.f32 %v1343, %v1782
      %v1784 = vpop.f32.mrb[0].mxu0
      %v1785 = vadd.f32 %v1339, %v1784
      %v1786 = vpop.f32.mrb[0].mxu0
      %v1787 = vadd.f32 %v1343, %v1786
      %1788 = vmatprep.mubr.bf16.mxu0 %v1243
      %1789 = vmatmul.mubr.bf16.gmra.mrb[0].mxu0 %v1242
      %v1790 = vpop.f32.mrb[0].mxu0
      %v1791 = vadd.f32 %v1339, %v1790
      %v1792 = vpop.f32.mrb[0].mxu0
      %v1793 = vadd.f32 %v1343, %v1792
      %v1794 = vpop.f32.mrb[0].mxu0
      %v1795 = vadd.f32 %v1339, %v1794
      %v1796 = vpop.f32.mrb[0].mxu0
      %v1797 = vadd.f32 %v1343, %v1796
      %1798 = vmatprep.mubr.bf16.mxu0 %v1247
      %1799 = vmatmul.mubr.bf16.gmra.mrb[0].mxu0 %v1246
      %v1800 = vpop.f32.mrb[0].mxu0
      %v1801 = vadd.f32 %v1339, %v1800
      %v1802 = vpop.f32.mrb[0].mxu0
      %v1803 = vadd.f32 %v1343, %v1802
      %v1804 = vpop.f32.mrb[0].mxu0
      %v1805 = vadd.f32 %v1339, %v1804
      %v1806 = vpop.f32.mrb[0].mxu0
      %v1807 = vadd.f32 %v1343, %v1806
      %1808 = vmatprep.mubr.bf16.mxu0 %v1251
      %1809 = vmatmul.mubr.bf16.gmra.mrb[0].mxu0 %v1250
      %v1810 = vpop.f32.mrb[0].mxu0
      %v1811 = vadd.f32 %v1339, %v1810
      %v1812 = vpop.f32.mrb[0].mxu0
      %v1813 = vadd.f32 %v1343, %v1812
      %v1814 = vpop.f32.mrb[0].mxu0
      %v1815 = vadd.f32 %v1339, %v1814
      %v1816 = vpop.f32.mrb[0].mxu0
      %v1817 = vadd.f32 %v1343, %v1816
      %1818 = vmatprep.mubr.bf16.mxu0 %v1255
      %1819 = vmatmul.mubr.bf16.gmra.mrb[0].mxu0 %v1254
      %v1820 = vpop.f32.mrb[0].mxu0
      %v1821 = vadd.f32 %v1339, %v1820
      %v1822 = vpop.f32.mrb[0].mxu0
      %v1823 = vadd.f32 %v1343, %v1822
      %v1824 = vpop.f32.mrb[0].mxu0
      %v1825 = vadd.f32 %v1339, %v1824
      %v1826 = vpop.f32.mrb[0].mxu0
      %v1827 = vadd.f32 %v1343, %v1826
      %1828 = vmatprep.mubr.bf16.mxu0 %v1259
      %1829 = vmatmul.mubr.bf16.gmra.mrb[0].mxu0 %v1258
      %v1830 = vpop.f32.mrb[0].mxu0
      %v1831 = vadd.f32 %v1339, %v1830
      %v1832 = vpop.f32.mrb[0].mxu0
      %v1833 = vadd.f32 %v1343, %v1832
      %v1834 = vpop.f32.mrb[0].mxu0
      %v1835 = vadd.f32 %v1339, %v1834
      %v1836 = vpop.f32.mrb[0].mxu0
      %v1837 = vadd.f32 %v1343, %v1836
      %1838 = vmatprep.mubr.bf16.mxu0 %v1263
      %1839 = vmatmul.mubr.bf16.gmra.mrb[0].mxu0 %v1262
      %v1840 = vpop.f32.mrb[0].mxu0
      %v1841 = vadd.f32 %v1339, %v1840
      %v1842 = vpop.f32.mrb[0].mxu0
      %v1843 = vadd.f32 %v1343, %v1842
      %v1844 = vpop.f32.mrb[0].mxu0
      %v1845 = vadd.f32 %v1339, %v1844
      %v1846 = vpop.f32.mrb[0].mxu0
      %v1847 = vadd.f32 %v1343, %v1846
      %1848 = vmatprep.mubr.bf16.mxu0 %v1267
      %1849 = vmatmul.mubr.bf16.gmra.mrb[0].mxu0 %v1266
      %v1850 = vpop.f32.mrb[0].mxu0
      %v1851 = vadd.f32 %v1339, %v1850
      %v1852 = vpop.f32.mrb[0].mxu0
      %v1853 = vadd.f32 %v1343, %v1852
      %v1854 = vpop.f32.mrb[0].mxu0
      %v1855 = vadd.f32 %v1339, %v1854
      %v1856 = vpop.f32.mrb[0].mxu0
      %v1857 = vadd.f32 %v1343, %v1856
      %1858 = vdwg.mxu0
      %1859 = vmatprep.subr.bf16.mxu0 %v1571
      %1860 = vmatpush1.bf16.msra.mxu0 %v1570
      %1861 = vmatprep.subr.bf16.mxu0 %v1573
      %1862 = vmatpush1.bf16.msra.mxu0 %v1572
      %1863 = vmatprep.subr.bf16.mxu0 %v1575
      %1864 = vmatpush1.bf16.msra.mxu0 %v1574
      %1865 = vmatprep.subr.bf16.mxu0 %v1577
      %1866 = vmatpush1.bf16.msra.mxu0 %v1576
      %1867 = vmatprep.subr.bf16.mxu0 %v1579
      %1868 = vmatpush1.bf16.msra.mxu0 %v1578
      %1869 = vmatprep.subr.bf16.mxu0 %v1581
      %1870 = vmatpush1.bf16.msra.mxu0 %v1580
      %1871 = vmatprep.subr.bf16.mxu0 %v1583
      %1872 = vmatpush1.bf16.msra.mxu0 %v1582
      %1873 = vmatprep.subr.bf16.mxu0 %v1585
      %1874 = vmatpush1.bf16.msra.mxu0 %v1584
      %1875 = vmatprep.subr.bf16.mxu0 %v1587
      %1876 = vmatpush1.bf16.msra.mxu0 %v1586
      %1877 = vmatprep.subr.bf16.mxu0 %v1589
      %1878 = vmatpush1.bf16.msra.mxu0 %v1588
      %1879 = vmatprep.subr.bf16.mxu0 %v1591
      %1880 = vmatpush1.bf16.msra.mxu0 %v1590
      %1881 = vmatprep.subr.bf16.mxu0 %v1593
      %1882 = vmatpush1.bf16.msra.mxu0 %v1592
      %1883 = vmatprep.subr.bf16.mxu0 %v1595
      %1884 = vmatpush1.bf16.msra.mxu0 %v1594
      %1885 = vmatprep.subr.bf16.mxu0 %v1597
      %1886 = vmatpush1.bf16.msra.mxu0 %v1596
      %1887 = vmatprep.subr.bf16.mxu0 %v1599
      %1888 = vmatpush1.bf16.msra.mxu0 %v1598
      %1889 = vmatprep.subr.bf16.mxu0 %v1601
      %1890 = vmatpush1.bf16.msra.mxu0 %v1600
      %1891 = vmatprep.mubr.bf16.mxu0 %v1209
      %1892 = vmatmul.mubr.bf16.gmra.mrb[0].mxu0 %v1208
      %v1893 = vpop.f32.mrb[0].mxu0
      %v1894 = vadd.f32 %v1701, %v1893
      %v1895 = vpop.f32.mrb[0].mxu0
      %v1896 = vadd.f32 %v1703, %v1895
      %v1897 = vpop.f32.mrb[0].mxu0
      %v1898 = vadd.f32 %v1705, %v1897
      %v1899 = vpop.f32.mrb[0].mxu0
      %v1900 = vadd.f32 %v1707, %v1899
      %1901 = vmatprep.mubr.bf16.mxu0 %v1213
      %1902 = vmatmul.mubr.bf16.gmra.mrb[0].mxu0 %v1212
      %v1903 = vpop.f32.mrb[0].mxu0
      %v1904 = vadd.f32 %v1711, %v1903
      %v1905 = vpop.f32.mrb[0].mxu0
      %v1906 = vadd.f32 %v1713, %v1905
      %v1907 = vpop.f32.mrb[0].mxu0
      %v1908 = vadd.f32 %v1715, %v1907
      %v1909 = vpop.f32.mrb[0].mxu0
      %v1910 = vadd.f32 %v1717, %v1909
      %1911 = vmatprep.mubr.bf16.mxu0 %v1217
      %1912 = vmatmul.mubr.bf16.gmra.mrb[0].mxu0 %v1216
      %v1913 = vpop.f32.mrb[0].mxu0
      %v1914 = vadd.f32 %v1721, %v1913
      %v1915 = vpop.f32.mrb[0].mxu0
      %v1916 = vadd.f32 %v1723, %v1915
      %v1917 = vpop.f32.mrb[0].mxu0
      %v1918 = vadd.f32 %v1725, %v1917
      %v1919 = vpop.f32.mrb[0].mxu0
      %v1920 = vadd.f32 %v1727, %v1919
      %1921 = vmatprep.mubr.bf16.mxu0 %v1221
      %1922 = vmatmul.mubr.bf16.gmra.mrb[0].mxu0 %v1220
      %v1923 = vpop.f32.mrb[0].mxu0
      %v1924 = vadd.f32 %v1731, %v1923
      %v1925 = vpop.f32.mrb[0].mxu0
      %v1926 = vadd.f32 %v1733, %v1925
      %v1927 = vpop.f32.mrb[0].mxu0
      %v1928 = vadd.f32 %v1735, %v1927
      %v1929 = vpop.f32.mrb[0].mxu0
      %v1930 = vadd.f32 %v1737, %v1929
      %1931 = vmatprep.mubr.bf16.mxu0 %v1225
      %1932 = vmatmul.mubr.bf16.gmra.mrb[0].mxu0 %v1224
      %v1933 = vpop.f32.mrb[0].mxu0
      %v1934 = vadd.f32 %v1741, %v1933
      %v1935 = vpop.f32.mrb[0].mxu0
      %v1936 = vadd.f32 %v1743, %v1935
      %v1937 = vpop.f32.mrb[0].mxu0
      %v1938 = vadd.f32 %v1745, %v1937
      %v1939 = vpop.f32.mrb[0].mxu0
      %v1940 = vadd.f32 %v1747, %v1939
      %1941 = vmatprep.mubr.bf16.mxu0 %v1229
      %1942 = vmatmul.mubr.bf16.gmra.mrb[0].mxu0 %v1228
      %v1943 = vpop.f32.mrb[0].mxu0
      %v1944 = vadd.f32 %v1751, %v1943
      %v1945 = vpop.f32.mrb[0].mxu0
      %v1946 = vadd.f32 %v1753, %v1945
      %v1947 = vpop.f32.mrb[0].mxu0
      %v1948 = vadd.f32 %v1755, %v1947
      %v1949 = vpop.f32.mrb[0].mxu0
      %v1950 = vadd.f32 %v1757, %v1949
      %1951 = vmatprep.mubr.bf16.mxu0 %v1233
      %1952 = vmatmul.mubr.bf16.gmra.mrb[0].mxu0 %v1232
      %v1953 = vpop.f32.mrb[0].mxu0
      %v1954 = vadd.f32 %v1761, %v1953
      %v1955 = vpop.f32.mrb[0].mxu0
      %v1956 = vadd.f32 %v1763, %v1955
      %v1957 = vpop.f32.mrb[0].mxu0
      %v1958 = vadd.f32 %v1765, %v1957
      %v1959 = vpop.f32.mrb[0].mxu0
      %v1960 = vadd.f32 %v1767, %v1959
      %1961 = vmatprep.mubr.bf16.mxu0 %v1237
      %1962 = vmatmul.mubr.bf16.gmra.mrb[0].mxu0 %v1236
      %v1963 = vpop.f32.mrb[0].mxu0
      %v1964 = vadd.f32 %v1771, %v1963
      %v1965 = vpop.f32.mrb[0].mxu0
      %v1966 = vadd.f32 %v1773, %v1965
      %v1967 = vpop.f32.mrb[0].mxu0
      %v1968 = vadd.f32 %v1775, %v1967
      %v1969 = vpop.f32.mrb[0].mxu0
      %v1970 = vadd.f32 %v1777, %v1969
      %1971 = vmatprep.mubr.bf16.mxu0 %v1241
      %1972 = vmatmul.mubr.bf16.gmra.mrb[0].mxu0 %v1240
      %v1973 = vpop.f32.mrb[0].mxu0
      %v1974 = vadd.f32 %v1781, %v1973
      %v1975 = vpop.f32.mrb[0].mxu0
      %v1976 = vadd.f32 %v1783, %v1975
      %v1977 = vpop.f32.mrb[0].mxu0
      %v1978 = vadd.f32 %v1785, %v1977
      %v1979 = vpop.f32.mrb[0].mxu0
      %v1980 = vadd.f32 %v1787, %v1979
      %1981 = vmatprep.mubr.bf16.mxu0 %v1245
      %1982 = vmatmul.mubr.bf16.gmra.mrb[0].mxu0 %v1244
      %v1983 = vpop.f32.mrb[0].mxu0
      %v1984 = vadd.f32 %v1791, %v1983
      %v1985 = vpop.f32.mrb[0].mxu0
      %v1986 = vadd.f32 %v1793, %v1985
      %v1987 = vpop.f32.mrb[0].mxu0
      %v1988 = vadd.f32 %v1795, %v1987
      %v1989 = vpop.f32.mrb[0].mxu0
      %v1990 = vadd.f32 %v1797, %v1989
      %1991 = vmatprep.mubr.bf16.mxu0 %v1249
      %1992 = vmatmul.mubr.bf16.gmra.mrb[0].mxu0 %v1248
      %v1993 = vpop.f32.mrb[0].mxu0
      %v1994 = vadd.f32 %v1801, %v1993
      %v1995 = vpop.f32.mrb[0].mxu0
      %v1996 = vadd.f32 %v1803, %v1995
      %v1997 = vpop.f32.mrb[0].mxu0
      %v1998 = vadd.f32 %v1805, %v1997
      %v1999 = vpop.f32.mrb[0].mxu0
      %v2000 = vadd.f32 %v1807, %v1999
      %2001 = vmatprep.mubr.bf16.mxu0 %v1253
      %2002 = vmatmul.mubr.bf16.gmra.mrb[0].mxu0 %v1252
      %v2003 = vpop.f32.mrb[0].mxu0
      %v2004 = vadd.f32 %v1811, %v2003
      %v2005 = vpop.f32.mrb[0].mxu0
      %v2006 = vadd.f32 %v1813, %v2005
      %v2007 = vpop.f32.mrb[0].mxu0
      %v2008 = vadd.f32 %v1815, %v2007
      %v2009 = vpop.f32.mrb[0].mxu0
      %v2010 = vadd.f32 %v1817, %v2009
      %2011 = vmatprep.mubr.bf16.mxu0 %v1257
      %2012 = vmatmul.mubr.bf16.gmra.mrb[0].mxu0 %v1256
      %v2013 = vpop.f32.mrb[0].mxu0
      %v2014 = vadd.f32 %v1821, %v2013
      %v2015 = vpop.f32.mrb[0].mxu0
      %v2016 = vadd.f32 %v1823, %v2015
      %v2017 = vpop.f32.mrb[0].mxu0
      %v2018 = vadd.f32 %v1825, %v2017
      %v2019 = vpop.f32.mrb[0].mxu0
      %v2020 = vadd.f32 %v1827, %v2019
      %2021 = vmatprep.mubr.bf16.mxu0 %v1261
      %2022 = vmatmul.mubr.bf16.gmra.mrb[0].mxu0 %v1260
      %v2023 = vpop.f32.mrb[0].mxu0
      %v2024 = vadd.f32 %v1831, %v2023
      %v2025 = vpop.f32.mrb[0].mxu0
      %v2026 = vadd.f32 %v1833, %v2025
      %v2027 = vpop.f32.mrb[0].mxu0
      %v2028 = vadd.f32 %v1835, %v2027
      %v2029 = vpop.f32.mrb[0].mxu0
      %v2030 = vadd.f32 %v1837, %v2029
      %2031 = vmatprep.mubr.bf16.mxu0 %v1265
      %2032 = vmatmul.mubr.bf16.gmra.mrb[0].mxu0 %v1264
      %v2033 = vpop.f32.mrb[0].mxu0
      %v2034 = vadd.f32 %v1841, %v2033
      %v2035 = vpop.f32.mrb[0].mxu0
      %v2036 = vadd.f32 %v1843, %v2035
      %v2037 = vpop.f32.mrb[0].mxu0
      %v2038 = vadd.f32 %v1845, %v2037
      %v2039 = vpop.f32.mrb[0].mxu0
      %v2040 = vadd.f32 %v1847, %v2039
      %2041 = vmatprep.mubr.bf16.mxu0 %v1269
      %2042 = vmatmul.mubr.bf16.gmra.mrb[0].mxu0 %v1268
      %v2043 = vpop.f32.mrb[0].mxu0
      %v2044 = vadd.f32 %v1851, %v2043
      %v2045 = vpop.f32.mrb[0].mxu0
      %v2046 = vadd.f32 %v1853, %v2045
      %v2047 = vpop.f32.mrb[0].mxu0
      %v2048 = vadd.f32 %v1855, %v2047
      %v2049 = vpop.f32.mrb[0].mxu0
      %v2050 = vadd.f32 %v1857, %v2049
      %2051 = vdwg.mxu0
      %v2052 = vxor.u32 %v1894, 2147483648
      %v2053 = vxor.u32 %v1896, 2147483648
      %v2054 = vxor.u32 %v1898, 2147483648
      %v2055 = vxor.u32 %v1900, 2147483648
      %v2056 = vxor.u32 %v1904, 2147483648
      %v2057 = vxor.u32 %v1906, 2147483648
      %v2058 = vxor.u32 %v1908, 2147483648
      %v2059 = vxor.u32 %v1910, 2147483648
      %v2060 = vxor.u32 %v1914, 2147483648
      %v2061 = vxor.u32 %v1916, 2147483648
      %v2062 = vxor.u32 %v1918, 2147483648
      %v2063 = vxor.u32 %v1920, 2147483648
      %v2064 = vxor.u32 %v1924, 2147483648
      %v2065 = vxor.u32 %v1926, 2147483648
      %v2066 = vxor.u32 %v1928, 2147483648
      %v2067 = vxor.u32 %v1930, 2147483648
      %v2068 = vxor.u32 %v1934, 2147483648
      %v2069 = vxor.u32 %v1936, 2147483648
      %v2070 = vxor.u32 %v1938, 2147483648
      %v2071 = vxor.u32 %v1940, 2147483648
      %v2072 = vxor.u32 %v1944, 2147483648
      %v2073 = vxor.u32 %v1946, 2147483648
      %v2074 = vxor.u32 %v1948, 2147483648
      %v2075 = vxor.u32 %v1950, 2147483648
      %v2076 = vxor.u32 %v1954, 2147483648
      %v2077 = vxor.u32 %v1956, 2147483648
      %v2078 = vxor.u32 %v1958, 2147483648
      %v2079 = vxor.u32 %v1960, 2147483648
      %v2080 = vxor.u32 %v1964, 2147483648
      %v2081 = vxor.u32 %v1966, 2147483648
      %v2082 = vxor.u32 %v1968, 2147483648
      %v2083 = vxor.u32 %v1970, 2147483648
      %v2084 = vxor.u32 %v1974, 2147483648
      %v2085 = vxor.u32 %v1976, 2147483648
      %v2086 = vxor.u32 %v1978, 2147483648
      %v2087 = vxor.u32 %v1980, 2147483648
      %v2088 = vxor.u32 %v1984, 2147483648
      %v2089 = vxor.u32 %v1986, 2147483648
      %v2090 = vxor.u32 %v1988, 2147483648
      %v2091 = vxor.u32 %v1990, 2147483648
      %v2092 = vxor.u32 %v1994, 2147483648
      %v2093 = vxor.u32 %v1996, 2147483648
      %v2094 = vxor.u32 %v1998, 2147483648
      %v2095 = vxor.u32 %v2000, 2147483648
      %v2096 = vxor.u32 %v2004, 2147483648
      %v2097 = vxor.u32 %v2006, 2147483648
      %v2098 = vxor.u32 %v2008, 2147483648
      %v2099 = vxor.u32 %v2010, 2147483648
      %v2100 = vxor.u32 %v2014, 2147483648
      %v2101 = vxor.u32 %v2016, 2147483648
      %v2102 = vxor.u32 %v2018, 2147483648
      %v2103 = vxor.u32 %v2020, 2147483648
      %v2104 = vxor.u32 %v2024, 2147483648
      %v2105 = vxor.u32 %v2026, 2147483648
      %v2106 = vxor.u32 %v2028, 2147483648
      %v2107 = vxor.u32 %v2030, 2147483648
      %v2108 = vxor.u32 %v2034, 2147483648
      %v2109 = vxor.u32 %v2036, 2147483648
      %v2110 = vxor.u32 %v2038, 2147483648
      %v2111 = vxor.u32 %v2040, 2147483648
      %v2112 = vxor.u32 %v2044, 2147483648
      %v2113 = vxor.u32 %v2046, 2147483648
      %v2114 = vxor.u32 %v2048, 2147483648
      %v2115 = vxor.u32 %v2050, 2147483648
      %v2116 = vmul.f32 %v2052, 1.442695
      %v2117 = vpow.pop %v2116
      %v2118 = vmul.f32 %v2053, 1.442695
      %v2119 = vpow.pop %v2118
      %v2120 = vmul.f32 %v2054, 1.442695
      %v2121 = vpow.pop %v2120
      %v2122 = vmul.f32 %v2055, 1.442695
      %v2123 = vpow.pop %v2122
      %v2124 = vmul.f32 %v2056, 1.442695
      %v2125 = vpow.pop %v2124
      %v2126 = vmul.f32 %v2057, 1.442695
      %v2127 = vpow.pop %v2126
      %v2128 = vmul.f32 %v2058, 1.442695
      %v2129 = vpow.pop %v2128
      %v2130 = vmul.f32 %v2059, 1.442695
      %v2131 = vpow.pop %v2130
      %v2132 = vmul.f32 %v2060, 1.442695
      %v2133 = vpow.pop %v2132
      %v2134 = vmul.f32 %v2061, 1.442695
      %v2135 = vpow.pop %v2134
      %v2136 = vmul.f32 %v2062, 1.442695
      %v2137 = vpow.pop %v2136
      %v2138 = vmul.f32 %v2063, 1.442695
      %v2139 = vpow.pop %v2138
      %v2140 = vmul.f32 %v2064, 1.442695
      %v2141 = vpow.pop %v2140
      %v2142 = vmul.f32 %v2065, 1.442695
      %v2143 = vpow.pop %v2142
      %v2144 = vmul.f32 %v2066, 1.442695
      %v2145 = vpow.pop %v2144
      %v2146 = vmul.f32 %v2067, 1.442695
      %v2147 = vpow.pop %v2146
      %v2148 = vmul.f32 %v2068, 1.442695
      %v2149 = vpow.pop %v2148
      %v2150 = vmul.f32 %v2069, 1.442695
      %v2151 = vpow.pop %v2150
      %v2152 = vmul.f32 %v2070, 1.442695
      %v2153 = vpow.pop %v2152
      %v2154 = vmul.f32 %v2071, 1.442695
      %v2155 = vpow.pop %v2154
      %v2156 = vmul.f32 %v2072, 1.442695
      %v2157 = vpow.pop %v2156
      %v2158 = vmul.f32 %v2073, 1.442695
      %v2159 = vpow.pop %v2158
      %v2160 = vmul.f32 %v2074, 1.442695
      %v2161 = vpow.pop %v2160
      %v2162 = vmul.f32 %v2075, 1.442695
      %v2163 = vpow.pop %v2162
      %v2164 = vmul.f32 %v2076, 1.442695
      %v2165 = vpow.pop %v2164
      %v2166 = vmul.f32 %v2077, 1.442695
      %v2167 = vpow.pop %v2166
      %v2168 = vmul.f32 %v2078, 1.442695
      %v2169 = vpow.pop %v2168
      %v2170 = vmul.f32 %v2079, 1.442695
      %v2171 = vpow.pop %v2170
      %v2172 = vmul.f32 %v2080, 1.442695
      %v2173 = vpow.pop %v2172
      %v2174 = vmul.f32 %v2081, 1.442695
      %v2175 = vpow.pop %v2174
      %v2176 = vmul.f32 %v2082, 1.442695
      %v2177 = vpow.pop %v2176
      %v2178 = vmul.f32 %v2083, 1.442695
      %v2179 = vpow.pop %v2178
      %v2180 = vmul.f32 %v2084, 1.442695
      %v2181 = vpow.pop %v2180
      %v2182 = vmul.f32 %v2085, 1.442695
      %v2183 = vpow.pop %v2182
      %v2184 = vmul.f32 %v2086, 1.442695
      %v2185 = vpow.pop %v2184
      %v2186 = vmul.f32 %v2087, 1.442695
      %v2187 = vpow.pop %v2186
      %v2188 = vmul.f32 %v2088, 1.442695
      %v2189 = vpow.pop %v2188
      %v2190 = vmul.f32 %v2089, 1.442695
      %v2191 = vpow.pop %v2190
      %v2192 = vmul.f32 %v2090, 1.442695
      %v2193 = vpow.pop %v2192
      %v2194 = vmul.f32 %v2091, 1.442695
      %v2195 = vpow.pop %v2194
      %v2196 = vmul.f32 %v2092, 1.442695
      %v2197 = vpow.pop %v2196
      %v2198 = vmul.f32 %v2093, 1.442695
      %v2199 = vpow.pop %v2198
      %v2200 = vmul.f32 %v2094, 1.442695
      %v2201 = vpow.pop %v2200
      %v2202 = vmul.f32 %v2095, 1.442695
      %v2203 = vpow.pop %v2202
      %v2204 = vmul.f32 %v2096, 1.442695
      %v2205 = vpow.pop %v2204
      %v2206 = vmul.f32 %v2097, 1.442695
      %v2207 = vpow.pop %v2206
      %v2208 = vmul.f32 %v2098, 1.442695
      %v2209 = vpow.pop %v2208
      %v2210 = vmul.f32 %v2099, 1.442695
      %v2211 = vpow.pop %v2210
      %v2212 = vmul.f32 %v2100, 1.442695
      %v2213 = vpow.pop %v2212
      %v2214 = vmul.f32 %v2101, 1.442695
      %v2215 = vpow.pop %v2214
      %v2216 = vmul.f32 %v2102, 1.442695
      %v2217 = vpow.pop %v2216
      %v2218 = vmul.f32 %v2103, 1.442695
      %v2219 = vpow.pop %v2218
      %v2220 = vmul.f32 %v2104, 1.442695
      %v2221 = vpow.pop %v2220
      %v2222 = vmul.f32 %v2105, 1.442695
      %v2223 = vpow.pop %v2222
      %v2224 = vmul.f32 %v2106, 1.442695
      %v2225 = vpow.pop %v2224
      %v2226 = vmul.f32 %v2107, 1.442695
      %v2227 = vpow.pop %v2226
      %v2228 = vmul.f32 %v2108, 1.442695
      %v2229 = vpow.pop %v2228
      %v2230 = vmul.f32 %v2109, 1.442695
      %v2231 = vpow.pop %v2230
      %v2232 = vmul.f32 %v2110, 1.442695
      %v2233 = vpow.pop %v2232
      %v2234 = vmul.f32 %v2111, 1.442695
      %v2235 = vpow.pop %v2234
      %v2236 = vmul.f32 %v2112, 1.442695
      %v2237 = vpow.pop %v2236
      %v2238 = vmul.f32 %v2113, 1.442695
      %v2239 = vpow.pop %v2238
      %v2240 = vmul.f32 %v2114, 1.442695
      %v2241 = vpow.pop %v2240
      %v2242 = vmul.f32 %v2115, 1.442695
      %v2243 = vpow.pop %v2242
      %v2244 = vadd.f32 %v2117, 1.0
      %v2245 = vadd.f32 %v2119, 1.0
      %v2246 = vadd.f32 %v2121, 1.0
      %v2247 = vadd.f32 %v2123, 1.0
      %v2248 = vadd.f32 %v2125, 1.0
      %v2249 = vadd.f32 %v2127, 1.0
      %v2250 = vadd.f32 %v2129, 1.0
      %v2251 = vadd.f32 %v2131, 1.0
      %v2252 = vadd.f32 %v2133, 1.0
      %v2253 = vadd.f32 %v2135, 1.0
      %v2254 = vadd.f32 %v2137, 1.0
      %v2255 = vadd.f32 %v2139, 1.0
      %v2256 = vadd.f32 %v2141, 1.0
      %v2257 = vadd.f32 %v2143, 1.0
      %v2258 = vadd.f32 %v2145, 1.0
      %v2259 = vadd.f32 %v2147, 1.0
      %v2260 = vadd.f32 %v2149, 1.0
      %v2261 = vadd.f32 %v2151, 1.0
      %v2262 = vadd.f32 %v2153, 1.0
      %v2263 = vadd.f32 %v2155, 1.0
      %v2264 = vadd.f32 %v2157, 1.0
      %v2265 = vadd.f32 %v2159, 1.0
      %v2266 = vadd.f32 %v2161, 1.0
      %v2267 = vadd.f32 %v2163, 1.0
      %v2268 = vadd.f32 %v2165, 1.0
      %v2269 = vadd.f32 %v2167, 1.0
      %v2270 = vadd.f32 %v2169, 1.0
      %v2271 = vadd.f32 %v2171, 1.0
      %v2272 = vadd.f32 %v2173, 1.0
      %v2273 = vadd.f32 %v2175, 1.0
      %v2274 = vadd.f32 %v2177, 1.0
      %v2275 = vadd.f32 %v2179, 1.0
      %v2276 = vadd.f32 %v2181, 1.0
      %v2277 = vadd.f32 %v2183, 1.0
      %v2278 = vadd.f32 %v2185, 1.0
      %v2279 = vadd.f32 %v2187, 1.0
      %v2280 = vadd.f32 %v2189, 1.0
      %v2281 = vadd.f32 %v2191, 1.0
      %v2282 = vadd.f32 %v2193, 1.0
      %v2283 = vadd.f32 %v2195, 1.0
      %v2284 = vadd.f32 %v2197, 1.0
      %v2285 = vadd.f32 %v2199, 1.0
      %v2286 = vadd.f32 %v2201, 1.0
      %v2287 = vadd.f32 %v2203, 1.0
      %v2288 = vadd.f32 %v2205, 1.0
      %v2289 = vadd.f32 %v2207, 1.0
      %v2290 = vadd.f32 %v2209, 1.0
      %v2291 = vadd.f32 %v2211, 1.0
      %v2292 = vadd.f32 %v2213, 1.0
      %v2293 = vadd.f32 %v2215, 1.0
      %v2294 = vadd.f32 %v2217, 1.0
      %v2295 = vadd.f32 %v2219, 1.0
      %v2296 = vadd.f32 %v2221, 1.0
      %v2297 = vadd.f32 %v2223, 1.0
      %v2298 = vadd.f32 %v2225, 1.0
      %v2299 = vadd.f32 %v2227, 1.0
      %v2300 = vadd.f32 %v2229, 1.0
      %v2301 = vadd.f32 %v2231, 1.0
      %v2302 = vadd.f32 %v2233, 1.0
      %v2303 = vadd.f32 %v2235, 1.0
      %v2304 = vadd.f32 %v2237, 1.0
      %v2305 = vadd.f32 %v2239, 1.0
      %v2306 = vadd.f32 %v2241, 1.0
      %v2307 = vadd.f32 %v2243, 1.0
      %v2308 = vrcp.pop %v2244
      %v2309 = vmul.f32 1.0, %v2308
      %v2310 = vrcp.pop %v2245
      %v2311 = vmul.f32 1.0, %v2310
      %v2312 = vrcp.pop %v2246
      %v2313 = vmul.f32 1.0, %v2312
      %v2314 = vrcp.pop %v2247
      %v2315 = vmul.f32 1.0, %v2314
      %v2316 = vrcp.pop %v2248
      %v2317 = vmul.f32 1.0, %v2316
      %v2318 = vrcp.pop %v2249
      %v2319 = vmul.f32 1.0, %v2318
      %v2320 = vrcp.pop %v2250
      %v2321 = vmul.f32 1.0, %v2320
      %v2322 = vrcp.pop %v2251
      %v2323 = vmul.f32 1.0, %v2322
      %v2324 = vrcp.pop %v2252
      %v2325 = vmul.f32 1.0, %v2324
      %v2326 = vrcp.pop %v2253
      %v2327 = vmul.f32 1.0, %v2326
      %v2328 = vrcp.pop %v2254
      %v2329 = vmul.f32 1.0, %v2328
      %v2330 = vrcp.pop %v2255
      %v2331 = vmul.f32 1.0, %v2330
      %v2332 = vrcp.pop %v2256
      %v2333 = vmul.f32 1.0, %v2332
      %v2334 = vrcp.pop %v2257
      %v2335 = vmul.f32 1.0, %v2334
      %v2336 = vrcp.pop %v2258
      %v2337 = vmul.f32 1.0, %v2336
      %v2338 = vrcp.pop %v2259
      %v2339 = vmul.f32 1.0, %v2338
      %v2340 = vrcp.pop %v2260
      %v2341 = vmul.f32 1.0, %v2340
      %v2342 = vrcp.pop %v2261
      %v2343 = vmul.f32 1.0, %v2342
      %v2344 = vrcp.pop %v2262
      %v2345 = vmul.f32 1.0, %v2344
      %v2346 = vrcp.pop %v2263
      %v2347 = vmul.f32 1.0, %v2346
      %v2348 = vrcp.pop %v2264
      %v2349 = vmul.f32 1.0, %v2348
      %v2350 = vrcp.pop %v2265
      %v2351 = vmul.f32 1.0, %v2350
      %v2352 = vrcp.pop %v2266
      %v2353 = vmul.f32 1.0, %v2352
      %v2354 = vrcp.pop %v2267
      %v2355 = vmul.f32 1.0, %v2354
      %v2356 = vrcp.pop %v2268
      %v2357 = vmul.f32 1.0, %v2356
      %v2358 = vrcp.pop %v2269
      %v2359 = vmul.f32 1.0, %v2358
      %v2360 = vrcp.pop %v2270
      %v2361 = vmul.f32 1.0, %v2360
      %v2362 = vrcp.pop %v2271
      %v2363 = vmul.f32 1.0, %v2362
      %v2364 = vrcp.pop %v2272
      %v2365 = vmul.f32 1.0, %v2364
      %v2366 = vrcp.pop %v2273
      %v2367 = vmul.f32 1.0, %v2366
      %v2368 = vrcp.pop %v2274
      %v2369 = vmul.f32 1.0, %v2368
      %v2370 = vrcp.pop %v2275
      %v2371 = vmul.f32 1.0, %v2370
      %v2372 = vrcp.pop %v2276
      %v2373 = vmul.f32 1.0, %v2372
      %v2374 = vrcp.pop %v2277
      %v2375 = vmul.f32 1.0, %v2374
      %v2376 = vrcp.pop %v2278
      %v2377 = vmul.f32 1.0, %v2376
      %v2378 = vrcp.pop %v2279
      %v2379 = vmul.f32 1.0, %v2378
      %v2380 = vrcp.pop %v2280
      %v2381 = vmul.f32 1.0, %v2380
      %v2382 = vrcp.pop %v2281
      %v2383 = vmul.f32 1.0, %v2382
      %v2384 = vrcp.pop %v2282
      %v2385 = vmul.f32 1.0, %v2384
      %v2386 = vrcp.pop %v2283
      %v2387 = vmul.f32 1.0, %v2386
      %v2388 = vrcp.pop %v2284
      %v2389 = vmul.f32 1.0, %v2388
      %v2390 = vrcp.pop %v2285
      %v2391 = vmul.f32 1.0, %v2390
      %v2392 = vrcp.pop %v2286
      %v2393 = vmul.f32 1.0, %v2392
      %v2394 = vrcp.pop %v2287
      %v2395 = vmul.f32 1.0, %v2394
      %v2396 = vrcp.pop %v2288
      %v2397 = vmul.f32 1.0, %v2396
      %v2398 = vrcp.pop %v2289
      %v2399 = vmul.f32 1.0, %v2398
      %v2400 = vrcp.pop %v2290
      %v2401 = vmul.f32 1.0, %v2400
      %v2402 = vrcp.pop %v2291
      %v2403 = vmul.f32 1.0, %v2402
      %v2404 = vrcp.pop %v2292
      %v2405 = vmul.f32 1.0, %v2404
      %v2406 = vrcp.pop %v2293
      %v2407 = vmul.f32 1.0, %v2406
      %v2408 = vrcp.pop %v2294
      %v2409 = vmul.f32 1.0, %v2408
      %v2410 = vrcp.pop %v2295
      %v2411 = vmul.f32 1.0, %v2410
      %v2412 = vrcp.pop %v2296
      %v2413 = vmul.f32 1.0, %v2412
      %v2414 = vrcp.pop %v2297
      %v2415 = vmul.f32 1.0, %v2414
      %v2416 = vrcp.pop %v2298
      %v2417 = vmul.f32 1.0, %v2416
      %v2418 = vrcp.pop %v2299
      %v2419 = vmul.f32 1.0, %v2418
      %v2420 = vrcp.pop %v2300
      %v2421 = vmul.f32 1.0, %v2420
      %v2422 = vrcp.pop %v2301
      %v2423 = vmul.f32 1.0, %v2422
      %v2424 = vrcp.pop %v2302
      %v2425 = vmul.f32 1.0, %v2424
      %v2426 = vrcp.pop %v2303
      %v2427 = vmul.f32 1.0, %v2426
      %v2428 = vrcp.pop %v2304
      %v2429 = vmul.f32 1.0, %v2428
      %v2430 = vrcp.pop %v2305
      %v2431 = vmul.f32 1.0, %v2430
      %v2432 = vrcp.pop %v2306
      %v2433 = vmul.f32 1.0, %v2432
      %v2434 = vrcp.pop %v2307
      %v2435 = vmul.f32 1.0, %v2434
      %v2436 = vsub.f32 %v582, %v1080
      %v2437 = vsub.f32 %v584, %v1081
      %v2438 = vsub.f32 %v586, %v1084
      %v2439 = vsub.f32 %v588, %v1085
      %v2440 = vsub.f32 %v592, %v1088
      %v2441 = vsub.f32 %v594, %v1089
      %v2442 = vsub.f32 %v596, %v1092
      %v2443 = vsub.f32 %v598, %v1093
      %v2444 = vsub.f32 %v602, %v1096
      %v2445 = vsub.f32 %v604, %v1097
      %v2446 = vsub.f32 %v606, %v1100
      %v2447 = vsub.f32 %v608, %v1101
      %v2448 = vsub.f32 %v612, %v1104
      %v2449 = vsub.f32 %v614, %v1105
      %v2450 = vsub.f32 %v616, %v1108
      %v2451 = vsub.f32 %v618, %v1109
      %v2452 = vsub.f32 %v622, %v1112
      %v2453 = vsub.f32 %v624, %v1113
      %v2454 = vsub.f32 %v626, %v1116
      %v2455 = vsub.f32 %v628, %v1117
      %v2456 = vsub.f32 %v632, %v1120
      %v2457 = vsub.f32 %v634, %v1121
      %v2458 = vsub.f32 %v636, %v1124
      %v2459 = vsub.f32 %v638, %v1125
      %v2460 = vsub.f32 %v642, %v1128
      %v2461 = vsub.f32 %v644, %v1129
      %v2462 = vsub.f32 %v646, %v1132
      %v2463 = vsub.f32 %v648, %v1133
      %v2464 = vsub.f32 %v652, %v1136
      %v2465 = vsub.f32 %v654, %v1137
      %v2466 = vsub.f32 %v656, %v1140
      %v2467 = vsub.f32 %v658, %v1141
      %v2468 = vsub.f32 %v662, %v1144
      %v2469 = vsub.f32 %v664, %v1145
      %v2470 = vsub.f32 %v666, %v1148
      %v2471 = vsub.f32 %v668, %v1149
      %v2472 = vsub.f32 %v672, %v1152
      %v2473 = vsub.f32 %v674, %v1153
      %v2474 = vsub.f32 %v676, %v1156
      %v2475 = vsub.f32 %v678, %v1157
      %v2476 = vsub.f32 %v682, %v1160
      %v2477 = vsub.f32 %v684, %v1161
      %v2478 = vsub.f32 %v686, %v1164
      %v2479 = vsub.f32 %v688, %v1165
      %v2480 = vsub.f32 %v692, %v1168
      %v2481 = vsub.f32 %v694, %v1169
      %v2482 = vsub.f32 %v696, %v1172
      %v2483 = vsub.f32 %v698, %v1173
      %v2484 = vsub.f32 %v702, %v1176
      %v2485 = vsub.f32 %v704, %v1177
      %v2486 = vsub.f32 %v706, %v1180
      %v2487 = vsub.f32 %v708, %v1181
      %v2488 = vsub.f32 %v712, %v1184
      %v2489 = vsub.f32 %v714, %v1185
      %v2490 = vsub.f32 %v716, %v1188
      %v2491 = vsub.f32 %v718, %v1189
      %v2492 = vsub.f32 %v722, %v1192
      %v2493 = vsub.f32 %v724, %v1193
      %v2494 = vsub.f32 %v726, %v1196
      %v2495 = vsub.f32 %v728, %v1197
      %v2496 = vsub.f32 %v732, %v1200
      %v2497 = vsub.f32 %v734, %v1201
      %v2498 = vsub.f32 %v736, %v1204
      %v2499 = vsub.f32 %v738, %v1205
      %v2500 = vmul.f32 %v2309, %v2436
      %v2501 = vmul.f32 %v2311, %v2437
      %v2502 = vmul.f32 %v2313, %v2438
      %v2503 = vmul.f32 %v2315, %v2439
      %v2504 = vmul.f32 %v2317, %v2440
      %v2505 = vmul.f32 %v2319, %v2441
      %v2506 = vmul.f32 %v2321, %v2442
      %v2507 = vmul.f32 %v2323, %v2443
      %v2508 = vmul.f32 %v2325, %v2444
      %v2509 = vmul.f32 %v2327, %v2445
      %v2510 = vmul.f32 %v2329, %v2446
      %v2511 = vmul.f32 %v2331, %v2447
      %v2512 = vmul.f32 %v2333, %v2448
      %v2513 = vmul.f32 %v2335, %v2449
      %v2514 = vmul.f32 %v2337, %v2450
      %v2515 = vmul.f32 %v2339, %v2451
      %v2516 = vmul.f32 %v2341, %v2452
      %v2517 = vmul.f32 %v2343, %v2453
      %v2518 = vmul.f32 %v2345, %v2454
      %v2519 = vmul.f32 %v2347, %v2455
      %v2520 = vmul.f32 %v2349, %v2456
      %v2521 = vmul.f32 %v2351, %v2457
      %v2522 = vmul.f32 %v2353, %v2458
      %v2523 = vmul.f32 %v2355, %v2459
      %v2524 = vmul.f32 %v2357, %v2460
      %v2525 = vmul.f32 %v2359, %v2461
      %v2526 = vmul.f32 %v2361, %v2462
      %v2527 = vmul.f32 %v2363, %v2463
      %v2528 = vmul.f32 %v2365, %v2464
      %v2529 = vmul.f32 %v2367, %v2465
      %v2530 = vmul.f32 %v2369, %v2466
      %v2531 = vmul.f32 %v2371, %v2467
      %v2532 = vmul.f32 %v2373, %v2468
      %v2533 = vmul.f32 %v2375, %v2469
      %v2534 = vmul.f32 %v2377, %v2470
      %v2535 = vmul.f32 %v2379, %v2471
      %v2536 = vmul.f32 %v2381, %v2472
      %v2537 = vmul.f32 %v2383, %v2473
      %v2538 = vmul.f32 %v2385, %v2474
      %v2539 = vmul.f32 %v2387, %v2475
      %v2540 = vmul.f32 %v2389, %v2476
      %v2541 = vmul.f32 %v2391, %v2477
      %v2542 = vmul.f32 %v2393, %v2478
      %v2543 = vmul.f32 %v2395, %v2479
      %v2544 = vmul.f32 %v2397, %v2480
      %v2545 = vmul.f32 %v2399, %v2481
      %v2546 = vmul.f32 %v2401, %v2482
      %v2547 = vmul.f32 %v2403, %v2483
      %v2548 = vmul.f32 %v2405, %v2484
      %v2549 = vmul.f32 %v2407, %v2485
      %v2550 = vmul.f32 %v2409, %v2486
      %v2551 = vmul.f32 %v2411, %v2487
      %v2552 = vmul.f32 %v2413, %v2488
      %v2553 = vmul.f32 %v2415, %v2489
      %v2554 = vmul.f32 %v2417, %v2490
      %v2555 = vmul.f32 %v2419, %v2491
      %v2556 = vmul.f32 %v2421, %v2492
      %v2557 = vmul.f32 %v2423, %v2493
      %v2558 = vmul.f32 %v2425, %v2494
      %v2559 = vmul.f32 %v2427, %v2495
      %v2560 = vmul.f32 %v2429, %v2496
      %v2561 = vmul.f32 %v2431, %v2497
      %v2562 = vmul.f32 %v2433, %v2498
      %v2563 = vmul.f32 %v2435, %v2499
      %v2564 = vadd.f32 %v1080, %v2500
      %v2565 = vadd.f32 %v1081, %v2501
      %v2566 = vadd.f32 %v1084, %v2502
      %v2567 = vadd.f32 %v1085, %v2503
      %v2568 = vadd.f32 %v1088, %v2504
      %v2569 = vadd.f32 %v1089, %v2505
      %v2570 = vadd.f32 %v1092, %v2506
      %v2571 = vadd.f32 %v1093, %v2507
      %v2572 = vadd.f32 %v1096, %v2508
      %v2573 = vadd.f32 %v1097, %v2509
      %v2574 = vadd.f32 %v1100, %v2510
      %v2575 = vadd.f32 %v1101, %v2511
      %v2576 = vadd.f32 %v1104, %v2512
      %v2577 = vadd.f32 %v1105, %v2513
      %v2578 = vadd.f32 %v1108, %v2514
      %v2579 = vadd.f32 %v1109, %v2515
      %v2580 = vadd.f32 %v1112, %v2516
      %v2581 = vadd.f32 %v1113, %v2517
      %v2582 = vadd.f32 %v1116, %v2518
      %v2583 = vadd.f32 %v1117, %v2519
      %v2584 = vadd.f32 %v1120, %v2520
      %v2585 = vadd.f32 %v1121, %v2521
      %v2586 = vadd.f32 %v1124, %v2522
      %v2587 = vadd.f32 %v1125, %v2523
      %v2588 = vadd.f32 %v1128, %v2524
      %v2589 = vadd.f32 %v1129, %v2525
      %v2590 = vadd.f32 %v1132, %v2526
      %v2591 = vadd.f32 %v1133, %v2527
      %v2592 = vadd.f32 %v1136, %v2528
      %v2593 = vadd.f32 %v1137, %v2529
      %v2594 = vadd.f32 %v1140, %v2530
      %v2595 = vadd.f32 %v1141, %v2531
      %v2596 = vadd.f32 %v1144, %v2532
      %v2597 = vadd.f32 %v1145, %v2533
      %v2598 = vadd.f32 %v1148, %v2534
      %v2599 = vadd.f32 %v1149, %v2535
      %v2600 = vadd.f32 %v1152, %v2536
      %v2601 = vadd.f32 %v1153, %v2537
      %v2602 = vadd.f32 %v1156, %v2538
      %v2603 = vadd.f32 %v1157, %v2539
      %v2604 = vadd.f32 %v1160, %v2540
      %v2605 = vadd.f32 %v1161, %v2541
      %v2606 = vadd.f32 %v1164, %v2542
      %v2607 = vadd.f32 %v1165, %v2543
      %v2608 = vadd.f32 %v1168, %v2544
      %v2609 = vadd.f32 %v1169, %v2545
      %v2610 = vadd.f32 %v1172, %v2546
      %v2611 = vadd.f32 %v1173, %v2547
      %v2612 = vadd.f32 %v1176, %v2548
      %v2613 = vadd.f32 %v1177, %v2549
      %v2614 = vadd.f32 %v1180, %v2550
      %v2615 = vadd.f32 %v1181, %v2551
      %v2616 = vadd.f32 %v1184, %v2552
      %v2617 = vadd.f32 %v1185, %v2553
      %v2618 = vadd.f32 %v1188, %v2554
      %v2619 = vadd.f32 %v1189, %v2555
      %v2620 = vadd.f32 %v1192, %v2556
      %v2621 = vadd.f32 %v1193, %v2557
      %v2622 = vadd.f32 %v1196, %v2558
      %v2623 = vadd.f32 %v1197, %v2559
      %v2624 = vadd.f32 %v1200, %v2560
      %v2625 = vadd.f32 %v1201, %v2561
      %v2626 = vadd.f32 %v1204, %v2562
      %v2627 = vadd.f32 %v1205, %v2563
      %v2628 = vld [vmem:[%s5] sm:$0x3]
      %v2630 = vlaneseq
      %v2631 = vshrl.u32 %v2630, 7
      %v2632 = vsub.s32 0, %v2631
      %v2633 = vrot.slane %v2628, %v2632
      %v2634 = vlaneseq
      %v2635 = vshrl.u32 %v2634, 7
      %v2636 = vsub.s32 1, %v2635
      %v2637 = vrot.slane %v2628, %v2636
      %v2640 = vmul.f32 %v2564, %v2633
      %v2641 = vmul.f32 %v2565, %v2637
      %v2642 = vmul.f32 %v2566, %v2633
      %v2643 = vmul.f32 %v2567, %v2637
      %v2644 = vmul.f32 %v2568, %v2633
      %v2645 = vmul.f32 %v2569, %v2637
      %v2646 = vmul.f32 %v2570, %v2633
      %v2647 = vmul.f32 %v2571, %v2637
      %v2648 = vmul.f32 %v2572, %v2633
      %v2649 = vmul.f32 %v2573, %v2637
      %v2650 = vmul.f32 %v2574, %v2633
      %v2651 = vmul.f32 %v2575, %v2637
      %v2652 = vmul.f32 %v2576, %v2633
      %v2653 = vmul.f32 %v2577, %v2637
      %v2654 = vmul.f32 %v2578, %v2633
      %v2655 = vmul.f32 %v2579, %v2637
      %v2656 = vmul.f32 %v2580, %v2633
      %v2657 = vmul.f32 %v2581, %v2637
      %v2658 = vmul.f32 %v2582, %v2633
      %v2659 = vmul.f32 %v2583, %v2637
      %v2660 = vmul.f32 %v2584, %v2633
      %v2661 = vmul.f32 %v2585, %v2637
      %v2662 = vmul.f32 %v2586, %v2633
      %v2663 = vmul.f32 %v2587, %v2637
      %v2664 = vmul.f32 %v2588, %v2633
      %v2665 = vmul.f32 %v2589, %v2637
      %v2666 = vmul.f32 %v2590, %v2633
      %v2667 = vmul.f32 %v2591, %v2637
      %v2668 = vmul.f32 %v2592, %v2633
      %v2669 = vmul.f32 %v2593, %v2637
      %v2670 = vmul.f32 %v2594, %v2633
      %v2671 = vmul.f32 %v2595, %v2637
      %v2672 = vmul.f32 %v2596, %v2633
      %v2673 = vmul.f32 %v2597, %v2637
      %v2674 = vmul.f32 %v2598, %v2633
      %v2675 = vmul.f32 %v2599, %v2637
      %v2676 = vmul.f32 %v2600, %v2633
      %v2677 = vmul.f32 %v2601, %v2637
      %v2678 = vmul.f32 %v2602, %v2633
      %v2679 = vmul.f32 %v2603, %v2637
      %v2680 = vmul.f32 %v2604, %v2633
      %v2681 = vmul.f32 %v2605, %v2637
      %v2682 = vmul.f32 %v2606, %v2633
      %v2683 = vmul.f32 %v2607, %v2637
      %v2684 = vmul.f32 %v2608, %v2633
      %v2685 = vmul.f32 %v2609, %v2637
      %v2686 = vmul.f32 %v2610, %v2633
      %v2687 = vmul.f32 %v2611, %v2637
      %v2688 = vmul.f32 %v2612, %v2633
      %v2689 = vmul.f32 %v2613, %v2637
      %v2690 = vmul.f32 %v2614, %v2633
      %v2691 = vmul.f32 %v2615, %v2637
      %v2692 = vmul.f32 %v2616, %v2633
      %v2693 = vmul.f32 %v2617, %v2637
      %v2694 = vmul.f32 %v2618, %v2633
      %v2695 = vmul.f32 %v2619, %v2637
      %v2696 = vmul.f32 %v2620, %v2633
      %v2697 = vmul.f32 %v2621, %v2637
      %v2698 = vmul.f32 %v2622, %v2633
      %v2699 = vmul.f32 %v2623, %v2637
      %v2700 = vmul.f32 %v2624, %v2633
      %v2701 = vmul.f32 %v2625, %v2637
      %v2702 = vmul.f32 %v2626, %v2633
      %v2703 = vmul.f32 %v2627, %v2637
      %v2704 = vadd.f32 %v2640, %v2641
      %2705 = vadd.xlane.f32.xlu0 %v2704
      %v2706 = vpop.xlane.xlu0 %2705
      %v2707 = vadd.f32 %v2642, %v2643
      %2708 = vadd.xlane.f32.xlu0 %v2707
      %v2709 = vpop.xlane.xlu0 %2708
      %v2710 = vadd.f32 %v2644, %v2645
      %2711 = vadd.xlane.f32.xlu0 %v2710
      %v2712 = vpop.xlane.xlu0 %2711
      %v2713 = vadd.f32 %v2646, %v2647
      %2714 = vadd.xlane.f32.xlu0 %v2713
      %v2715 = vpop.xlane.xlu0 %2714
      %v2716 = vadd.f32 %v2648, %v2649
      %2717 = vadd.xlane.f32.xlu0 %v2716
      %v2718 = vpop.xlane.xlu0 %2717
      %v2719 = vadd.f32 %v2650, %v2651
      %2720 = vadd.xlane.f32.xlu0 %v2719
      %v2721 = vpop.xlane.xlu0 %2720
      %v2722 = vadd.f32 %v2652, %v2653
      %2723 = vadd.xlane.f32.xlu0 %v2722
      %v2724 = vpop.xlane.xlu0 %2723
      %v2725 = vadd.f32 %v2654, %v2655
      %2726 = vadd.xlane.f32.xlu0 %v2725
      %v2727 = vpop.xlane.xlu0 %2726
      %v2728 = vadd.f32 %v2656, %v2657
      %2729 = vadd.xlane.f32.xlu0 %v2728
      %v2730 = vpop.xlane.xlu0 %2729
      %v2731 = vadd.f32 %v2658, %v2659
      %2732 = vadd.xlane.f32.xlu0 %v2731
      %v2733 = vpop.xlane.xlu0 %2732
      %v2734 = vadd.f32 %v2660, %v2661
      %2735 = vadd.xlane.f32.xlu0 %v2734
      %v2736 = vpop.xlane.xlu0 %2735
      %v2737 = vadd.f32 %v2662, %v2663
      %2738 = vadd.xlane.f32.xlu0 %v2737
      %v2739 = vpop.xlane.xlu0 %2738
      %v2740 = vadd.f32 %v2664, %v2665
      %2741 = vadd.xlane.f32.xlu0 %v2740
      %v2742 = vpop.xlane.xlu0 %2741
      %v2743 = vadd.f32 %v2666, %v2667
      %2744 = vadd.xlane.f32.xlu0 %v2743
      %v2745 = vpop.xlane.xlu0 %2744
      %v2746 = vadd.f32 %v2668, %v2669
      %2747 = vadd.xlane.f32.xlu0 %v2746
      %v2748 = vpop.xlane.xlu0 %2747
      %v2749 = vadd.f32 %v2670, %v2671
      %2750 = vadd.xlane.f32.xlu0 %v2749
      %v2751 = vpop.xlane.xlu0 %2750
      %v2752 = vadd.f32 %v2672, %v2673
      %2753 = vadd.xlane.f32.xlu0 %v2752
      %v2754 = vpop.xlane.xlu0 %2753
      %v2755 = vadd.f32 %v2674, %v2675
      %2756 = vadd.xlane.f32.xlu0 %v2755
      %v2757 = vpop.xlane.xlu0 %2756
      %v2758 = vadd.f32 %v2676, %v2677
      %2759 = vadd.xlane.f32.xlu0 %v2758
      %v2760 = vpop.xlane.xlu0 %2759
      %v2761 = vadd.f32 %v2678, %v2679
      %2762 = vadd.xlane.f32.xlu0 %v2761
      %v2763 = vpop.xlane.xlu0 %2762
      %v2764 = vadd.f32 %v2680, %v2681
      %2765 = vadd.xlane.f32.xlu0 %v2764
      %v2766 = vpop.xlane.xlu0 %2765
      %v2767 = vadd.f32 %v2682, %v2683
      %2768 = vadd.xlane.f32.xlu0 %v2767
      %v2769 = vpop.xlane.xlu0 %2768
      %v2770 = vadd.f32 %v2684, %v2685
      %2771 = vadd.xlane.f32.xlu0 %v2770
      %v2772 = vpop.xlane.xlu0 %2771
      %v2773 = vadd.f32 %v2686, %v2687
      %2774 = vadd.xlane.f32.xlu0 %v2773
      %v2775 = vpop.xlane.xlu0 %2774
      %v2776 = vadd.f32 %v2688, %v2689
      %2777 = vadd.xlane.f32.xlu0 %v2776
      %v2778 = vpop.xlane.xlu0 %2777
      %v2779 = vadd.f32 %v2690, %v2691
      %2780 = vadd.xlane.f32.xlu0 %v2779
      %v2781 = vpop.xlane.xlu0 %2780
      %v2782 = vadd.f32 %v2692, %v2693
      %2783 = vadd.xlane.f32.xlu0 %v2782
      %v2784 = vpop.xlane.xlu0 %2783
      %v2785 = vadd.f32 %v2694, %v2695
      %2786 = vadd.xlane.f32.xlu0 %v2785
      %v2787 = vpop.xlane.xlu0 %2786
      %v2788 = vadd.f32 %v2696, %v2697
      %2789 = vadd.xlane.f32.xlu0 %v2788
      %v2790 = vpop.xlane.xlu0 %2789
      %v2791 = vadd.f32 %v2698, %v2699
      %2792 = vadd.xlane.f32.xlu0 %v2791
      %v2793 = vpop.xlane.xlu0 %2792
      %v2794 = vadd.f32 %v2700, %v2701
      %2795 = vadd.xlane.f32.xlu0 %v2794
      %v2796 = vpop.xlane.xlu0 %2795
      %v2797 = vadd.f32 %v2702, %v2703
      %2798 = vadd.xlane.f32.xlu0 %v2797
      %v2799 = vpop.xlane.xlu0 %2798
      %vm2800 = vcmask 7168
      %2801 = vst.msk [vmem:[%s289] sm:$0xff] %vm2800, %v2706
      %2802 = vst.msk [vmem:[%s289 + $0x8] sm:$0xff] %vm2800, %v2709
      %2803 = vst.msk [vmem:[%s289 + $0x10] sm:$0xff] %vm2800, %v2712
      %2804 = vst.msk [vmem:[%s289 + $0x18] sm:$0xff] %vm2800, %v2715
      %2805 = vst.msk [vmem:[%s289 + $0x20] sm:$0xff] %vm2800, %v2718
      %2806 = vst.msk [vmem:[%s289 + $0x28] sm:$0xff] %vm2800, %v2721
      %2807 = vst.msk [vmem:[%s289 + $0x30] sm:$0xff] %vm2800, %v2724
      %2808 = vst.msk [vmem:[%s289 + $0x38] sm:$0xff] %vm2800, %v2727
      %2809 = vst.msk [vmem:[%s289 + $0x40] sm:$0xff] %vm2800, %v2730
      %2810 = vst.msk [vmem:[%s289 + $0x48] sm:$0xff] %vm2800, %v2733
      %2811 = vst.msk [vmem:[%s289 + $0x50] sm:$0xff] %vm2800, %v2736
      %2812 = vst.msk [vmem:[%s289 + $0x58] sm:$0xff] %vm2800, %v2739
      %2813 = vst.msk [vmem:[%s289 + $0x60] sm:$0xff] %vm2800, %v2742
      %2814 = vst.msk [vmem:[%s289 + $0x68] sm:$0xff] %vm2800, %v2745
      %2815 = vst.msk [vmem:[%s289 + $0x70] sm:$0xff] %vm2800, %v2748
      %2816 = vst.msk [vmem:[%s289 + $0x78] sm:$0xff] %vm2800, %v2751
      %2817 = vst.msk [vmem:[%s289 + $0x80] sm:$0xff] %vm2800, %v2754
      %2818 = vst.msk [vmem:[%s289 + $0x88] sm:$0xff] %vm2800, %v2757
      %2819 = vst.msk [vmem:[%s289 + $0x90] sm:$0xff] %vm2800, %v2760
      %2820 = vst.msk [vmem:[%s289 + $0x98] sm:$0xff] %vm2800, %v2763
      %2821 = vst.msk [vmem:[%s289 + $0xa0] sm:$0xff] %vm2800, %v2766
      %2822 = vst.msk [vmem:[%s289 + $0xa8] sm:$0xff] %vm2800, %v2769
      %2823 = vst.msk [vmem:[%s289 + $0xb0] sm:$0xff] %vm2800, %v2772
      %2824 = vst.msk [vmem:[%s289 + $0xb8] sm:$0xff] %vm2800, %v2775
      %2825 = vst.msk [vmem:[%s289 + $0xc0] sm:$0xff] %vm2800, %v2778
      %2826 = vst.msk [vmem:[%s289 + $0xc8] sm:$0xff] %vm2800, %v2781
      %2827 = vst.msk [vmem:[%s289 + $0xd0] sm:$0xff] %vm2800, %v2784
      %2828 = vst.msk [vmem:[%s289 + $0xd8] sm:$0xff] %vm2800, %v2787
      %2829 = vst.msk [vmem:[%s289 + $0xe0] sm:$0xff] %vm2800, %v2790
      %2830 = vst.msk [vmem:[%s289 + $0xe8] sm:$0xff] %vm2800, %v2793
      %2831 = vst.msk [vmem:[%s289 + $0xf0] sm:$0xff] %vm2800, %v2796
      %2832 = vst.msk [vmem:[%s289 + $0xf8] sm:$0xff] %vm2800, %v2799
      %s2833 = smul.u32 32, %s22
      %p2834 = scmp.lt.s32.totalorder %s21, 1
      %s2835 = scalar_select %p2834, %s21, 1
      %p2836 = scmp.lt.s32.totalorder %s2833, 31
      %s2837 = scalar_select %p2836, %s2833, 31
      %s2838 = smul.addr %s2835, 32
      %s2839 = sadd.s32 %s2837, %s2838
      %s2840 = smul.addr %s2839, 8
      %s2841 = scalar_lea.vmem %s6, %s2840
      // Predicated region
      $region45: #{mtsnet_forward.2} parent=43 // pred_check
        %p2842 = pneg %p182
      $region46: #{mtsnet_forward.2} parent=43 // pred_check_branch
        %2844 = sbr.rel (%p2842) target = $region48
      $region47: #{mtsnet_forward.2} parent=43 // pred_region
        %s2845 = smul.u32 32, %s22
      $region48: #{mtsnet_forward.2} parent=43 // pred_fallthru
        _
    $region44: #{mtsnet_forward.2} parent=5 // pred_fallthru
      _
    %p2846 = scmp.le.s32.totalorder 2, %s12
    // Predicated region
    $region49: #{mtsnet_forward.2} parent=5 // pred_check
      %p2847 = pneg %p2846
    $region50: #{mtsnet_forward.2} parent=5 // pred_check_branch
      %2849 = sbr.rel (%p2847) target = $region52
    $region51: #{mtsnet_forward.2} parent=5 // pred_region
      %s2850 = ssub.s32 %s12, 2
      // Predicated region
      $region53: #{mtsnet_forward.2} parent=51 // pred_check
        %p2851 = pneg %p188
      $region54: #{mtsnet_forward.2} parent=51 // pred_check_branch
        %2853 = sbr.rel (%p2851) target = $region56
      $region55: #{mtsnet_forward.2} parent=51 // pred_region
        %s2854 = smul.u32 32, %s24
        %p2855 = scmp.lt.s32.totalorder %s23, 1
        %s2856 = scalar_select %p2855, %s23, 1
        %p2857 = scmp.lt.s32.totalorder %s2854, 31
        %s2858 = scalar_select %p2857, %s2854, 31
        %s2859 = smul.addr %s2856, 32
        %s2860 = sadd.s32 %s2858, %s2859
        %s2861 = smul.addr %s2860, 8
        %s2862 = scalar_lea.vmem %s6, %s2861
      $region56: #{mtsnet_forward.2} parent=51 // pred_fallthru
        _
    $region52: #{mtsnet_forward.2} parent=5 // pred_fallthru
      _
  $region6: #{mtsnet_forward.2} parent=0 // loop_footer
    %s16 = sadd.s32 1, %s12
  $region7: #{mtsnet_forward.2} parent=0 // loop_footer_branch
    %11 = sbr.rel target = $region3
  $region8: #{mtsnet_forward.2} parent=0 // loop_exit
    _

</llo_original>
